<compile_context>
chip_gen: v7x
topology: tpu7x:2x2x1
jax: 0.10.0
libtpu: 0.0.40
codegen_flags: <defaults>
</compile_context>

<pallas_src>
import functools

import jax
import jax.numpy as jnp
from jax.experimental import pallas as pl
from jax.experimental.pallas import tpu as pltpu

ROW_TILE_K1 = 256        # row tile for the fused per-point kernel (stacked V*tm rows)
GROUP_TILE = 256         # groups per grid step for the fused group-matmul + mr kernel
VMEM_LIMIT = 32 * 1024 * 1024   # safe on v5e/v6e (128 MiB) and v7x (64 MiB) VMEM
USE_BF16_MXU = None      # None = auto: bf16 MXU operands on v6e/v7x, f32 elsewhere

_BF16_CACHE = None


def _use_bf16_mxu():
    global _BF16_CACHE
    if _BF16_CACHE is None:
        if USE_BF16_MXU is not None:
            _BF16_CACHE = bool(USE_BF16_MXU)
        else:
            try:
                kind = jax.devices()[0].device_kind.lower()
                _BF16_CACHE = ("v6" in kind) or ("v7" in kind)
            except Exception:  # pragma: no cover
                _BF16_CACHE = False
    return _BF16_CACHE


def _round_up(x, m):
    return ((x + m - 1) // m) * m


def _pick_tile(rows, max_tile, align):
    """Tile size: multiple of `align`, capped at max_tile, and (when possible)
    chosen so the grid has >= 2 steps so v7x can use both TensorCores."""
    r = _round_up(max(rows, 1), align)
    t = min(_round_up(max_tile, align), r)
    if r // t < 2 and r > align:
        t = min(t, _round_up((r + 1) // 2, align))
    return t


# ----------------------------------------------------------------------------
# Kernel 1: fused pair-build + m1 MLP (V batched) + frame-point reduction + mask
# ----------------------------------------------------------------------------
def _make_point_kernel(n_rest, use_bf16):
    cdt = jnp.bfloat16 if use_bf16 else jnp.float32

    def kernel(x_ref, w1a_ref, fpc_ref, *rest):
        wb_refs = rest[: 2 * n_rest]
        wl1_ref = rest[2 * n_rest]
        o_ref = rest[2 * n_rest + 1]

        x = x_ref[...]                                  # (tm, 4): [gx, gy, gz, valid]
        vmask = x[:, 3:4]                               # (tm, 1)
        w1a = w1a_ref[...]                              # (3, h1), f32

        # K=3 matmul done as 3 VPU broadcast-FMAs (keeps the MXU slot free).
        base = (x[:, 0:1] * w1a[0:1, :]
                + x[:, 1:2] * w1a[1:2, :]
                + x[:, 2:3] * w1a[2:3, :])              # (tm, h1)

        fpc = fpc_ref[...]                              # (V, h1), fp part + bias
        V, h1 = fpc.shape
        tm = base.shape[0]

        # First m1 layer for all V frame points at once, stacked on rows.
        a = jnp.maximum(base[None, :, :] + fpc[:, None, :], 0.0)   # (V, tm, h1)
        a = a.reshape(V * tm, h1)

        # Remaining m1 layers: ONE (V*tm, k) @ (k, m) MXU dot per layer.
        for l in range(n_rest):
            w = wb_refs[2 * l][...]
            b = wb_refs[2 * l + 1][...]
            a = jnp.maximum(
                jnp.dot(a.astype(cdt), w, preferred_element_type=jnp.float32) + b,
                0.0)

        mid = a.shape[-1]
        a = a.reshape(V, tm, mid)
        wl1 = wl1_ref[...]                              # (V, mid)
        acc = jnp.sum(a * wl1[:, None, :], axis=0)      # weighted sum over V
        o_ref[...] = (acc * vmask).astype(o_ref.dtype)  # zero masked neighbors

    return kernel


def fused_pair_m1_reduce(gxyz, validf, framepoints, m1_layers, wl1, *, use_bf16):
    """(M,3) rel-xyz, (M,1) valid mask, (V,3) framepoints -> (M, mid)."""
    M = gxyz.shape[0]
    V = framepoints.shape[0]
    mid = wl1.shape[1]
    cdt = jnp.bfloat16 if use_bf16 else jnp.float32

    w1, b1 = m1_layers[0]                               # (6, h1), (h1,)
    h1 = w1.shape[1]
    w1a = w1[:3, :].astype(jnp.float32)                 # gxyz part (VPU, f32)
    fpc = (framepoints @ w1[3:, :] + b1[None, :]).astype(jnp.float32)  # (V, h1)
    rest = m1_layers[1:]
    n_rest = len(rest)

    # bf16 output needs a 16-row sublane tile; f32 only needs 8.
    tm = _pick_tile(M, ROW_TILE_K1, 16 if use_bf16 else 8)
    Mp = _round_up(M, tm)
    x = jnp.concatenate([gxyz, validf], axis=1).astype(jnp.float32)    # (M, 4)
    x = jnp.pad(x, ((0, Mp - M), (0, 0)))

    in_specs = [
        pl.BlockSpec((tm, 4), lambda i: (i, 0)),
        pl.BlockSpec((3, h1), lambda i: (0, 0)),
        pl.BlockSpec((V, h1), lambda i: (0, 0)),
    ]
    args = [x, w1a, fpc]
    for (w, b) in rest:
        in_specs.append(pl.BlockSpec(w.shape, lambda i: (0, 0)))
        in_specs.append(pl.BlockSpec((1, b.shape[0]), lambda i: (0, 0)))
        args += [w.astype(cdt), b.reshape(1, -1).astype(jnp.float32)]
    in_specs.append(pl.BlockSpec((V, mid), lambda i: (0, 0)))
    args.append(wl1.astype(jnp.float32))

    out = pl.pallas_call(
        _make_point_kernel(n_rest, use_bf16),
        out_shape=jax.ShapeDtypeStruct((Mp, mid), cdt),
        grid=(Mp // tm,),
        in_specs=in_specs,
        out_specs=pl.BlockSpec((tm, mid), lambda i: (i, 0)),
        compiler_params=pltpu.CompilerParams(
            dimension_semantics=("parallel",), vmem_limit_bytes=VMEM_LIMIT),
    )(*args)
    return out[:M]


# ----------------------------------------------------------------------------
# Kernel 2 (fused 2+3): per-group grouped_f^T @ w  +  whole mr MLP chain
# ----------------------------------------------------------------------------
def _make_group_mr_kernel(cin, n_mr_rest, use_bf16):
    cdt = jnp.bfloat16 if use_bf16 else jnp.float32

    def kernel(gf_ref, wg_ref, w1_ref, b1_ref, *rest):
        mr_refs = rest[: 2 * n_mr_rest]
        o_ref = rest[2 * n_mr_rest]

        gf = gf_ref[...]                                # (g, n, cin) f32
        wg = wg_ref[...]                                # (g, n, mid)
        # In-VMEM transpose of the minor two dims (no host-side HBM transpose).
        gfT = jnp.swapaxes(gf, 1, 2).astype(cdt)        # (g, cin, n)
        fm = jnp.einsum('gci,gim->gcm', gfT, wg,
                        preferred_element_type=jnp.float32)   # (g, cin, mid) f32

        # mr layer 1 on the flattened (cin*mid) features, without an HBM round
        # trip or an in-kernel minor-dims reshape: accumulate per-cin-channel
        # matmuls against W1 pre-reshaped to (cin, mid, h1) in glue.
        w1 = w1_ref[...]                                # (cin, mid, h1)
        b1 = b1_ref[...]                                # (1, h1)
        y = jnp.zeros((fm.shape[0], w1.shape[-1]), jnp.float32)
        for c in range(cin):                            # static unroll, cin ~ 7
            y = y + jnp.dot(fm[:, c, :].astype(cdt), w1[c],
                            preferred_element_type=jnp.float32)
        y = jnp.maximum(y + b1, 0.0)

        # Remaining mr layers, weights VMEM-resident.
        for l in range(n_mr_rest):
            w = mr_refs[2 * l][...]
            b = mr_refs[2 * l + 1][...]
            y = jnp.maximum(
                jnp.dot(y.astype(cdt), w, preferred_element_type=jnp.float32) + b,
                0.0)
        o_ref[...] = y.astype(o_ref.dtype)

    return kernel


def fused_group_matmul_mr(gf, wg, mr_layers, *, use_bf16):
    """(BS, n, cin), (BS, n, mid) -> (BS, cout); grouped matmul + mr chain fused."""
    BS, n, cin = gf.shape
    mid = wg.shape[-1]
    cdt = jnp.bfloat16 if use_bf16 else jnp.float32

    w1, b1 = mr_layers[0]                               # (cin*mid, h1)
    h1 = w1.shape[1]
    w1r = w1.reshape(cin, mid, h1).astype(cdt)          # per-cin-channel blocks
    rest = mr_layers[1:]
    n_rest = len(rest)
    cout = mr_layers[-1][0].shape[1]

    g = _pick_tile(BS, GROUP_TILE, 8)
    BSp = _round_up(BS, g)
    gf_p = jnp.pad(gf.astype(jnp.float32), ((0, BSp - BS), (0, 0), (0, 0)))
    wg_p = jnp.pad(wg, ((0, BSp - BS), (0, 0), (0, 0)))

    in_specs = [
        pl.BlockSpec((g, n, cin), lambda i: (i, 0, 0)),
        pl.BlockSpec((g, n, mid), lambda i: (i, 0, 0)),
        pl.BlockSpec((cin, mid, h1), lambda i: (0, 0, 0)),
        pl.BlockSpec((1, h1), lambda i: (0, 0)),
    ]
    args = [gf_p, wg_p, w1r, b1.reshape(1, -1).astype(jnp.float32)]
    for (w, b) in rest:
        in_specs.append(pl.BlockSpec(w.shape, lambda i: (0, 0)))
        in_specs.append(pl.BlockSpec((1, b.shape[0]), lambda i: (0, 0)))
        args += [w.astype(cdt), b.reshape(1, -1).astype(jnp.float32)]

    out = pl.pallas_call(
        _make_group_mr_kernel(cin, n_rest, use_bf16),
        out_shape=jax.ShapeDtypeStruct((BSp, cout), jnp.float32),
        grid=(BSp // g,),
        in_specs=in_specs,
        out_specs=pl.BlockSpec((g, cout), lambda i: (i, 0)),
        compiler_params=pltpu.CompilerParams(
            dimension_semantics=("parallel",), vmem_limit_bytes=VMEM_LIMIT),
    )(*args)
    return out[:BS]


# ----------------------------------------------------------------------------
# Plain-JAX glue: PointNet++-style sampling / grouping (data dependent gathers)
# ----------------------------------------------------------------------------
def farthest_point_sample(xyz, S):
    B, N, _ = xyz.shape
    centroids = jnp.zeros((B, S), dtype=jnp.int32)
    distance = jnp.full((B, N), 1e10, dtype=jnp.float32)
    # TODO(synk): torch uses a random start index (randint); deterministic start here.
    farthest = jnp.zeros((B,), dtype=jnp.int32)

    def body(i, state):
        cen, dist, far = state
        cen = cen.at[:, i].set(far)
        centroid = xyz[jnp.arange(B), far][:, None, :]
        d = jnp.sum((xyz - centroid) ** 2, axis=-1)
        dist = jnp.minimum(dist, d)
        far = jnp.argmax(dist, axis=-1).astype(jnp.int32)
        return cen, dist, far

    centroids, _, _ = jax.lax.fori_loop(0, S, body, (centroids, distance, farthest))
    return centroids


def index_points(points, idx):
    B = points.shape[0]
    batch_idx = jnp.arange(B).reshape((B,) + (1,) * (idx.ndim - 1))
    return points[batch_idx, idx]


def square_distance(src, dst):
    return jnp.sum((src[:, :, None, :] - dst[:, None, :, :]) ** 2, axis=-1)


def query_ball_point_with_mask(radius, nsample, xyz, new_xyz):
    B, N, _ = xyz.shape
    S = new_xyz.shape[1]
    sqrdists = square_distance(new_xyz, xyz)                       # (B, S, N)
    group_idx = jnp.broadcast_to(jnp.arange(N, dtype=jnp.int32), (B, S, N))
    group_idx = jnp.where(sqrdists > radius ** 2, N, group_idx)
    group_idx = jnp.sort(group_idx, axis=-1)[:, :, :nsample]
    mask = group_idx == N
    group_first = jnp.broadcast_to(group_idx[:, :, :1], group_idx.shape)
    group_idx = jnp.where(mask, group_first, group_idx)
    return group_idx, mask


# ----------------------------------------------------------------------------
# Parameter initialization (deterministic; BatchNorm folded in eval mode)
# ----------------------------------------------------------------------------
def make_mlp_params(key, dims):
    # TODO(synk): BatchNorm1d modeled in eval mode (running stats folded into the
    # 1x1 conv); training-mode batch statistics are not reproduced.
    layers = []
    for i in range(len(dims) - 1):
        key, k1, k2, k3, k4, k5, k6 = jax.random.split(key, 7)
        c_in, c_out = dims[i], dims[i + 1]
        conv_w = jax.random.normal(k1, (c_out, c_in)) / jnp.sqrt(float(c_in))
        conv_b = 0.1 * jax.random.normal(k2, (c_out,))
        gamma = 1.0 + 0.1 * jax.random.normal(k3, (c_out,))
        beta = 0.1 * jax.random.normal(k4, (c_out,))
        rmean = 0.1 * jax.random.normal(k5, (c_out,))
        rvar = jax.random.uniform(k6, (c_out,), minval=0.5, maxval=1.5)
        scale = gamma / jnp.sqrt(rvar + 1e-5)
        w_eff = (conv_w * scale[:, None]).T                 # (c_in, c_out) for x @ W
        b_eff = scale * conv_b + beta - scale * rmean
        layers.append((w_eff.astype(jnp.float32), b_eff.astype(jnp.float32)))
    return layers


def init_params(key, *, cin, cout, mid, V, m1, m2, mr, radius):
    m1 = list(m1); m2 = list(m2); mr = list(mr)
    m1[0] = 6; m1[-1] = mid
    m2[0] = cin * cout; m2[-1] = mid
    mr[0] = cin * mid; mr[-1] = cout

    kfp, kang, kw, k1, k2, k3 = jax.random.split(key, 6)

    framepoints = jax.random.normal(kfp, (V, 3))
    framepoints = framepoints / jnp.linalg.norm(framepoints, axis=-1, keepdims=True)
    framepoints = framepoints * radius

    angle = jax.random.uniform(kang, ()) * 2.0 * jnp.pi     # stand-in for torch.rand
    c, s = jnp.cos(angle), jnp.sin(angle)
    rot = jnp.array([[c, 0.0, s], [0.0, 1.0, 0.0], [-s, 0.0, c]], dtype=jnp.float32)
    rotated_fp = (framepoints @ rot).astype(jnp.float32)

    return {
        "rotated_framepoints": rotated_fp,
        "w": jax.random.normal(kw, (V, cin, cout)).astype(jnp.float32),
        "m1": make_mlp_params(k1, m1),
        "m2": make_mlp_params(k2, m2),
        "mr": make_mlp_params(k3, mr),
    }


# ----------------------------------------------------------------------------
# FPAC forward
# ----------------------------------------------------------------------------
def fpac_forward(xyz, f, params, cfg):
    B, N, C = f.shape
    cin = C + 3
    cout, mid = cfg["cout"], cfg["mid"]
    S, n, radius = cfg["npoint"], cfg["nsample"], cfg["radius"]
    framepoints = params["rotated_framepoints"]
    V = framepoints.shape[0]
    use_bf16 = _use_bf16_mxu()
    cdt = jnp.bfloat16 if use_bf16 else jnp.float32

    # --- sampling & grouping (glue) ---
    fps_idx = farthest_point_sample(xyz, S)
    new_xyz = index_points(xyz, fps_idx)                               # (B, S, 3)
    grouped_idx, mask = query_ball_point_with_mask(radius, n, xyz, new_xyz)
    grouped_f = index_points(f, grouped_idx)                           # (B, S, n, C)
    grouped_xyz = index_points(xyz, grouped_idx) - new_xyz[:, :, None, :]
    grouped_f = jnp.concatenate([grouped_xyz, grouped_f], axis=-1)     # (B, S, n, cin)

    # --- m2 MLP on the V frame-point rows: tiny, plain JAX ---
    wl1 = params["w"].reshape(V, cin * cout).astype(jnp.float32)
    for w_eff, b_eff in params["m2"]:
        wl1 = jnp.maximum(wl1 @ w_eff + b_eff[None, :], 0.0)           # (V, mid)

    # --- fused pair-build + m1 MLP (V batched) + reduction + masking (Pallas) ---
    # NOTE: the reference also pushes the V framepoint self-pairs through m1 and
    # then discards that slice (wl2); it never affects the output, so it is skipped.
    M = B * S * n
    gxyz = grouped_xyz.reshape(M, 3).astype(jnp.float32)
    validf = jnp.logical_not(mask).astype(jnp.float32).reshape(M, 1)
    wmat = fused_pair_m1_reduce(gxyz, validf, framepoints, params["m1"], wl1,
                                use_bf16=use_bf16)                     # (M, mid)

    # --- fused per-group matmul + mr MLP chain (Pallas) ---
    # The reference's grouped_f[mask] = 0 write is redundant: masked slots of
    # grouped_f are finite duplicates of the first valid neighbor and the
    # corresponding wmat rows are already zero, so the contraction is unchanged.
    gf = grouped_f.reshape(B * S, n, cin)                              # (BS, n, cin)
    wg = wmat.reshape(B * S, n, mid)                                   # (BS, n, mid)
    fr = fused_group_matmul_mr(gf, wg, params["mr"], use_bf16=use_bf16)  # (BS, cout)

    # The reference ends with a raw `.view(B, S, cout)` on the (B, cout, S)-contiguous
    # conv output. fr is (B, S, cout)-ordered; transpose builds the (B, cout, S)
    # logical tensor and the final row-major reshape reproduces the same raw
    # reinterpretation element-for-element (for S == cout it is a plain transpose).
    out = fr.reshape(B, S, cout).transpose(0, 2, 1).reshape(B, S, cout)
    return out, new_xyz


# ----------------------------------------------------------------------------
if __name__ == "__main__":
    key = jax.random.PRNGKey(0)
    k_data, k_param = jax.random.split(key)
    kx, kf = jax.random.split(k_data)

    B, N, C = 2, 16, 4          # batch, points, input feature channels
    npoint, nsample = 8, 8      # S, n
    radius = 0.35
    cout, mid, V = 8, 16, 12    # output channels, mid width, #frame points
    cin = C + 3

    cfg = dict(npoint=npoint, nsample=nsample, radius=radius, cout=cout, mid=mid)
    # m1/m2/mr channel lists; first/last entries are overwritten as in the module.
    m1 = [0, 16, 0]
    m2 = [0, 32, 0]
    mr = [0, 64, 0]

    params = init_params(k_param, cin=cin, cout=cout, mid=mid, V=V,
                         m1=m1, m2=m2, mr=mr, radius=radius)

    xyz = jax.random.uniform(kx, (B, N, 3), dtype=jnp.float32)
    feats = jax.random.normal(kf, (B, N, C), dtype=jnp.float32)

    fwd = jax.jit(functools.partial(fpac_forward, params=params, cfg=cfg))
    out, new_xyz = fwd(xyz, feats)
    jax.block_until_ready(out)
    jax.block_until_ready(new_xyz)

    assert out.shape == (B, npoint, cout)
    assert new_xyz.shape == (B, npoint, 3)
    print("KERNEL_OK")
</pallas_src>

<mosaic_0001>
module attributes {stable_mosaic.version = 11 : i64} {
  func.func @kernel(%arg0: i32, %arg1: memref<64x4xf32, #tpu.memory_space<vmem>>, %arg2: memref<3x16xf32, #tpu.memory_space<vmem>>, %arg3: memref<12x16xf32, #tpu.memory_space<vmem>>, %arg4: memref<16x16xf32, #tpu.memory_space<vmem>>, %arg5: memref<1x16xf32, #tpu.memory_space<vmem>>, %arg6: memref<12x16xf32, #tpu.memory_space<vmem>>, %arg7: memref<64x16xf32, #tpu.memory_space<vmem>>) attributes {dimension_semantics = [#tpu.dimension_semantics<parallel>], iteration_bounds = array<i64: 2>, scalar_prefetch = 0 : i64, scratch_operands = 0 : i64, tpu.core_type = #tpu.core_type<tc>, window_params = [{transform_indices = @transform_0, window_bounds = array<i64: 64, 4>}, {pipeline_mode = #tpu.pipeline_mode<synchronous>, transform_indices = @transform_1, window_bounds = array<i64: 3, 16>}, {pipeline_mode = #tpu.pipeline_mode<synchronous>, transform_indices = @transform_2, window_bounds = array<i64: 12, 16>}, {pipeline_mode = #tpu.pipeline_mode<synchronous>, transform_indices = @transform_3, window_bounds = array<i64: 16, 16>}, {pipeline_mode = #tpu.pipeline_mode<synchronous>, transform_indices = @transform_4, window_bounds = array<i64: 1, 16>}, {pipeline_mode = #tpu.pipeline_mode<synchronous>, transform_indices = @transform_5, window_bounds = array<i64: 12, 16>}, {transform_indices = @transform_6, window_bounds = array<i64: 64, 16>}]} {
    %c0 = arith.constant 0 : index
    %c0_0 = arith.constant 0 : index
    %0 = vector.load %arg1[%c0, %c0_0] : memref<64x4xf32, #tpu.memory_space<vmem>>, vector<64x4xf32>
    %1 = vector.extract_strided_slice %0 {offsets = [0, 3], sizes = [64, 1], strides = [1, 1]} : vector<64x4xf32> to vector<64x1xf32>
    %c0_1 = arith.constant 0 : index
    %c0_2 = arith.constant 0 : index
    %2 = vector.load %arg2[%c0_1, %c0_2] : memref<3x16xf32, #tpu.memory_space<vmem>>, vector<3x16xf32>
    %3 = vector.extract_strided_slice %0 {offsets = [0, 0], sizes = [64, 1], strides = [1, 1]} : vector<64x4xf32> to vector<64x1xf32>
    %4 = vector.extract_strided_slice %2 {offsets = [0, 0], sizes = [1, 16], strides = [1, 1]} : vector<3x16xf32> to vector<1x16xf32>
    %5 = vector.broadcast %3 : vector<64x1xf32> to vector<64x16xf32>
    %6 = vector.broadcast %4 : vector<1x16xf32> to vector<64x16xf32>
    %7 = arith.mulf %5, %6 : vector<64x16xf32>
    %8 = vector.extract_strided_slice %0 {offsets = [0, 1], sizes = [64, 1], strides = [1, 1]} : vector<64x4xf32> to vector<64x1xf32>
    %9 = vector.extract_strided_slice %2 {offsets = [1, 0], sizes = [1, 16], strides = [1, 1]} : vector<3x16xf32> to vector<1x16xf32>
    %10 = vector.broadcast %8 : vector<64x1xf32> to vector<64x16xf32>
    %11 = vector.broadcast %9 : vector<1x16xf32> to vector<64x16xf32>
    %12 = arith.mulf %10, %11 : vector<64x16xf32>
    %13 = arith.addf %7, %12 : vector<64x16xf32>
    %14 = vector.extract_strided_slice %0 {offsets = [0, 2], sizes = [64, 1], strides = [1, 1]} : vector<64x4xf32> to vector<64x1xf32>
    %15 = vector.extract_strided_slice %2 {offsets = [2, 0], sizes = [1, 16], strides = [1, 1]} : vector<3x16xf32> to vector<1x16xf32>
    %16 = vector.broadcast %14 : vector<64x1xf32> to vector<64x16xf32>
    %17 = vector.broadcast %15 : vector<1x16xf32> to vector<64x16xf32>
    %18 = arith.mulf %16, %17 : vector<64x16xf32>
    %19 = arith.addf %13, %18 : vector<64x16xf32>
    %c0_3 = arith.constant 0 : index
    %c0_4 = arith.constant 0 : index
    %20 = vector.load %arg3[%c0_3, %c0_4] : memref<12x16xf32, #tpu.memory_space<vmem>>, vector<12x16xf32>
    %21 = vector.shape_cast %19 : vector<64x16xf32> to vector<1x64x16xf32>
    %22 = vector.shape_cast %20 : vector<12x16xf32> to vector<12x1x16xf32>
    %23 = vector.broadcast %21 : vector<1x64x16xf32> to vector<12x64x16xf32>
    %24 = vector.broadcast %22 : vector<12x1x16xf32> to vector<12x64x16xf32>
    %25 = arith.addf %23, %24 : vector<12x64x16xf32>
    %cst = arith.constant 0.000000e+00 : f32
    %26 = vector.broadcast %cst : f32 to vector<12x64x16xf32>
    %27 = arith.maximumf %25, %26 : vector<12x64x16xf32>
    %28 = vector.shape_cast %27 : vector<12x64x16xf32> to vector<768x16xf32>
    %c0_5 = arith.constant 0 : index
    %c0_6 = arith.constant 0 : index
    %29 = vector.load %arg4[%c0_5, %c0_6] : memref<16x16xf32, #tpu.memory_space<vmem>>, vector<16x16xf32>
    %c0_7 = arith.constant 0 : index
    %c0_8 = arith.constant 0 : index
    %30 = vector.load %arg5[%c0_7, %c0_8] : memref<1x16xf32, #tpu.memory_space<vmem>>, vector<1x16xf32>
    %cst_9 = arith.constant dense<0.000000e+00> : vector<768x16xf32>
    %31 = tpu.matmul %28, %29, %cst_9 {dimension_numbers = #tpu.dot_dimension_numbers<[1], [0], [0], [1], [0, 0, 1, 1], [], []>} : vector<768x16xf32>, vector<16x16xf32>, vector<768x16xf32> -> vector<768x16xf32>
    %32 = vector.broadcast %30 : vector<1x16xf32> to vector<768x16xf32>
    %33 = arith.addf %31, %32 : vector<768x16xf32>
    %cst_10 = arith.constant 0.000000e+00 : f32
    %34 = vector.broadcast %cst_10 : f32 to vector<768x16xf32>
    %35 = arith.maximumf %33, %34 : vector<768x16xf32>
    %36 = vector.shape_cast %35 : vector<768x16xf32> to vector<12x64x16xf32>
    %c0_11 = arith.constant 0 : index
    %c0_12 = arith.constant 0 : index
    %37 = vector.load %arg6[%c0_11, %c0_12] : memref<12x16xf32, #tpu.memory_space<vmem>>, vector<12x16xf32>
    %38 = vector.shape_cast %37 : vector<12x16xf32> to vector<12x1x16xf32>
    %39 = vector.broadcast %38 : vector<12x1x16xf32> to vector<12x64x16xf32>
    %40 = arith.mulf %36, %39 : vector<12x64x16xf32>
    %cst_13 = arith.constant dense<0.000000e+00> : vector<64x16xf32>
    %41 = vector.multi_reduction <add>, %40, %cst_13 [0] : vector<12x64x16xf32> to vector<64x16xf32>
    %42 = vector.broadcast %1 : vector<64x1xf32> to vector<64x16xf32>
    %43 = arith.mulf %41, %42 : vector<64x16xf32>
    %c0_14 = arith.constant 0 : index
    %c0_15 = arith.constant 0 : index
    %44 = vector.load %arg7[%c0_14, %c0_15] : memref<64x16xf32, #tpu.memory_space<vmem>>, vector<64x16xf32>
    tpu.vector_store %arg7[%c0_14, %c0_15], %43 {strides = array<i32>} : memref<64x16xf32, #tpu.memory_space<vmem>>, vector<64x16xf32>,
    return
  }
  func.func @transform_0(%arg0: i32) -> (i32, i32) {
    %c0_i32 = arith.constant 0 : i32
    %c0_i32_0 = arith.constant 0 : i32
    return %arg0, %c0_i32 : i32, i32
  }
  func.func @transform_1(%arg0: i32) -> (i32, i32) {
    %c0_i32 = arith.constant 0 : i32
    %c0_i32_0 = arith.constant 0 : i32
    %c0_i32_1 = arith.constant 0 : i32
    return %c0_i32, %c0_i32_0 : i32, i32
  }
  func.func @transform_2(%arg0: i32) -> (i32, i32) {
    %c0_i32 = arith.constant 0 : i32
    %c0_i32_0 = arith.constant 0 : i32
    %c0_i32_1 = arith.constant 0 : i32
    return %c0_i32, %c0_i32_0 : i32, i32
  }
  func.func @transform_3(%arg0: i32) -> (i32, i32) {
    %c0_i32 = arith.constant 0 : i32
    %c0_i32_0 = arith.constant 0 : i32
    %c0_i32_1 = arith.constant 0 : i32
    return %c0_i32, %c0_i32_0 : i32, i32
  }
  func.func @transform_4(%arg0: i32) -> (i32, i32) {
    %c0_i32 = arith.constant 0 : i32
    %c0_i32_0 = arith.constant 0 : i32
    %c0_i32_1 = arith.constant 0 : i32
    return %c0_i32, %c0_i32_0 : i32, i32
  }
  func.func @transform_5(%arg0: i32) -> (i32, i32) {
    %c0_i32 = arith.constant 0 : i32
    %c0_i32_0 = arith.constant 0 : i32
    %c0_i32_1 = arith.constant 0 : i32
    return %c0_i32, %c0_i32_0 : i32, i32
  }
  func.func @transform_6(%arg0: i32) -> (i32, i32) {
    %c0_i32 = arith.constant 0 : i32
    %c0_i32_0 = arith.constant 0 : i32
    return %arg0, %c0_i32 : i32, i32
  }
}

module attributes {stable_mosaic.version = 11 : i64} {
  func.func @kernel(%arg0: i32, %arg1: memref<8x8x7xf32, #tpu.memory_space<vmem>>, %arg2: memref<8x8x16xf32, #tpu.memory_space<vmem>>, %arg3: memref<7x16x64xf32, #tpu.memory_space<vmem>>, %arg4: memref<1x64xf32, #tpu.memory_space<vmem>>, %arg5: memref<64x8xf32, #tpu.memory_space<vmem>>, %arg6: memref<1x8xf32, #tpu.memory_space<vmem>>, %arg7: memref<8x8xf32, #tpu.memory_space<vmem>>) attributes {dimension_semantics = [#tpu.dimension_semantics<parallel>], iteration_bounds = array<i64: 2>, scalar_prefetch = 0 : i64, scratch_operands = 0 : i64, tpu.core_type = #tpu.core_type<tc>, window_params = [{transform_indices = @transform_0, window_bounds = array<i64: 8, 8, 7>}, {transform_indices = @transform_1, window_bounds = array<i64: 8, 8, 16>}, {pipeline_mode = #tpu.pipeline_mode<synchronous>, transform_indices = @transform_2, window_bounds = array<i64: 7, 16, 64>}, {pipeline_mode = #tpu.pipeline_mode<synchronous>, transform_indices = @transform_3, window_bounds = array<i64: 1, 64>}, {pipeline_mode = #tpu.pipeline_mode<synchronous>, transform_indices = @transform_4, window_bounds = array<i64: 64, 8>}, {pipeline_mode = #tpu.pipeline_mode<synchronous>, transform_indices = @transform_5, window_bounds = array<i64: 1, 8>}, {transform_indices = @transform_6, window_bounds = array<i64: 8, 8>}]} {
    %c0 = arith.constant 0 : index
    %c0_0 = arith.constant 0 : index
    %c0_1 = arith.constant 0 : index
    %0 = vector.load %arg1[%c0, %c0_0, %c0_1] : memref<8x8x7xf32, #tpu.memory_space<vmem>>, vector<8x8x7xf32>
    %c0_2 = arith.constant 0 : index
    %c0_3 = arith.constant 0 : index
    %c0_4 = arith.constant 0 : index
    %1 = vector.load %arg2[%c0_2, %c0_3, %c0_4] : memref<8x8x16xf32, #tpu.memory_space<vmem>>, vector<8x8x16xf32>
    %2 = tpu.transpose %0, [0, 2, 1] : vector<8x8x7xf32> -> vector<8x7x8xf32>
    "tpu.trace_start"() <{level = 10 : i32, message = "gci,gim->gcm"}> : () -> ()
    %cst = arith.constant dense<0.000000e+00> : vector<8x7x16xf32>
    %3 = tpu.matmul %2, %1, %cst {dimension_numbers = #tpu.dot_dimension_numbers<[2], [1], [1], [2], [0, 0, 0, 1, 1, 2], [0], [0]>} : vector<8x7x8xf32>, vector<8x8x16xf32>, vector<8x7x16xf32> -> vector<8x7x16xf32>
    "tpu.trace_stop"() : () -> ()
    %c0_5 = arith.constant 0 : index
    %c0_6 = arith.constant 0 : index
    %c0_7 = arith.constant 0 : index
    %4 = vector.load %arg3[%c0_5, %c0_6, %c0_7] : memref<7x16x64xf32, #tpu.memory_space<vmem>>, vector<7x16x64xf32>
    %c0_8 = arith.constant 0 : index
    %c0_9 = arith.constant 0 : index
    %5 = vector.load %arg4[%c0_8, %c0_9] : memref<1x64xf32, #tpu.memory_space<vmem>>, vector<1x64xf32>
    %cst_10 = arith.constant 0.000000e+00 : f32
    %6 = vector.broadcast %cst_10 : f32 to vector<8x64xf32>
    %7 = vector.extract_strided_slice %3 {offsets = [0, 0, 0], sizes = [8, 1, 16], strides = [1, 1, 1]} : vector<8x7x16xf32> to vector<8x1x16xf32>
    %8 = vector.shape_cast %7 : vector<8x1x16xf32> to vector<8x16xf32>
    %9 = vector.extract_strided_slice %4 {offsets = [0, 0, 0], sizes = [1, 16, 64], strides = [1, 1, 1]} : vector<7x16x64xf32> to vector<1x16x64xf32>
    %10 = vector.shape_cast %9 : vector<1x16x64xf32> to vector<16x64xf32>
    %cst_11 = arith.constant dense<0.000000e+00> : vector<8x64xf32>
    %11 = tpu.matmul %8, %10, %cst_11 {dimension_numbers = #tpu.dot_dimension_numbers<[1], [0], [0], [1], [0, 0, 1, 1], [], []>} : vector<8x16xf32>, vector<16x64xf32>, vector<8x64xf32> -> vector<8x64xf32>
    %12 = arith.addf %6, %11 : vector<8x64xf32>
    %13 = vector.extract_strided_slice %3 {offsets = [0, 1, 0], sizes = [8, 1, 16], strides = [1, 1, 1]} : vector<8x7x16xf32> to vector<8x1x16xf32>
    %14 = vector.shape_cast %13 : vector<8x1x16xf32> to vector<8x16xf32>
    %15 = vector.extract_strided_slice %4 {offsets = [1, 0, 0], sizes = [1, 16, 64], strides = [1, 1, 1]} : vector<7x16x64xf32> to vector<1x16x64xf32>
    %16 = vector.shape_cast %15 : vector<1x16x64xf32> to vector<16x64xf32>
    %cst_12 = arith.constant dense<0.000000e+00> : vector<8x64xf32>
    %17 = tpu.matmul %14, %16, %cst_12 {dimension_numbers = #tpu.dot_dimension_numbers<[1], [0], [0], [1], [0, 0, 1, 1], [], []>} : vector<8x16xf32>, vector<16x64xf32>, vector<8x64xf32> -> vector<8x64xf32>
    %18 = arith.addf %12, %17 : vector<8x64xf32>
    %19 = vector.extract_strided_slice %3 {offsets = [0, 2, 0], sizes = [8, 1, 16], strides = [1, 1, 1]} : vector<8x7x16xf32> to vector<8x1x16xf32>
    %20 = vector.shape_cast %19 : vector<8x1x16xf32> to vector<8x16xf32>
    %21 = vector.extract_strided_slice %4 {offsets = [2, 0, 0], sizes = [1, 16, 64], strides = [1, 1, 1]} : vector<7x16x64xf32> to vector<1x16x64xf32>
    %22 = vector.shape_cast %21 : vector<1x16x64xf32> to vector<16x64xf32>
    %cst_13 = arith.constant dense<0.000000e+00> : vector<8x64xf32>
    %23 = tpu.matmul %20, %22, %cst_13 {dimension_numbers = #tpu.dot_dimension_numbers<[1], [0], [0], [1], [0, 0, 1, 1], [], []>} : vector<8x16xf32>, vector<16x64xf32>, vector<8x64xf32> -> vector<8x64xf32>
    %24 = arith.addf %18, %23 : vector<8x64xf32>
    %25 = vector.extract_strided_slice %3 {offsets = [0, 3, 0], sizes = [8, 1, 16], strides = [1, 1, 1]} : vector<8x7x16xf32> to vector<8x1x16xf32>
    %26 = vector.shape_cast %25 : vector<8x1x16xf32> to vector<8x16xf32>
    %27 = vector.extract_strided_slice %4 {offsets = [3, 0, 0], sizes = [1, 16, 64], strides = [1, 1, 1]} : vector<7x16x64xf32> to vector<1x16x64xf32>
    %28 = vector.shape_cast %27 : vector<1x16x64xf32> to vector<16x64xf32>
    %cst_14 = arith.constant dense<0.000000e+00> : vector<8x64xf32>
    %29 = tpu.matmul %26, %28, %cst_14 {dimension_numbers = #tpu.dot_dimension_numbers<[1], [0], [0], [1], [0, 0, 1, 1], [], []>} : vector<8x16xf32>, vector<16x64xf32>, vector<8x64xf32> -> vector<8x64xf32>
    %30 = arith.addf %24, %29 : vector<8x64xf32>
    %31 = vector.extract_strided_slice %3 {offsets = [0, 4, 0], sizes = [8, 1, 16], strides = [1, 1, 1]} : vector<8x7x16xf32> to vector<8x1x16xf32>
    %32 = vector.shape_cast %31 : vector<8x1x16xf32> to vector<8x16xf32>
    %33 = vector.extract_strided_slice %4 {offsets = [4, 0, 0], sizes = [1, 16, 64], strides = [1, 1, 1]} : vector<7x16x64xf32> to vector<1x16x64xf32>
    %34 = vector.shape_cast %33 : vector<1x16x64xf32> to vector<16x64xf32>
    %cst_15 = arith.constant dense<0.000000e+00> : vector<8x64xf32>
    %35 = tpu.matmul %32, %34, %cst_15 {dimension_numbers = #tpu.dot_dimension_numbers<[1], [0], [0], [1], [0, 0, 1, 1], [], []>} : vector<8x16xf32>, vector<16x64xf32>, vector<8x64xf32> -> vector<8x64xf32>
    %36 = arith.addf %30, %35 : vector<8x64xf32>
    %37 = vector.extract_strided_slice %3 {offsets = [0, 5, 0], sizes = [8, 1, 16], strides = [1, 1, 1]} : vector<8x7x16xf32> to vector<8x1x16xf32>
    %38 = vector.shape_cast %37 : vector<8x1x16xf32> to vector<8x16xf32>
    %39 = vector.extract_strided_slice %4 {offsets = [5, 0, 0], sizes = [1, 16, 64], strides = [1, 1, 1]} : vector<7x16x64xf32> to vector<1x16x64xf32>
    %40 = vector.shape_cast %39 : vector<1x16x64xf32> to vector<16x64xf32>
    %cst_16 = arith.constant dense<0.000000e+00> : vector<8x64xf32>
    %41 = tpu.matmul %38, %40, %cst_16 {dimension_numbers = #tpu.dot_dimension_numbers<[1], [0], [0], [1], [0, 0, 1, 1], [], []>} : vector<8x16xf32>, vector<16x64xf32>, vector<8x64xf32> -> vector<8x64xf32>
    %42 = arith.addf %36, %41 : vector<8x64xf32>
    %43 = vector.extract_strided_slice %3 {offsets = [0, 6, 0], sizes = [8, 1, 16], strides = [1, 1, 1]} : vector<8x7x16xf32> to vector<8x1x16xf32>
    %44 = vector.shape_cast %43 : vector<8x1x16xf32> to vector<8x16xf32>
    %45 = vector.extract_strided_slice %4 {offsets = [6, 0, 0], sizes = [1, 16, 64], strides = [1, 1, 1]} : vector<7x16x64xf32> to vector<1x16x64xf32>
    %46 = vector.shape_cast %45 : vector<1x16x64xf32> to vector<16x64xf32>
    %cst_17 = arith.constant dense<0.000000e+00> : vector<8x64xf32>
    %47 = tpu.matmul %44, %46, %cst_17 {dimension_numbers = #tpu.dot_dimension_numbers<[1], [0], [0], [1], [0, 0, 1, 1], [], []>} : vector<8x16xf32>, vector<16x64xf32>, vector<8x64xf32> -> vector<8x64xf32>
    %48 = arith.addf %42, %47 : vector<8x64xf32>
    %49 = vector.broadcast %5 : vector<1x64xf32> to vector<8x64xf32>
    %50 = arith.addf %48, %49 : vector<8x64xf32>
    %cst_18 = arith.constant 0.000000e+00 : f32
    %51 = vector.broadcast %cst_18 : f32 to vector<8x64xf32>
    %52 = arith.maximumf %50, %51 : vector<8x64xf32>
    %c0_19 = arith.constant 0 : index
    %c0_20 = arith.constant 0 : index
    %53 = vector.load %arg5[%c0_19, %c0_20] : memref<64x8xf32, #tpu.memory_space<vmem>>, vector<64x8xf32>
    %c0_21 = arith.constant 0 : index
    %c0_22 = arith.constant 0 : index
    %54 = vector.load %arg6[%c0_21, %c0_22] : memref<1x8xf32, #tpu.memory_space<vmem>>, vector<1x8xf32>
    %cst_23 = arith.constant dense<0.000000e+00> : vector<8x8xf32>
    %55 = tpu.matmul %52, %53, %cst_23 {dimension_numbers = #tpu.dot_dimension_numbers<[1], [0], [0], [1], [0, 0, 1, 1], [], []>} : vector<8x64xf32>, vector<64x8xf32>, vector<8x8xf32> -> vector<8x8xf32>
    %56 = vector.broadcast %54 : vector<1x8xf32> to vector<8x8xf32>
    %57 = arith.addf %55, %56 : vector<8x8xf32>
    %cst_24 = arith.constant 0.000000e+00 : f32
    %58 = vector.broadcast %cst_24 : f32 to vector<8x8xf32>
    %59 = arith.maximumf %57, %58 : vector<8x8xf32>
    %c0_25 = arith.constant 0 : index
    %c0_26 = arith.constant 0 : index
    %60 = vector.load %arg7[%c0_25, %c0_26] : memref<8x8xf32, #tpu.memory_space<vmem>>, vector<8x8xf32>
    tpu.vector_store %arg7[%c0_25, %c0_26], %59 {strides = array<i32>} : memref<8x8xf32, #tpu.memory_space<vmem>>, vector<8x8xf32>,
    return
  }
  func.func @transform_0(%arg0: i32) -> (i32, i32, i32) {
    %c0_i32 = arith.constant 0 : i32
    %c0_i32_0 = arith.constant 0 : i32
    %c0_i32_1 = arith.constant 0 : i32
    return %arg0, %c0_i32, %c0_i32_0 : i32, i32, i32
  }
  func.func @transform_1(%arg0: i32) -> (i32, i32, i32) {
    %c0_i32 = arith.constant 0 : i32
    %c0_i32_0 = arith.constant 0 : i32
    %c0_i32_1 = arith.constant 0 : i32
    return %arg0, %c0_i32, %c0_i32_0 : i32, i32, i32
  }
  func.func @transform_2(%arg0: i32) -> (i32, i32, i32) {
    %c0_i32 = arith.constant 0 : i32
    %c0_i32_0 = arith.constant 0 : i32
    %c0_i32_1 = arith.constant 0 : i32
    %c0_i32_2 = arith.constant 0 : i32
    return %c0_i32, %c0_i32_0, %c0_i32_1 : i32, i32, i32
  }
  func.func @transform_3(%arg0: i32) -> (i32, i32) {
    %c0_i32 = arith.constant 0 : i32
    %c0_i32_0 = arith.constant 0 : i32
    %c0_i32_1 = arith.constant 0 : i32
    return %c0_i32, %c0_i32_0 : i32, i32
  }
  func.func @transform_4(%arg0: i32) -> (i32, i32) {
    %c0_i32 = arith.constant 0 : i32
    %c0_i32_0 = arith.constant 0 : i32
    %c0_i32_1 = arith.constant 0 : i32
    return %c0_i32, %c0_i32_0 : i32, i32
  }
  func.func @transform_5(%arg0: i32) -> (i32, i32) {
    %c0_i32 = arith.constant 0 : i32
    %c0_i32_0 = arith.constant 0 : i32
    %c0_i32_1 = arith.constant 0 : i32
    return %c0_i32, %c0_i32_0 : i32, i32
  }
  func.func @transform_6(%arg0: i32) -> (i32, i32) {
    %c0_i32 = arith.constant 0 : i32
    %c0_i32_0 = arith.constant 0 : i32
    return %arg0, %c0_i32 : i32, i32
  }
}

</mosaic_0001>

<llo_original>
// kernel: custom-call.8
$region0: #{custom-call.8}
  %s0 = inlined_call_operand.vmem [shape: f32[2,16], index: 0, kind: output, shape index: {}]

// kernel: fpac_forward.2
$region0: #{fpac_forward.2}
  #allocation0 [shape = 'u32[]', space=smem, size = 0x4, offset = 0x4, fixed_abs, tag = 'smem constant byte address 0x4 - core index']
  #allocation1 [shape = 'u32[144,128]{1,0:T(1,128)}', space=vmem, size = 0x12000, scoped, tag = 'internal scratch']
  %s0 = inlined_call_operand.vmem [shape: f32[128,4], index: 0, kind: input, shape index: {}]
  %s1 = inlined_call_operand.vmem [shape: f32[3,16], index: 1, kind: input, shape index: {}]
  %s2 = inlined_call_operand.vmem [shape: f32[12,16], index: 2, kind: input, shape index: {}]
  %s3 = inlined_call_operand.vmem [shape: f32[16,16], index: 3, kind: input, shape index: {}]
  %s4 = inlined_call_operand.vmem [shape: f32[1,16], index: 4, kind: input, shape index: {}]
  %s5 = inlined_call_operand.vmem [shape: f32[12,16], index: 5, kind: input, shape index: {}]
  %s6 = inlined_call_operand.vmem [shape: f32[128,16], index: 6, kind: output, shape index: {}]
  %s7 = sld [smem:[#allocation0]]
  $region57: #{fpac_forward.2} parent=0
    _
  %s9 = ssub.s32 1, %s7
  %s10 = scalar_select 0, %s9, %s7
  loop: start=0, step=1, limit=4
  $region2: #{fpac_forward.2} parent=0 // loop_pre_header
    _
  $region3: #{fpac_forward.2} parent=0 // loop_header
    %s12 = sphi 0, %s16
    %p13 = scmp.ge.s32.totalorder %s12, 4
    %s22 = sphi 0, %s24
    %s25 = sphi 0, %s22
    %s26 = sphi 0, %s25
    %s42 = sphi 0, %s26
    %s46 = sphi 0, %s46
    %s48 = sphi 0, %s46
    %s49 = sphi 0, %s48
    %s63 = sphi 0, %s49
    %s67 = sphi 0, %s67
    %s69 = sphi 0, %s67
    %s70 = sphi 0, %s69
    %s84 = sphi 0, %s70
    %s88 = sphi 0, %s88
    %s90 = sphi 0, %s88
    %s91 = sphi 0, %s90
    %s105 = sphi 0, %s91
    %s109 = sphi 0, %s109
    %s111 = sphi 0, %s109
    %s112 = sphi 0, %s111
    %s126 = sphi 0, %s112
    %s130 = sphi 0, %s130
    %s132 = sphi 0, %s130
    %s133 = sphi 0, %s132
    %s147 = sphi 0, %s133
    %s153 = sphi 0, %s155
    %s156 = sphi 0, %s153
    %s157 = sphi 0, %s156
    %s173 = sphi 0, %s157
  $region4: #{fpac_forward.2} parent=0 // loop_header_branch
    %15 = sbr.rel (%p13) target = $region8
  $region5: #{fpac_forward.2} parent=0 // loop_body
    %s17 = ssub.s32 %s12, 1
    %s18 = ssub.s32 %s12, 2
    %s19 = sadd.s32 %s12, 1
    %s20 = ssub.s32 %s12, %s19
    %p21 = scmp.eq.s32.totalorder %s20, 0
    %s23 = sadd.s32 %s22, 1
    %s24 = scalar_select %p21, %s22, %s23
    %p27 = pneg %p21
    %p28 = scmp.eq.s32.totalorder %s12, 1
    %p29 = por %p27, %p28
    %p30 = scmp.ne.s32.totalorder %s22, %s25
    %p31 = scmp.eq.s32.totalorder %s12, 0
    %p32 = por %p30, %p31
    %p33 = scmp.ne.s32.totalorder %s22, %s25
    %p34 = scmp.eq.s32.totalorder %s17, 1
    %p35 = por %p33, %p34
    %p36 = scmp.ne.s32.totalorder %s25, %s26
    %p37 = scmp.eq.s32.totalorder %s17, 0
    %p38 = por %p36, %p37
    %p39 = scmp.ne.s32.totalorder %s25, %s26
    %p40 = scmp.eq.s32.totalorder %s18, 1
    %p41 = por %p39, %p40
    %p43 = scmp.ne.s32.totalorder %s26, %s42
    %p44 = scmp.eq.s32.totalorder %s18, 0
    %p45 = por %p43, %p44
    %s47 = sadd.s32 %s46, 1
    %p50 = scmp.eq.s32.totalorder %s12, 1
    %p51 = scmp.ne.s32.totalorder %s46, %s48
    %p52 = scmp.eq.s32.totalorder %s12, 0
    %p53 = por %p51, %p52
    %p54 = scmp.ne.s32.totalorder %s46, %s48
    %p55 = scmp.eq.s32.totalorder %s17, 1
    %p56 = por %p54, %p55
    %p57 = scmp.ne.s32.totalorder %s48, %s49
    %p58 = scmp.eq.s32.totalorder %s17, 0
    %p59 = por %p57, %p58
    %p60 = scmp.ne.s32.totalorder %s48, %s49
    %p61 = scmp.eq.s32.totalorder %s18, 1
    %p62 = por %p60, %p61
    %p64 = scmp.ne.s32.totalorder %s49, %s63
    %p65 = scmp.eq.s32.totalorder %s18, 0
    %p66 = por %p64, %p65
    %s68 = sadd.s32 %s67, 1
    %p71 = scmp.eq.s32.totalorder %s12, 1
    %p72 = scmp.ne.s32.totalorder %s67, %s69
    %p73 = scmp.eq.s32.totalorder %s12, 0
    %p74 = por %p72, %p73
    %p75 = scmp.ne.s32.totalorder %s67, %s69
    %p76 = scmp.eq.s32.totalorder %s17, 1
    %p77 = por %p75, %p76
    %p78 = scmp.ne.s32.totalorder %s69, %s70
    %p79 = scmp.eq.s32.totalorder %s17, 0
    %p80 = por %p78, %p79
    %p81 = scmp.ne.s32.totalorder %s69, %s70
    %p82 = scmp.eq.s32.totalorder %s18, 1
    %p83 = por %p81, %p82
    %p85 = scmp.ne.s32.totalorder %s70, %s84
    %p86 = scmp.eq.s32.totalorder %s18, 0
    %p87 = por %p85, %p86
    %s89 = sadd.s32 %s88, 1
    %p92 = scmp.eq.s32.totalorder %s12, 1
    %p93 = scmp.ne.s32.totalorder %s88, %s90
    %p94 = scmp.eq.s32.totalorder %s12, 0
    %p95 = por %p93, %p94
    %p96 = scmp.ne.s32.totalorder %s88, %s90
    %p97 = scmp.eq.s32.totalorder %s17, 1
    %p98 = por %p96, %p97
    %p99 = scmp.ne.s32.totalorder %s90, %s91
    %p100 = scmp.eq.s32.totalorder %s17, 0
    %p101 = por %p99, %p100
    %p102 = scmp.ne.s32.totalorder %s90, %s91
    %p103 = scmp.eq.s32.totalorder %s18, 1
    %p104 = por %p102, %p103
    %p106 = scmp.ne.s32.totalorder %s91, %s105
    %p107 = scmp.eq.s32.totalorder %s18, 0
    %p108 = por %p106, %p107
    %s110 = sadd.s32 %s109, 1
    %p113 = scmp.eq.s32.totalorder %s12, 1
    %p114 = scmp.ne.s32.totalorder %s109, %s111
    %p115 = scmp.eq.s32.totalorder %s12, 0
    %p116 = por %p114, %p115
    %p117 = scmp.ne.s32.totalorder %s109, %s111
    %p118 = scmp.eq.s32.totalorder %s17, 1
    %p119 = por %p117, %p118
    %p120 = scmp.ne.s32.totalorder %s111, %s112
    %p121 = scmp.eq.s32.totalorder %s17, 0
    %p122 = por %p120, %p121
    %p123 = scmp.ne.s32.totalorder %s111, %s112
    %p124 = scmp.eq.s32.totalorder %s18, 1
    %p125 = por %p123, %p124
    %p127 = scmp.ne.s32.totalorder %s112, %s126
    %p128 = scmp.eq.s32.totalorder %s18, 0
    %p129 = por %p127, %p128
    %s131 = sadd.s32 %s130, 1
    %p134 = scmp.eq.s32.totalorder %s12, 1
    %p135 = scmp.ne.s32.totalorder %s130, %s132
    %p136 = scmp.eq.s32.totalorder %s12, 0
    %p137 = por %p135, %p136
    %p138 = scmp.ne.s32.totalorder %s130, %s132
    %p139 = scmp.eq.s32.totalorder %s17, 1
    %p140 = por %p138, %p139
    %p141 = scmp.ne.s32.totalorder %s132, %s133
    %p142 = scmp.eq.s32.totalorder %s17, 0
    %p143 = por %p141, %p142
    %p144 = scmp.ne.s32.totalorder %s132, %s133
    %p145 = scmp.eq.s32.totalorder %s18, 1
    %p146 = por %p144, %p145
    %p148 = scmp.ne.s32.totalorder %s133, %s147
    %p149 = scmp.eq.s32.totalorder %s18, 0
    %p150 = por %p148, %p149
    %s151 = ssub.s32 %s12, %s19
    %p152 = scmp.eq.s32.totalorder %s151, 0
    %s154 = sadd.s32 %s153, 1
    %s155 = scalar_select %p152, %s153, %s154
    %p158 = pneg %p152
    %p159 = scmp.eq.s32.totalorder %s12, 1
    %p160 = por %p158, %p159
    %p161 = scmp.ne.s32.totalorder %s153, %s156
    %p162 = scmp.eq.s32.totalorder %s12, 0
    %p163 = por %p161, %p162
    %p164 = scmp.ne.s32.totalorder %s153, %s156
    %p165 = scmp.eq.s32.totalorder %s17, 1
    %p166 = por %p164, %p165
    %p167 = scmp.ne.s32.totalorder %s156, %s157
    %p168 = scmp.eq.s32.totalorder %s17, 0
    %p169 = por %p167, %p168
    %p170 = scmp.ne.s32.totalorder %s156, %s157
    %p171 = scmp.eq.s32.totalorder %s18, 1
    %p172 = por %p170, %p171
    %p174 = scmp.ne.s32.totalorder %s157, %s173
    %p175 = scmp.eq.s32.totalorder %s18, 0
    %p176 = por %p174, %p175
    %p177 = scmp.le.s32.totalorder 1, %s12
    %p178 = scmp.lt.s32.totalorder %s12, 3
    %p179 = pnand %p177, %p178
    %p180 = pneg %p179
    // Predicated region
    $region9: #{fpac_forward.2} parent=5 // pred_check
      _
    $region10: #{fpac_forward.2} parent=5 // pred_check_branch
      %182 = sbr.rel (%p179) target = $region12
    $region11: #{fpac_forward.2} parent=5 // pred_region
      %s183 = ssub.s32 %s12, 1
      // Predicated region
      $region13: #{fpac_forward.2} parent=11 // pred_check
        %p184 = pneg %p59
      $region14: #{fpac_forward.2} parent=11 // pred_check_branch
        %186 = sbr.rel (%p184) target = $region16
      $region15: #{fpac_forward.2} parent=11 // pred_region
        _
      $region16: #{fpac_forward.2} parent=11 // pred_fallthru
        _
      // Predicated region
      $region17: #{fpac_forward.2} parent=11 // pred_check
        %p187 = pneg %p80
      $region18: #{fpac_forward.2} parent=11 // pred_check_branch
        %189 = sbr.rel (%p187) target = $region20
      $region19: #{fpac_forward.2} parent=11 // pred_region
        _
      $region20: #{fpac_forward.2} parent=11 // pred_fallthru
        _
      // Predicated region
      $region21: #{fpac_forward.2} parent=11 // pred_check
        %p190 = pneg %p101
      $region22: #{fpac_forward.2} parent=11 // pred_check_branch
        %192 = sbr.rel (%p190) target = $region24
      $region23: #{fpac_forward.2} parent=11 // pred_region
        _
      $region24: #{fpac_forward.2} parent=11 // pred_fallthru
        _
      // Predicated region
      $region25: #{fpac_forward.2} parent=11 // pred_check
        %p193 = pneg %p122
      $region26: #{fpac_forward.2} parent=11 // pred_check_branch
        %195 = sbr.rel (%p193) target = $region28
      $region27: #{fpac_forward.2} parent=11 // pred_region
        _
      $region28: #{fpac_forward.2} parent=11 // pred_fallthru
        _
      // Predicated region
      $region29: #{fpac_forward.2} parent=11 // pred_check
        %p196 = pneg %p143
      $region30: #{fpac_forward.2} parent=11 // pred_check_branch
        %198 = sbr.rel (%p196) target = $region32
      $region31: #{fpac_forward.2} parent=11 // pred_region
        _
      $region32: #{fpac_forward.2} parent=11 // pred_fallthru
        _
    $region12: #{fpac_forward.2} parent=5 // pred_fallthru
      _
    %p199 = scmp.lt.s32.totalorder %s12, 2
    // Predicated region
    $region33: #{fpac_forward.2} parent=5 // pred_check
      %p200 = pneg %p199
    $region34: #{fpac_forward.2} parent=5 // pred_check_branch
      %202 = sbr.rel (%p200) target = $region36
    $region35: #{fpac_forward.2} parent=5 // pred_region
      // Predicated region
      $region37: #{fpac_forward.2} parent=35 // pred_check
        %p203 = pneg %p32
      $region38: #{fpac_forward.2} parent=35 // pred_check_branch
        %205 = sbr.rel (%p203) target = $region40
      $region39: #{fpac_forward.2} parent=35 // pred_region
        %s206 = smul.u32 8, %s12
        %p207 = scmp.lt.s32.totalorder %s206, 15
        %s208 = scalar_select %p207, %s206, 15
        %s209 = smul.addr %s208, 8
        %s210 = scalar_lea.vmem %s0, %s209
        %s211 = smul.u32 8, %s12
      $region40: #{fpac_forward.2} parent=35 // pred_fallthru
        _
    $region36: #{fpac_forward.2} parent=5 // pred_fallthru
      _
    %p212 = scmp.le.s32.totalorder 1, %s12
    %p213 = scmp.lt.s32.totalorder %s12, 3
    %p214 = pnand %p212, %p213
    %p215 = pneg %p214
    // Predicated region
    $region41: #{fpac_forward.2} parent=5 // pred_check
      _
    $region42: #{fpac_forward.2} parent=5 // pred_check_branch
      %217 = sbr.rel (%p214) target = $region44
    $region43: #{fpac_forward.2} parent=5 // pred_region
      %s218 = ssub.s32 %s12, 1
      %s219 = smul.u32 8, %s17
      %p220 = scmp.lt.s32.totalorder %s219, 15
      %s221 = scalar_select %p220, %s219, 15
      %s222 = smul.addr %s221, 8
      %s223 = scalar_lea.vmem %s0, %s222
      %p224 = pneg %p38
      %p225 = pneg %p35
      %p226 = pneg %p59
      %p227 = pneg %p56
      %p228 = pneg %p80
      %p229 = pneg %p77
      %p230 = pneg %p101
      %p231 = pneg %p98
      %p232 = pneg %p122
      %p233 = pneg %p119
      %p234 = pneg %p143
      %p235 = pneg %p140
      %p236 = pneg %p169
      %p237 = pneg %p166
      %s238 = smul.u32 8, %s17
      %p239 = scmp.lt.s32.totalorder %s238, 15
      %s240 = scalar_select %p239, %s238, 15
      %s241 = smul.addr %s240, 8
      %s242 = scalar_lea.vmem %s6, %s241
      %s243 = smul.u32 8, %s17
      %p244 = scmp.lt.s32.totalorder %s243, 15
      %s245 = scalar_select %p244, %s243, 15
      %s246 = smul.addr %s245, 8
      %s247 = scalar_lea.vmem %s0, %s246
      %s248 = smul.u32 8, %s17
      %s249 = smul.u32 8, %s17
      %p250 = scmp.lt.s32.totalorder %s249, 15
      %s251 = scalar_select %p250, %s249, 15
      %s252 = smul.addr %s251, 8
      %s253 = scalar_lea.vmem %s6, %s252
      %s254 = smul.u32 8, %s17
      %v255 = vld [vmem:[%s247] sm:$0xff]
      %v256 = vld [vmem:[%s247 + $0x8] sm:$0xff]
      %v257 = vld [vmem:[%s247 + $0x10] sm:$0xff]
      %v258 = vld [vmem:[%s247 + $0x18] sm:$0xff]
      %v259 = vld [vmem:[%s247 + $0x20] sm:$0xff]
      %v260 = vld [vmem:[%s247 + $0x28] sm:$0xff]
      %v261 = vld [vmem:[%s247 + $0x30] sm:$0xff]
      %v262 = vld [vmem:[%s247 + $0x38] sm:$0xff]
      %v263 = vld [vmem:[%s1] sm:$0x7]
      %265 = vset.pattern.permute.xlu0 0
      %266 = vperm.xlu0 %265, %v255
      %v267 = vpop.permute.xlu0 %266
      %270 = vset.pattern.permute.xlu0 0
      %271 = vperm.xlu0 %270, %v256
      %v272 = vpop.permute.xlu0 %271
      %275 = vset.pattern.permute.xlu0 0
      %276 = vperm.xlu0 %275, %v257
      %v277 = vpop.permute.xlu0 %276
      %280 = vset.pattern.permute.xlu0 0
      %281 = vperm.xlu0 %280, %v258
      %v282 = vpop.permute.xlu0 %281
      %285 = vset.pattern.permute.xlu0 0
      %286 = vperm.xlu0 %285, %v259
      %v287 = vpop.permute.xlu0 %286
      %290 = vset.pattern.permute.xlu0 0
      %291 = vperm.xlu0 %290, %v260
      %v292 = vpop.permute.xlu0 %291
      %295 = vset.pattern.permute.xlu0 0
      %296 = vperm.xlu0 %295, %v261
      %v297 = vpop.permute.xlu0 %296
      %300 = vset.pattern.permute.xlu0 0
      %301 = vperm.xlu0 %300, %v262
      %v302 = vpop.permute.xlu0 %301
      %v304 = vlaneseq
      %v305 = vshrl.u32 %v304, 7
      %v306 = vsub.s32 0, %v305
      %v307 = vrot.slane %v263, %v306
      %v308 = vmul.f32 %v267, %v307
      %v309 = vmul.f32 %v272, %v307
      %v310 = vmul.f32 %v277, %v307
      %v311 = vmul.f32 %v282, %v307
      %v312 = vmul.f32 %v287, %v307
      %v313 = vmul.f32 %v292, %v307
      %v314 = vmul.f32 %v297, %v307
      %v315 = vmul.f32 %v302, %v307
      %316 = vset.pattern.permute.xlu0 1
      %317 = vperm.xlu0 %316, %v255
      %v318 = vpop.permute.xlu0 %317
      %320 = vset.pattern.permute.xlu0 1
      %321 = vperm.xlu0 %320, %v256
      %v322 = vpop.permute.xlu0 %321
      %324 = vset.pattern.permute.xlu0 1
      %325 = vperm.xlu0 %324, %v257
      %v326 = vpop.permute.xlu0 %325
      %328 = vset.pattern.permute.xlu0 1
      %329 = vperm.xlu0 %328, %v258
      %v330 = vpop.permute.xlu0 %329
      %332 = vset.pattern.permute.xlu0 1
      %333 = vperm.xlu0 %332, %v259
      %v334 = vpop.permute.xlu0 %333
      %336 = vset.pattern.permute.xlu0 1
      %337 = vperm.xlu0 %336, %v260
      %v338 = vpop.permute.xlu0 %337
      %340 = vset.pattern.permute.xlu0 1
      %341 = vperm.xlu0 %340, %v261
      %v342 = vpop.permute.xlu0 %341
      %344 = vset.pattern.permute.xlu0 1
      %345 = vperm.xlu0 %344, %v262
      %v346 = vpop.permute.xlu0 %345
      %v348 = vlaneseq
      %v349 = vshrl.u32 %v348, 7
      %v350 = vsub.s32 1, %v349
      %v351 = vrot.slane %v263, %v350
      %v352 = vmul.f32 %v318, %v351
      %v353 = vmul.f32 %v322, %v351
      %v354 = vmul.f32 %v326, %v351
      %v355 = vmul.f32 %v330, %v351
      %v356 = vmul.f32 %v334, %v351
      %v357 = vmul.f32 %v338, %v351
      %v358 = vmul.f32 %v342, %v351
      %v359 = vmul.f32 %v346, %v351
      %v360 = vadd.f32 %v308, %v352
      %v361 = vadd.f32 %v309, %v353
      %v362 = vadd.f32 %v310, %v354
      %v363 = vadd.f32 %v311, %v355
      %v364 = vadd.f32 %v312, %v356
      %v365 = vadd.f32 %v313, %v357
      %v366 = vadd.f32 %v314, %v358
      %v367 = vadd.f32 %v315, %v359
      %368 = vset.pattern.permute.xlu0 2
      %369 = vperm.xlu0 %368, %v255
      %v370 = vpop.permute.xlu0 %369
      %372 = vset.pattern.permute.xlu0 2
      %373 = vperm.xlu0 %372, %v256
      %v374 = vpop.permute.xlu0 %373
      %376 = vset.pattern.permute.xlu0 2
      %377 = vperm.xlu0 %376, %v257
      %v378 = vpop.permute.xlu0 %377
      %380 = vset.pattern.permute.xlu0 2
      %381 = vperm.xlu0 %380, %v258
      %v382 = vpop.permute.xlu0 %381
      %384 = vset.pattern.permute.xlu0 2
      %385 = vperm.xlu0 %384, %v259
      %v386 = vpop.permute.xlu0 %385
      %388 = vset.pattern.permute.xlu0 2
      %389 = vperm.xlu0 %388, %v260
      %v390 = vpop.permute.xlu0 %389
      %392 = vset.pattern.permute.xlu0 2
      %393 = vperm.xlu0 %392, %v261
      %v394 = vpop.permute.xlu0 %393
      %396 = vset.pattern.permute.xlu0 2
      %397 = vperm.xlu0 %396, %v262
      %v398 = vpop.permute.xlu0 %397
      %v400 = vlaneseq
      %v401 = vshrl.u32 %v400, 7
      %v402 = vsub.s32 2, %v401
      %v403 = vrot.slane %v263, %v402
      %v404 = vmul.f32 %v370, %v403
      %v405 = vmul.f32 %v374, %v403
      %v406 = vmul.f32 %v378, %v403
      %v407 = vmul.f32 %v382, %v403
      %v408 = vmul.f32 %v386, %v403
      %v409 = vmul.f32 %v390, %v403
      %v410 = vmul.f32 %v394, %v403
      %v411 = vmul.f32 %v398, %v403
      %v412 = vadd.f32 %v360, %v404
      %v413 = vadd.f32 %v361, %v405
      %v414 = vadd.f32 %v362, %v406
      %v415 = vadd.f32 %v363, %v407
      %v416 = vadd.f32 %v364, %v408
      %v417 = vadd.f32 %v365, %v409
      %v418 = vadd.f32 %v366, %v410
      %v419 = vadd.f32 %v367, %v411
      %v420 = vld [vmem:[%s2] sm:$0xff]
      %v421 = vld [vmem:[%s2 + $0x8] sm:$0xf]
      %v424 = vcombine.high %v420, %v420
      %v426 = vunpack.c.l.s4 1966171168
      %v427 = vunpack.c.0.s8 %v426
      %v428 = vlaneseq
      %v429 = vshrl.u32 %v428, 7
      %v430 = vsub.s32 %v427, %v429
      %v431 = vrot.slane %v420, %v430
      %v433 = vunpack.c.l.s4 1966171168
      %v434 = vunpack.c.0.s8 %v433
      %v435 = vlaneseq
      %v436 = vshrl.u32 %v435, 7
      %v437 = vsub.s32 %v434, %v436
      %v438 = vrot.slane %v424, %v437
      %v439 = vcombine.high %v431, %v431
      %v440 = vcombine.high %v438, %v438
      %v442 = vunpack.c.l.s4 1966171168
      %v443 = vunpack.c.0.s8 %v442
      %v444 = vlaneseq
      %v445 = vshrl.u32 %v444, 7
      %v446 = vsub.s32 %v443, %v445
      %v447 = vrot.slane %v431, %v446
      %v449 = vunpack.c.l.s4 1966171168
      %v450 = vunpack.c.0.s8 %v449
      %v451 = vlaneseq
      %v452 = vshrl.u32 %v451, 7
      %v453 = vsub.s32 %v450, %v452
      %v454 = vrot.slane %v438, %v453
      %v456 = vunpack.c.l.s4 1966171168
      %v457 = vunpack.c.0.s8 %v456
      %v458 = vlaneseq
      %v459 = vshrl.u32 %v458, 7
      %v460 = vsub.s32 %v457, %v459
      %v461 = vrot.slane %v439, %v460
      %v463 = vunpack.c.l.s4 1966171168
      %v464 = vunpack.c.0.s8 %v463
      %v465 = vlaneseq
      %v466 = vshrl.u32 %v465, 7
      %v467 = vsub.s32 %v464, %v466
      %v468 = vrot.slane %v440, %v467
      %v469 = vcombine.high %v447, %v447
      %v470 = vcombine.high %v454, %v454
      %v471 = vcombine.high %v461, %v461
      %v472 = vcombine.high %v468, %v468
      %v474 = vunpack.c.l.s4 1966171168
      %v475 = vunpack.c.0.s8 %v474
      %v476 = vlaneseq
      %v477 = vshrl.u32 %v476, 7
      %v478 = vsub.s32 %v475, %v477
      %v479 = vrot.slane %v421, %v478
      %v480 = vcombine.high %v479, %v479
      %v482 = vunpack.c.l.s4 1966171168
      %v483 = vunpack.c.0.s8 %v482
      %v484 = vlaneseq
      %v485 = vshrl.u32 %v484, 7
      %v486 = vsub.s32 %v483, %v485
      %v487 = vrot.slane %v479, %v486
      %v489 = vunpack.c.l.s4 1966171168
      %v490 = vunpack.c.0.s8 %v489
      %v491 = vlaneseq
      %v492 = vshrl.u32 %v491, 7
      %v493 = vsub.s32 %v490, %v492
      %v494 = vrot.slane %v480, %v493
      %v495 = vcombine.high %v487, %v487
      %v496 = vcombine.high %v494, %v494
      %v497 = vlaneseq
      %v498 = vshrl.u32 %v497, 7
      %v499 = vsub.s32 0, %v498
      %v500 = vrot.slane %v447, %v499
      %v501 = vlaneseq
      %v502 = vshrl.u32 %v501, 7
      %v503 = vsub.s32 0, %v502
      %v504 = vrot.slane %v461, %v503
      %v505 = vlaneseq
      %v506 = vshrl.u32 %v505, 7
      %v507 = vsub.s32 0, %v506
      %v508 = vrot.slane %v469, %v507
      %v509 = vlaneseq
      %v510 = vshrl.u32 %v509, 7
      %v511 = vsub.s32 0, %v510
      %v512 = vrot.slane %v471, %v511
      %v513 = vlaneseq
      %v514 = vshrl.u32 %v513, 7
      %v515 = vsub.s32 0, %v514
      %v516 = vrot.slane %v454, %v515
      %v517 = vlaneseq
      %v518 = vshrl.u32 %v517, 7
      %v519 = vsub.s32 0, %v518
      %v520 = vrot.slane %v468, %v519
      %v521 = vlaneseq
      %v522 = vshrl.u32 %v521, 7
      %v523 = vsub.s32 0, %v522
      %v524 = vrot.slane %v470, %v523
      %v525 = vlaneseq
      %v526 = vshrl.u32 %v525, 7
      %v527 = vsub.s32 0, %v526
      %v528 = vrot.slane %v472, %v527
      %v529 = vlaneseq
      %v530 = vshrl.u32 %v529, 7
      %v531 = vsub.s32 0, %v530
      %v532 = vrot.slane %v487, %v531
      %v533 = vlaneseq
      %v534 = vshrl.u32 %v533, 7
      %v535 = vsub.s32 0, %v534
      %v536 = vrot.slane %v494, %v535
      %v537 = vlaneseq
      %v538 = vshrl.u32 %v537, 7
      %v539 = vsub.s32 0, %v538
      %v540 = vrot.slane %v495, %v539
      %v541 = vlaneseq
      %v542 = vshrl.u32 %v541, 7
      %v543 = vsub.s32 0, %v542
      %v544 = vrot.slane %v496, %v543
      %v557 = vadd.f32 %v412, %v500
      %v558 = vadd.f32 %v413, %v500
      %v559 = vadd.f32 %v414, %v500
      %v560 = vadd.f32 %v415, %v500
      %v561 = vadd.f32 %v416, %v500
      %v562 = vadd.f32 %v417, %v500
      %v563 = vadd.f32 %v418, %v500
      %v564 = vadd.f32 %v419, %v500
      %v565 = vadd.f32 %v412, %v504
      %v566 = vadd.f32 %v413, %v504
      %v567 = vadd.f32 %v414, %v504
      %v568 = vadd.f32 %v415, %v504
      %v569 = vadd.f32 %v416, %v504
      %v570 = vadd.f32 %v417, %v504
      %v571 = vadd.f32 %v418, %v504
      %v572 = vadd.f32 %v419, %v504
      %v573 = vadd.f32 %v412, %v508
      %v574 = vadd.f32 %v413, %v508
      %v575 = vadd.f32 %v414, %v508
      %v576 = vadd.f32 %v415, %v508
      %v577 = vadd.f32 %v416, %v508
      %v578 = vadd.f32 %v417, %v508
      %v579 = vadd.f32 %v418, %v508
      %v580 = vadd.f32 %v419, %v508
      %v581 = vadd.f32 %v412, %v512
      %v582 = vadd.f32 %v413, %v512
      %v583 = vadd.f32 %v414, %v512
      %v584 = vadd.f32 %v415, %v512
      %v585 = vadd.f32 %v416, %v512
      %v586 = vadd.f32 %v417, %v512
      %v587 = vadd.f32 %v418, %v512
      %v588 = vadd.f32 %v419, %v512
      %v589 = vadd.f32 %v412, %v516
      %v590 = vadd.f32 %v413, %v516
      %v591 = vadd.f32 %v414, %v516
      %v592 = vadd.f32 %v415, %v516
      %v593 = vadd.f32 %v416, %v516
      %v594 = vadd.f32 %v417, %v516
      %v595 = vadd.f32 %v418, %v516
      %v596 = vadd.f32 %v419, %v516
      %v597 = vadd.f32 %v412, %v520
      %v598 = vadd.f32 %v413, %v520
      %v599 = vadd.f32 %v414, %v520
      %v600 = vadd.f32 %v415, %v520
      %v601 = vadd.f32 %v416, %v520
      %v602 = vadd.f32 %v417, %v520
      %v603 = vadd.f32 %v418, %v520
      %v604 = vadd.f32 %v419, %v520
      %v605 = vadd.f32 %v412, %v524
      %v606 = vadd.f32 %v413, %v524
      %v607 = vadd.f32 %v414, %v524
      %v608 = vadd.f32 %v415, %v524
      %v609 = vadd.f32 %v416, %v524
      %v610 = vadd.f32 %v417, %v524
      %v611 = vadd.f32 %v418, %v524
      %v612 = vadd.f32 %v419, %v524
      %v613 = vadd.f32 %v412, %v528
      %v614 = vadd.f32 %v413, %v528
      %v615 = vadd.f32 %v414, %v528
      %v616 = vadd.f32 %v415, %v528
      %v617 = vadd.f32 %v416, %v528
      %v618 = vadd.f32 %v417, %v528
      %v619 = vadd.f32 %v418, %v528
      %v620 = vadd.f32 %v419, %v528
      %v621 = vadd.f32 %v412, %v532
      %v622 = vadd.f32 %v413, %v532
      %v623 = vadd.f32 %v414, %v532
      %v624 = vadd.f32 %v415, %v532
      %v625 = vadd.f32 %v416, %v532
      %v626 = vadd.f32 %v417, %v532
      %v627 = vadd.f32 %v418, %v532
      %v628 = vadd.f32 %v419, %v532
      %v629 = vadd.f32 %v412, %v536
      %v630 = vadd.f32 %v413, %v536
      %v631 = vadd.f32 %v414, %v536
      %v632 = vadd.f32 %v415, %v536
      %v633 = vadd.f32 %v416, %v536
      %v634 = vadd.f32 %v417, %v536
      %v635 = vadd.f32 %v418, %v536
      %v636 = vadd.f32 %v419, %v536
      %v637 = vadd.f32 %v412, %v540
      %v638 = vadd.f32 %v413, %v540
      %v639 = vadd.f32 %v414, %v540
      %v640 = vadd.f32 %v415, %v540
      %v641 = vadd.f32 %v416, %v540
      %v642 = vadd.f32 %v417, %v540
      %v643 = vadd.f32 %v418, %v540
      %v644 = vadd.f32 %v419, %v540
      %v645 = vadd.f32 %v412, %v544
      %v646 = vadd.f32 %v413, %v544
      %v647 = vadd.f32 %v414, %v544
      %v648 = vadd.f32 %v415, %v544
      %v649 = vadd.f32 %v416, %v544
      %v650 = vadd.f32 %v417, %v544
      %v651 = vadd.f32 %v418, %v544
      %v652 = vadd.f32 %v419, %v544
      %v653 = vmax.f32 %v557, 0.0
      %v654 = vmax.f32 %v558, 0.0
      %v655 = vmax.f32 %v559, 0.0
      %v656 = vmax.f32 %v560, 0.0
      %v657 = vmax.f32 %v561, 0.0
      %v658 = vmax.f32 %v562, 0.0
      %v659 = vmax.f32 %v563, 0.0
      %v660 = vmax.f32 %v564, 0.0
      %v661 = vmax.f32 %v565, 0.0
      %v662 = vmax.f32 %v566, 0.0
      %v663 = vmax.f32 %v567, 0.0
      %v664 = vmax.f32 %v568, 0.0
      %v665 = vmax.f32 %v569, 0.0
      %v666 = vmax.f32 %v570, 0.0
      %v667 = vmax.f32 %v571, 0.0
      %v668 = vmax.f32 %v572, 0.0
      %v669 = vmax.f32 %v573, 0.0
      %v670 = vmax.f32 %v574, 0.0
      %v671 = vmax.f32 %v575, 0.0
      %v672 = vmax.f32 %v576, 0.0
      %v673 = vmax.f32 %v577, 0.0
      %v674 = vmax.f32 %v578, 0.0
      %v675 = vmax.f32 %v579, 0.0
      %v676 = vmax.f32 %v580, 0.0
      %v677 = vmax.f32 %v581, 0.0
      %v678 = vmax.f32 %v582, 0.0
      %v679 = vmax.f32 %v583, 0.0
      %v680 = vmax.f32 %v584, 0.0
      %v681 = vmax.f32 %v585, 0.0
      %v682 = vmax.f32 %v586, 0.0
      %v683 = vmax.f32 %v587, 0.0
      %v684 = vmax.f32 %v588, 0.0
      %v685 = vmax.f32 %v589, 0.0
      %v686 = vmax.f32 %v590, 0.0
      %v687 = vmax.f32 %v591, 0.0
      %v688 = vmax.f32 %v592, 0.0
      %v689 = vmax.f32 %v593, 0.0
      %v690 = vmax.f32 %v594, 0.0
      %v691 = vmax.f32 %v595, 0.0
      %v692 = vmax.f32 %v596, 0.0
      %v693 = vmax.f32 %v597, 0.0
      %v694 = vmax.f32 %v598, 0.0
      %v695 = vmax.f32 %v599, 0.0
      %v696 = vmax.f32 %v600, 0.0
      %v697 = vmax.f32 %v601, 0.0
      %v698 = vmax.f32 %v602, 0.0
      %v699 = vmax.f32 %v603, 0.0
      %v700 = vmax.f32 %v604, 0.0
      %v701 = vmax.f32 %v605, 0.0
      %v702 = vmax.f32 %v606, 0.0
      %v703 = vmax.f32 %v607, 0.0
      %v704 = vmax.f32 %v608, 0.0
      %v705 = vmax.f32 %v609, 0.0
      %v706 = vmax.f32 %v610, 0.0
      %v707 = vmax.f32 %v611, 0.0
      %v708 = vmax.f32 %v612, 0.0
      %v709 = vmax.f32 %v613, 0.0
      %v710 = vmax.f32 %v614, 0.0
      %v711 = vmax.f32 %v615, 0.0
      %v712 = vmax.f32 %v616, 0.0
      %v713 = vmax.f32 %v617, 0.0
      %v714 = vmax.f32 %v618, 0.0
      %v715 = vmax.f32 %v619, 0.0
      %v716 = vmax.f32 %v620, 0.0
      %v717 = vmax.f32 %v621, 0.0
      %v718 = vmax.f32 %v622, 0.0
      %v719 = vmax.f32 %v623, 0.0
      %v720 = vmax.f32 %v624, 0.0
      %v721 = vmax.f32 %v625, 0.0
      %v722 = vmax.f32 %v626, 0.0
      %v723 = vmax.f32 %v627, 0.0
      %v724 = vmax.f32 %v628, 0.0
      %v725 = vmax.f32 %v629, 0.0
      %v726 = vmax.f32 %v630, 0.0
      %v727 = vmax.f32 %v631, 0.0
      %v728 = vmax.f32 %v632, 0.0
      %v729 = vmax.f32 %v633, 0.0
      %v730 = vmax.f32 %v634, 0.0
      %v731 = vmax.f32 %v635, 0.0
      %v732 = vmax.f32 %v636, 0.0
      %v733 = vmax.f32 %v637, 0.0
      %v734 = vmax.f32 %v638, 0.0
      %v735 = vmax.f32 %v639, 0.0
      %v736 = vmax.f32 %v640, 0.0
      %v737 = vmax.f32 %v641, 0.0
      %v738 = vmax.f32 %v642, 0.0
      %v739 = vmax.f32 %v643, 0.0
      %v740 = vmax.f32 %v644, 0.0
      %v741 = vmax.f32 %v645, 0.0
      %v742 = vmax.f32 %v646, 0.0
      %v743 = vmax.f32 %v647, 0.0
      %v744 = vmax.f32 %v648, 0.0
      %v745 = vmax.f32 %v649, 0.0
      %v746 = vmax.f32 %v650, 0.0
      %v747 = vmax.f32 %v651, 0.0
      %v748 = vmax.f32 %v652, 0.0
      %v749 = vld [vmem:[%s3] sm:$0xff]
      %v750 = vld [vmem:[%s3 + $0x8] sm:$0xff]
      %v751 = vld [vmem:[%s4] sm:$0x1]
      %v753 = vlaneseq
      %v754 = vshrl.u32 %v753, 7
      %v755 = vsub.s32 0, %v754
      %v756 = vrot.slane %v751, %v755
      %vm758 = vcmask 130048
      %v760 = vsel %vm758, %v653, 0
      %v763 = vsel %vm758, %v654, 0
      %v766 = vsel %vm758, %v655, 0
      %v769 = vsel %vm758, %v656, 0
      %v772 = vsel %vm758, %v657, 0
      %v775 = vsel %vm758, %v658, 0
      %v778 = vsel %vm758, %v659, 0
      %v781 = vsel %vm758, %v660, 0
      %v784 = vsel %vm758, %v661, 0
      %v787 = vsel %vm758, %v662, 0
      %v790 = vsel %vm758, %v663, 0
      %v793 = vsel %vm758, %v664, 0
      %v796 = vsel %vm758, %v665, 0
      %v799 = vsel %vm758, %v666, 0
      %v802 = vsel %vm758, %v667, 0
      %v805 = vsel %vm758, %v668, 0
      %v808 = vsel %vm758, %v669, 0
      %v811 = vsel %vm758, %v670, 0
      %v814 = vsel %vm758, %v671, 0
      %v817 = vsel %vm758, %v672, 0
      %v820 = vsel %vm758, %v673, 0
      %v823 = vsel %vm758, %v674, 0
      %v826 = vsel %vm758, %v675, 0
      %v829 = vsel %vm758, %v676, 0
      %v832 = vsel %vm758, %v677, 0
      %v835 = vsel %vm758, %v678, 0
      %v838 = vsel %vm758, %v679, 0
      %v841 = vsel %vm758, %v680, 0
      %v844 = vsel %vm758, %v681, 0
      %v847 = vsel %vm758, %v682, 0
      %v850 = vsel %vm758, %v683, 0
      %v853 = vsel %vm758, %v684, 0
      %v856 = vsel %vm758, %v685, 0
      %v859 = vsel %vm758, %v686, 0
      %v862 = vsel %vm758, %v687, 0
      %v865 = vsel %vm758, %v688, 0
      %v868 = vsel %vm758, %v689, 0
      %v871 = vsel %vm758, %v690, 0
      %v874 = vsel %vm758, %v691, 0
      %v877 = vsel %vm758, %v692, 0
      %v880 = vsel %vm758, %v693, 0
      %v883 = vsel %vm758, %v694, 0
      %v886 = vsel %vm758, %v695, 0
      %v889 = vsel %vm758, %v696, 0
      %v892 = vsel %vm758, %v697, 0
      %v895 = vsel %vm758, %v698, 0
      %v898 = vsel %vm758, %v699, 0
      %v901 = vsel %vm758, %v700, 0
      %v904 = vsel %vm758, %v701, 0
      %v907 = vsel %vm758, %v702, 0
      %v910 = vsel %vm758, %v703, 0
      %v913 = vsel %vm758, %v704, 0
      %v916 = vsel %vm758, %v705, 0
      %v919 = vsel %vm758, %v706, 0
      %v922 = vsel %vm758, %v707, 0
      %v925 = vsel %vm758, %v708, 0
      %v928 = vsel %vm758, %v709, 0
      %v931 = vsel %vm758, %v710, 0
      %v934 = vsel %vm758, %v711, 0
      %v937 = vsel %vm758, %v712, 0
      %v940 = vsel %vm758, %v713, 0
      %v943 = vsel %vm758, %v714, 0
      %v946 = vsel %vm758, %v715, 0
      %v949 = vsel %vm758, %v716, 0
      %v952 = vsel %vm758, %v717, 0
      %v955 = vsel %vm758, %v718, 0
      %v958 = vsel %vm758, %v719, 0
      %v961 = vsel %vm758, %v720, 0
      %v964 = vsel %vm758, %v721, 0
      %v967 = vsel %vm758, %v722, 0
      %v970 = vsel %vm758, %v723, 0
      %v973 = vsel %vm758, %v724, 0
      %v976 = vsel %vm758, %v725, 0
      %v979 = vsel %vm758, %v726, 0
      %v982 = vsel %vm758, %v727, 0
      %v985 = vsel %vm758, %v728, 0
      %v988 = vsel %vm758, %v729, 0
      %v991 = vsel %vm758, %v730, 0
      %v994 = vsel %vm758, %v731, 0
      %v997 = vsel %vm758, %v732, 0
      %v1000 = vsel %vm758, %v733, 0
      %v1003 = vsel %vm758, %v734, 0
      %v1006 = vsel %vm758, %v735, 0
      %v1009 = vsel %vm758, %v736, 0
      %v1012 = vsel %vm758, %v737, 0
      %v1015 = vsel %vm758, %v738, 0
      %v1018 = vsel %vm758, %v739, 0
      %v1021 = vsel %vm758, %v740, 0
      %v1024 = vsel %vm758, %v741, 0
      %v1027 = vsel %vm758, %v742, 0
      %v1030 = vsel %vm758, %v743, 0
      %v1033 = vsel %vm758, %v744, 0
      %v1036 = vsel %vm758, %v745, 0
      %v1039 = vsel %vm758, %v746, 0
      %v1042 = vsel %vm758, %v747, 0
      %v1045 = vsel %vm758, %v748, 0
      %1047 = vmatprep.subr.mxu0 0.0
      %1048 = vmatpush1.msra.mxu0 %v749
      %1049 = vmatprep.subr.mxu0 0.0
      %1050 = vmatpush1.msra.mxu0 %v750
      %1051 = vmatprep.subr.mxu0 0.0
      %1052 = vmatpush1.msra.mxu0 0.0
      %1053 = vmatprep.subr.mxu0 0.0
      %1054 = vmatpush1.msra.mxu0 0.0
      %1055 = vmatprep.subr.mxu0 0.0
      %1056 = vmatpush1.msra.mxu0 0.0
      %1057 = vmatprep.subr.mxu0 0.0
      %1058 = vmatpush1.msra.mxu0 0.0
      %1059 = vmatprep.subr.mxu0 0.0
      %1060 = vmatpush1.msra.mxu0 0.0
      %1061 = vmatprep.subr.mxu0 0.0
      %1062 = vmatpush1.msra.mxu0 0.0
      %1063 = vmatprep.subr.mxu0 0.0
      %1064 = vmatpush1.msra.mxu0 0.0
      %1065 = vmatprep.subr.mxu0 0.0
      %1066 = vmatpush1.msra.mxu0 0.0
      %1067 = vmatprep.subr.mxu0 0.0
      %1068 = vmatpush1.msra.mxu0 0.0
      %1069 = vmatprep.subr.mxu0 0.0
      %1070 = vmatpush1.msra.mxu0 0.0
      %1071 = vmatprep.subr.mxu0 0.0
      %1072 = vmatpush1.msra.mxu0 0.0
      %1073 = vmatprep.subr.mxu0 0.0
      %1074 = vmatpush1.msra.mxu0 0.0
      %1075 = vmatprep.subr.mxu0 0.0
      %1076 = vmatpush1.msra.mxu0 0.0
      %1077 = vmatprep.subr.mxu0 0.0
      %1078 = vmatpush1.msra.mxu0 0.0
      %1079 = vmatprep.subr.mxu0 0.0
      %1080 = vmatpush1.msra.mxu0 0.0
      %1081 = vmatprep.subr.mxu0 0.0
      %1082 = vmatpush1.msra.mxu0 0.0
      %1083 = vmatprep.subr.mxu0 0.0
      %1084 = vmatpush1.msra.mxu0 0.0
      %1085 = vmatprep.subr.mxu0 0.0
      %1086 = vmatpush1.msra.mxu0 0.0
      %1087 = vmatprep.subr.mxu0 0.0
      %1088 = vmatpush1.msra.mxu0 0.0
      %1089 = vmatprep.subr.mxu0 0.0
      %1090 = vmatpush1.msra.mxu0 0.0
      %1091 = vmatprep.subr.mxu0 0.0
      %1092 = vmatpush1.msra.mxu0 0.0
      %1093 = vmatprep.subr.mxu0 0.0
      %1094 = vmatpush1.msra.mxu0 0.0
      %1095 = vmatprep.subr.mxu0 0.0
      %1096 = vmatpush1.msra.mxu0 0.0
      %1097 = vmatprep.subr.mxu0 0.0
      %1098 = vmatpush1.msra.mxu0 0.0
      %1099 = vmatprep.subr.mxu0 0.0
      %1100 = vmatpush1.msra.mxu0 0.0
      %1101 = vmatprep.subr.mxu0 0.0
      %1102 = vmatpush1.msra.mxu0 0.0
      %1103 = vmatprep.subr.mxu0 0.0
      %1104 = vmatpush1.msra.mxu0 0.0
      %1105 = vmatprep.subr.mxu0 0.0
      %1106 = vmatpush1.msra.mxu0 0.0
      %1107 = vmatprep.subr.mxu0 0.0
      %1108 = vmatpush1.msra.mxu0 0.0
      %1109 = vmatprep.subr.mxu0 0.0
      %1110 = vmatpush1.msra.mxu0 0.0
      %1111 = vmatprep.mubr.f32.mxu0 0.0
      %1112 = vmatmul.mubr.f32.gmra.mrb[0].mxu0 %v760
      %v1113 = vpop.f32.mrb[0].mxu0
      %v1114 = vadd.f32 %v756, %v1113
      %v1115 = vpop.f32.mrb[0].mxu0
      %1116 = vmatprep.mubr.f32.mxu0 0.0
      %1117 = vmatmul.mubr.f32.gmra.mrb[0].mxu0 %v763
      %v1118 = vpop.f32.mrb[0].mxu0
      %v1119 = vadd.f32 %v756, %v1118
      %v1120 = vpop.f32.mrb[0].mxu0
      %1121 = vmatprep.mubr.f32.mxu0 0.0
      %1122 = vmatmul.mubr.f32.gmra.mrb[0].mxu0 %v766
      %v1123 = vpop.f32.mrb[0].mxu0
      %v1124 = vadd.f32 %v756, %v1123
      %v1125 = vpop.f32.mrb[0].mxu0
      %1126 = vmatprep.mubr.f32.mxu0 0.0
      %1127 = vmatmul.mubr.f32.gmra.mrb[0].mxu0 %v769
      %v1128 = vpop.f32.mrb[0].mxu0
      %v1129 = vadd.f32 %v756, %v1128
      %v1130 = vpop.f32.mrb[0].mxu0
      %1131 = vmatprep.mubr.f32.mxu0 0.0
      %1132 = vmatmul.mubr.f32.gmra.mrb[0].mxu0 %v772
      %v1133 = vpop.f32.mrb[0].mxu0
      %v1134 = vadd.f32 %v756, %v1133
      %v1135 = vpop.f32.mrb[0].mxu0
      %1136 = vmatprep.mubr.f32.mxu0 0.0
      %1137 = vmatmul.mubr.f32.gmra.mrb[0].mxu0 %v775
      %v1138 = vpop.f32.mrb[0].mxu0
      %v1139 = vadd.f32 %v756, %v1138
      %v1140 = vpop.f32.mrb[0].mxu0
      %1141 = vmatprep.mubr.f32.mxu0 0.0
      %1142 = vmatmul.mubr.f32.gmra.mrb[0].mxu0 %v778
      %v1143 = vpop.f32.mrb[0].mxu0
      %v1144 = vadd.f32 %v756, %v1143
      %v1145 = vpop.f32.mrb[0].mxu0
      %1146 = vmatprep.mubr.f32.mxu0 0.0
      %1147 = vmatmul.mubr.f32.gmra.mrb[0].mxu0 %v781
      %v1148 = vpop.f32.mrb[0].mxu0
      %v1149 = vadd.f32 %v756, %v1148
      %v1150 = vpop.f32.mrb[0].mxu0
      %1151 = vmatprep.mubr.f32.mxu0 0.0
      %1152 = vmatmul.mubr.f32.gmra.mrb[0].mxu0 %v784
      %v1153 = vpop.f32.mrb[0].mxu0
      %v1154 = vadd.f32 %v756, %v1153
      %v1155 = vpop.f32.mrb[0].mxu0
      %1156 = vmatprep.mubr.f32.mxu0 0.0
      %1157 = vmatmul.mubr.f32.gmra.mrb[0].mxu0 %v787
      %v1158 = vpop.f32.mrb[0].mxu0
      %v1159 = vadd.f32 %v756, %v1158
      %v1160 = vpop.f32.mrb[0].mxu0
      %1161 = vmatprep.mubr.f32.mxu0 0.0
      %1162 = vmatmul.mubr.f32.gmra.mrb[0].mxu0 %v790
      %v1163 = vpop.f32.mrb[0].mxu0
      %v1164 = vadd.f32 %v756, %v1163
      %v1165 = vpop.f32.mrb[0].mxu0
      %1166 = vmatprep.mubr.f32.mxu0 0.0
      %1167 = vmatmul.mubr.f32.gmra.mrb[0].mxu0 %v793
      %v1168 = vpop.f32.mrb[0].mxu0
      %v1169 = vadd.f32 %v756, %v1168
      %v1170 = vpop.f32.mrb[0].mxu0
      %1171 = vmatprep.mubr.f32.mxu0 0.0
      %1172 = vmatmul.mubr.f32.gmra.mrb[0].mxu0 %v796
      %v1173 = vpop.f32.mrb[0].mxu0
      %v1174 = vadd.f32 %v756, %v1173
      %v1175 = vpop.f32.mrb[0].mxu0
      %1176 = vmatprep.mubr.f32.mxu0 0.0
      %1177 = vmatmul.mubr.f32.gmra.mrb[0].mxu0 %v799
      %v1178 = vpop.f32.mrb[0].mxu0
      %v1179 = vadd.f32 %v756, %v1178
      %v1180 = vpop.f32.mrb[0].mxu0
      %1181 = vmatprep.mubr.f32.mxu0 0.0
      %1182 = vmatmul.mubr.f32.gmra.mrb[0].mxu0 %v802
      %v1183 = vpop.f32.mrb[0].mxu0
      %v1184 = vadd.f32 %v756, %v1183
      %v1185 = vpop.f32.mrb[0].mxu0
      %1186 = vmatprep.mubr.f32.mxu0 0.0
      %1187 = vmatmul.mubr.f32.gmra.mrb[0].mxu0 %v805
      %v1188 = vpop.f32.mrb[0].mxu0
      %v1189 = vadd.f32 %v756, %v1188
      %v1190 = vpop.f32.mrb[0].mxu0
      %1191 = vmatprep.mubr.f32.mxu0 0.0
      %1192 = vmatmul.mubr.f32.gmra.mrb[0].mxu0 %v808
      %v1193 = vpop.f32.mrb[0].mxu0
      %v1194 = vadd.f32 %v756, %v1193
      %v1195 = vpop.f32.mrb[0].mxu0
      %1196 = vmatprep.mubr.f32.mxu0 0.0
      %1197 = vmatmul.mubr.f32.gmra.mrb[0].mxu0 %v811
      %v1198 = vpop.f32.mrb[0].mxu0
      %v1199 = vadd.f32 %v756, %v1198
      %v1200 = vpop.f32.mrb[0].mxu0
      %1201 = vmatprep.mubr.f32.mxu0 0.0
      %1202 = vmatmul.mubr.f32.gmra.mrb[0].mxu0 %v814
      %v1203 = vpop.f32.mrb[0].mxu0
      %v1204 = vadd.f32 %v756, %v1203
      %v1205 = vpop.f32.mrb[0].mxu0
      %1206 = vmatprep.mubr.f32.mxu0 0.0
      %1207 = vmatmul.mubr.f32.gmra.mrb[0].mxu0 %v817
      %v1208 = vpop.f32.mrb[0].mxu0
      %v1209 = vadd.f32 %v756, %v1208
      %v1210 = vpop.f32.mrb[0].mxu0
      %1211 = vmatprep.mubr.f32.mxu0 0.0
      %1212 = vmatmul.mubr.f32.gmra.mrb[0].mxu0 %v820
      %v1213 = vpop.f32.mrb[0].mxu0
      %v1214 = vadd.f32 %v756, %v1213
      %v1215 = vpop.f32.mrb[0].mxu0
      %1216 = vmatprep.mubr.f32.mxu0 0.0
      %1217 = vmatmul.mubr.f32.gmra.mrb[0].mxu0 %v823
      %v1218 = vpop.f32.mrb[0].mxu0
      %v1219 = vadd.f32 %v756, %v1218
      %v1220 = vpop.f32.mrb[0].mxu0
      %1221 = vmatprep.mubr.f32.mxu0 0.0
      %1222 = vmatmul.mubr.f32.gmra.mrb[0].mxu0 %v826
      %v1223 = vpop.f32.mrb[0].mxu0
      %v1224 = vadd.f32 %v756, %v1223
      %v1225 = vpop.f32.mrb[0].mxu0
      %1226 = vmatprep.mubr.f32.mxu0 0.0
      %1227 = vmatmul.mubr.f32.gmra.mrb[0].mxu0 %v829
      %v1228 = vpop.f32.mrb[0].mxu0
      %v1229 = vadd.f32 %v756, %v1228
      %v1230 = vpop.f32.mrb[0].mxu0
      %1231 = vmatprep.mubr.f32.mxu0 0.0
      %1232 = vmatmul.mubr.f32.gmra.mrb[0].mxu0 %v832
      %v1233 = vpop.f32.mrb[0].mxu0
      %v1234 = vadd.f32 %v756, %v1233
      %v1235 = vpop.f32.mrb[0].mxu0
      %1236 = vmatprep.mubr.f32.mxu0 0.0
      %1237 = vmatmul.mubr.f32.gmra.mrb[0].mxu0 %v835
      %v1238 = vpop.f32.mrb[0].mxu0
      %v1239 = vadd.f32 %v756, %v1238
      %v1240 = vpop.f32.mrb[0].mxu0
      %1241 = vmatprep.mubr.f32.mxu0 0.0
      %1242 = vmatmul.mubr.f32.gmra.mrb[0].mxu0 %v838
      %v1243 = vpop.f32.mrb[0].mxu0
      %v1244 = vadd.f32 %v756, %v1243
      %v1245 = vpop.f32.mrb[0].mxu0
      %1246 = vmatprep.mubr.f32.mxu0 0.0
      %1247 = vmatmul.mubr.f32.gmra.mrb[0].mxu0 %v841
      %v1248 = vpop.f32.mrb[0].mxu0
      %v1249 = vadd.f32 %v756, %v1248
      %v1250 = vpop.f32.mrb[0].mxu0
      %1251 = vmatprep.mubr.f32.mxu0 0.0
      %1252 = vmatmul.mubr.f32.gmra.mrb[0].mxu0 %v844
      %v1253 = vpop.f32.mrb[0].mxu0
      %v1254 = vadd.f32 %v756, %v1253
      %v1255 = vpop.f32.mrb[0].mxu0
      %1256 = vmatprep.mubr.f32.mxu0 0.0
      %1257 = vmatmul.mubr.f32.gmra.mrb[0].mxu0 %v847
      %v1258 = vpop.f32.mrb[0].mxu0
      %v1259 = vadd.f32 %v756, %v1258
      %v1260 = vpop.f32.mrb[0].mxu0
      %1261 = vmatprep.mubr.f32.mxu0 0.0
      %1262 = vmatmul.mubr.f32.gmra.mrb[0].mxu0 %v850
      %v1263 = vpop.f32.mrb[0].mxu0
      %v1264 = vadd.f32 %v756, %v1263
      %v1265 = vpop.f32.mrb[0].mxu0
      %1266 = vmatprep.mubr.f32.mxu0 0.0
      %1267 = vmatmul.mubr.f32.gmra.mrb[0].mxu0 %v853
      %v1268 = vpop.f32.mrb[0].mxu0
      %v1269 = vadd.f32 %v756, %v1268
      %v1270 = vpop.f32.mrb[0].mxu0
      %1271 = vmatprep.mubr.f32.mxu0 0.0
      %1272 = vmatmul.mubr.f32.gmra.mrb[0].mxu0 %v856
      %v1273 = vpop.f32.mrb[0].mxu0
      %v1274 = vadd.f32 %v756, %v1273
      %v1275 = vpop.f32.mrb[0].mxu0
      %1276 = vmatprep.mubr.f32.mxu0 0.0
      %1277 = vmatmul.mubr.f32.gmra.mrb[0].mxu0 %v859
      %v1278 = vpop.f32.mrb[0].mxu0
      %v1279 = vadd.f32 %v756, %v1278
      %v1280 = vpop.f32.mrb[0].mxu0
      %1281 = vmatprep.mubr.f32.mxu0 0.0
      %1282 = vmatmul.mubr.f32.gmra.mrb[0].mxu0 %v862
      %v1283 = vpop.f32.mrb[0].mxu0
      %v1284 = vadd.f32 %v756, %v1283
      %v1285 = vpop.f32.mrb[0].mxu0
      %1286 = vmatprep.mubr.f32.mxu0 0.0
      %1287 = vmatmul.mubr.f32.gmra.mrb[0].mxu0 %v865
      %v1288 = vpop.f32.mrb[0].mxu0
      %v1289 = vadd.f32 %v756, %v1288
      %v1290 = vpop.f32.mrb[0].mxu0
      %1291 = vmatprep.mubr.f32.mxu0 0.0
      %1292 = vmatmul.mubr.f32.gmra.mrb[0].mxu0 %v868
      %v1293 = vpop.f32.mrb[0].mxu0
      %v1294 = vadd.f32 %v756, %v1293
      %v1295 = vpop.f32.mrb[0].mxu0
      %1296 = vmatprep.mubr.f32.mxu0 0.0
      %1297 = vmatmul.mubr.f32.gmra.mrb[0].mxu0 %v871
      %v1298 = vpop.f32.mrb[0].mxu0
      %v1299 = vadd.f32 %v756, %v1298
      %v1300 = vpop.f32.mrb[0].mxu0
      %1301 = vmatprep.mubr.f32.mxu0 0.0
      %1302 = vmatmul.mubr.f32.gmra.mrb[0].mxu0 %v874
      %v1303 = vpop.f32.mrb[0].mxu0
      %v1304 = vadd.f32 %v756, %v1303
      %v1305 = vpop.f32.mrb[0].mxu0
      %1306 = vmatprep.mubr.f32.mxu0 0.0
      %1307 = vmatmul.mubr.f32.gmra.mrb[0].mxu0 %v877
      %v1308 = vpop.f32.mrb[0].mxu0
      %v1309 = vadd.f32 %v756, %v1308
      %v1310 = vpop.f32.mrb[0].mxu0
      %1311 = vmatprep.mubr.f32.mxu0 0.0
      %1312 = vmatmul.mubr.f32.gmra.mrb[0].mxu0 %v880
      %v1313 = vpop.f32.mrb[0].mxu0
      %v1314 = vadd.f32 %v756, %v1313
      %v1315 = vpop.f32.mrb[0].mxu0
      %1316 = vmatprep.mubr.f32.mxu0 0.0
      %1317 = vmatmul.mubr.f32.gmra.mrb[0].mxu0 %v883
      %v1318 = vpop.f32.mrb[0].mxu0
      %v1319 = vadd.f32 %v756, %v1318
      %v1320 = vpop.f32.mrb[0].mxu0
      %1321 = vmatprep.mubr.f32.mxu0 0.0
      %1322 = vmatmul.mubr.f32.gmra.mrb[0].mxu0 %v886
      %v1323 = vpop.f32.mrb[0].mxu0
      %v1324 = vadd.f32 %v756, %v1323
      %v1325 = vpop.f32.mrb[0].mxu0
      %1326 = vmatprep.mubr.f32.mxu0 0.0
      %1327 = vmatmul.mubr.f32.gmra.mrb[0].mxu0 %v889
      %v1328 = vpop.f32.mrb[0].mxu0
      %v1329 = vadd.f32 %v756, %v1328
      %v1330 = vpop.f32.mrb[0].mxu0
      %1331 = vmatprep.mubr.f32.mxu0 0.0
      %1332 = vmatmul.mubr.f32.gmra.mrb[0].mxu0 %v892
      %v1333 = vpop.f32.mrb[0].mxu0
      %v1334 = vadd.f32 %v756, %v1333
      %v1335 = vpop.f32.mrb[0].mxu0
      %1336 = vmatprep.mubr.f32.mxu0 0.0
      %1337 = vmatmul.mubr.f32.gmra.mrb[0].mxu0 %v895
      %v1338 = vpop.f32.mrb[0].mxu0
      %v1339 = vadd.f32 %v756, %v1338
      %v1340 = vpop.f32.mrb[0].mxu0
      %1341 = vmatprep.mubr.f32.mxu0 0.0
      %1342 = vmatmul.mubr.f32.gmra.mrb[0].mxu0 %v898
      %v1343 = vpop.f32.mrb[0].mxu0
      %v1344 = vadd.f32 %v756, %v1343
      %v1345 = vpop.f32.mrb[0].mxu0
      %1346 = vmatprep.mubr.f32.mxu0 0.0
      %1347 = vmatmul.mubr.f32.gmra.mrb[0].mxu0 %v901
      %v1348 = vpop.f32.mrb[0].mxu0
      %v1349 = vadd.f32 %v756, %v1348
      %v1350 = vpop.f32.mrb[0].mxu0
      %1351 = vmatprep.mubr.f32.mxu0 0.0
      %1352 = vmatmul.mubr.f32.gmra.mrb[0].mxu0 %v904
      %v1353 = vpop.f32.mrb[0].mxu0
      %v1354 = vadd.f32 %v756, %v1353
      %v1355 = vpop.f32.mrb[0].mxu0
      %1356 = vmatprep.mubr.f32.mxu0 0.0
      %1357 = vmatmul.mubr.f32.gmra.mrb[0].mxu0 %v907
      %v1358 = vpop.f32.mrb[0].mxu0
      %v1359 = vadd.f32 %v756, %v1358
      %v1360 = vpop.f32.mrb[0].mxu0
      %1361 = vmatprep.mubr.f32.mxu0 0.0
      %1362 = vmatmul.mubr.f32.gmra.mrb[0].mxu0 %v910
      %v1363 = vpop.f32.mrb[0].mxu0
      %v1364 = vadd.f32 %v756, %v1363
      %v1365 = vpop.f32.mrb[0].mxu0
      %1366 = vmatprep.mubr.f32.mxu0 0.0
      %1367 = vmatmul.mubr.f32.gmra.mrb[0].mxu0 %v913
      %v1368 = vpop.f32.mrb[0].mxu0
      %v1369 = vadd.f32 %v756, %v1368
      %v1370 = vpop.f32.mrb[0].mxu0
      %1371 = vmatprep.mubr.f32.mxu0 0.0
      %1372 = vmatmul.mubr.f32.gmra.mrb[0].mxu0 %v916
      %v1373 = vpop.f32.mrb[0].mxu0
      %v1374 = vadd.f32 %v756, %v1373
      %v1375 = vpop.f32.mrb[0].mxu0
      %1376 = vmatprep.mubr.f32.mxu0 0.0
      %1377 = vmatmul.mubr.f32.gmra.mrb[0].mxu0 %v919
      %v1378 = vpop.f32.mrb[0].mxu0
      %v1379 = vadd.f32 %v756, %v1378
      %v1380 = vpop.f32.mrb[0].mxu0
      %1381 = vmatprep.mubr.f32.mxu0 0.0
      %1382 = vmatmul.mubr.f32.gmra.mrb[0].mxu0 %v922
      %v1383 = vpop.f32.mrb[0].mxu0
      %v1384 = vadd.f32 %v756, %v1383
      %v1385 = vpop.f32.mrb[0].mxu0
      %1386 = vmatprep.mubr.f32.mxu0 0.0
      %1387 = vmatmul.mubr.f32.gmra.mrb[0].mxu0 %v925
      %v1388 = vpop.f32.mrb[0].mxu0
      %v1389 = vadd.f32 %v756, %v1388
      %v1390 = vpop.f32.mrb[0].mxu0
      %1391 = vmatprep.mubr.f32.mxu0 0.0
      %1392 = vmatmul.mubr.f32.gmra.mrb[0].mxu0 %v928
      %v1393 = vpop.f32.mrb[0].mxu0
      %v1394 = vadd.f32 %v756, %v1393
      %v1395 = vpop.f32.mrb[0].mxu0
      %1396 = vmatprep.mubr.f32.mxu0 0.0
      %1397 = vmatmul.mubr.f32.gmra.mrb[0].mxu0 %v931
      %v1398 = vpop.f32.mrb[0].mxu0
      %v1399 = vadd.f32 %v756, %v1398
      %v1400 = vpop.f32.mrb[0].mxu0
      %1401 = vmatprep.mubr.f32.mxu0 0.0
      %1402 = vmatmul.mubr.f32.gmra.mrb[0].mxu0 %v934
      %v1403 = vpop.f32.mrb[0].mxu0
      %v1404 = vadd.f32 %v756, %v1403
      %v1405 = vpop.f32.mrb[0].mxu0
      %1406 = vmatprep.mubr.f32.mxu0 0.0
      %1407 = vmatmul.mubr.f32.gmra.mrb[0].mxu0 %v937
      %v1408 = vpop.f32.mrb[0].mxu0
      %v1409 = vadd.f32 %v756, %v1408
      %v1410 = vpop.f32.mrb[0].mxu0
      %1411 = vmatprep.mubr.f32.mxu0 0.0
      %1412 = vmatmul.mubr.f32.gmra.mrb[0].mxu0 %v940
      %v1413 = vpop.f32.mrb[0].mxu0
      %v1414 = vadd.f32 %v756, %v1413
      %v1415 = vpop.f32.mrb[0].mxu0
      %1416 = vmatprep.mubr.f32.mxu0 0.0
      %1417 = vmatmul.mubr.f32.gmra.mrb[0].mxu0 %v943
      %v1418 = vpop.f32.mrb[0].mxu0
      %v1419 = vadd.f32 %v756, %v1418
      %v1420 = vpop.f32.mrb[0].mxu0
      %1421 = vmatprep.mubr.f32.mxu0 0.0
      %1422 = vmatmul.mubr.f32.gmra.mrb[0].mxu0 %v946
      %v1423 = vpop.f32.mrb[0].mxu0
      %v1424 = vadd.f32 %v756, %v1423
      %v1425 = vpop.f32.mrb[0].mxu0
      %1426 = vmatprep.mubr.f32.mxu0 0.0
      %1427 = vmatmul.mubr.f32.gmra.mrb[0].mxu0 %v949
      %v1428 = vpop.f32.mrb[0].mxu0
      %v1429 = vadd.f32 %v756, %v1428
      %v1430 = vpop.f32.mrb[0].mxu0
      %1431 = vmatprep.mubr.f32.mxu0 0.0
      %1432 = vmatmul.mubr.f32.gmra.mrb[0].mxu0 %v952
      %v1433 = vpop.f32.mrb[0].mxu0
      %v1434 = vadd.f32 %v756, %v1433
      %v1435 = vpop.f32.mrb[0].mxu0
      %1436 = vmatprep.mubr.f32.mxu0 0.0
      %1437 = vmatmul.mubr.f32.gmra.mrb[0].mxu0 %v955
      %v1438 = vpop.f32.mrb[0].mxu0
      %v1439 = vadd.f32 %v756, %v1438
      %v1440 = vpop.f32.mrb[0].mxu0
      %1441 = vmatprep.mubr.f32.mxu0 0.0
      %1442 = vmatmul.mubr.f32.gmra.mrb[0].mxu0 %v958
      %v1443 = vpop.f32.mrb[0].mxu0
      %v1444 = vadd.f32 %v756, %v1443
      %v1445 = vpop.f32.mrb[0].mxu0
      %1446 = vmatprep.mubr.f32.mxu0 0.0
      %1447 = vmatmul.mubr.f32.gmra.mrb[0].mxu0 %v961
      %v1448 = vpop.f32.mrb[0].mxu0
      %v1449 = vadd.f32 %v756, %v1448
      %v1450 = vpop.f32.mrb[0].mxu0
      %1451 = vmatprep.mubr.f32.mxu0 0.0
      %1452 = vmatmul.mubr.f32.gmra.mrb[0].mxu0 %v964
      %v1453 = vpop.f32.mrb[0].mxu0
      %v1454 = vadd.f32 %v756, %v1453
      %v1455 = vpop.f32.mrb[0].mxu0
      %1456 = vmatprep.mubr.f32.mxu0 0.0
      %1457 = vmatmul.mubr.f32.gmra.mrb[0].mxu0 %v967
      %v1458 = vpop.f32.mrb[0].mxu0
      %v1459 = vadd.f32 %v756, %v1458
      %v1460 = vpop.f32.mrb[0].mxu0
      %1461 = vmatprep.mubr.f32.mxu0 0.0
      %1462 = vmatmul.mubr.f32.gmra.mrb[0].mxu0 %v970
      %v1463 = vpop.f32.mrb[0].mxu0
      %v1464 = vadd.f32 %v756, %v1463
      %v1465 = vpop.f32.mrb[0].mxu0
      %1466 = vmatprep.mubr.f32.mxu0 0.0
      %1467 = vmatmul.mubr.f32.gmra.mrb[0].mxu0 %v973
      %v1468 = vpop.f32.mrb[0].mxu0
      %v1469 = vadd.f32 %v756, %v1468
      %v1470 = vpop.f32.mrb[0].mxu0
      %1471 = vmatprep.mubr.f32.mxu0 0.0
      %1472 = vmatmul.mubr.f32.gmra.mrb[0].mxu0 %v976
      %v1473 = vpop.f32.mrb[0].mxu0
      %v1474 = vadd.f32 %v756, %v1473
      %v1475 = vpop.f32.mrb[0].mxu0
      %1476 = vmatprep.mubr.f32.mxu0 0.0
      %1477 = vmatmul.mubr.f32.gmra.mrb[0].mxu0 %v979
      %v1478 = vpop.f32.mrb[0].mxu0
      %v1479 = vadd.f32 %v756, %v1478
      %v1480 = vpop.f32.mrb[0].mxu0
      %1481 = vmatprep.mubr.f32.mxu0 0.0
      %1482 = vmatmul.mubr.f32.gmra.mrb[0].mxu0 %v982
      %v1483 = vpop.f32.mrb[0].mxu0
      %v1484 = vadd.f32 %v756, %v1483
      %v1485 = vpop.f32.mrb[0].mxu0
      %1486 = vmatprep.mubr.f32.mxu0 0.0
      %1487 = vmatmul.mubr.f32.gmra.mrb[0].mxu0 %v985
      %v1488 = vpop.f32.mrb[0].mxu0
      %v1489 = vadd.f32 %v756, %v1488
      %v1490 = vpop.f32.mrb[0].mxu0
      %1491 = vmatprep.mubr.f32.mxu0 0.0
      %1492 = vmatmul.mubr.f32.gmra.mrb[0].mxu0 %v988
      %v1493 = vpop.f32.mrb[0].mxu0
      %v1494 = vadd.f32 %v756, %v1493
      %v1495 = vpop.f32.mrb[0].mxu0
      %1496 = vmatprep.mubr.f32.mxu0 0.0
      %1497 = vmatmul.mubr.f32.gmra.mrb[0].mxu0 %v991
      %v1498 = vpop.f32.mrb[0].mxu0
      %v1499 = vadd.f32 %v756, %v1498
      %v1500 = vpop.f32.mrb[0].mxu0
      %1501 = vmatprep.mubr.f32.mxu0 0.0
      %1502 = vmatmul.mubr.f32.gmra.mrb[0].mxu0 %v994
      %v1503 = vpop.f32.mrb[0].mxu0
      %v1504 = vadd.f32 %v756, %v1503
      %v1505 = vpop.f32.mrb[0].mxu0
      %1506 = vmatprep.mubr.f32.mxu0 0.0
      %1507 = vmatmul.mubr.f32.gmra.mrb[0].mxu0 %v997
      %v1508 = vpop.f32.mrb[0].mxu0
      %v1509 = vadd.f32 %v756, %v1508
      %v1510 = vpop.f32.mrb[0].mxu0
      %1511 = vmatprep.mubr.f32.mxu0 0.0
      %1512 = vmatmul.mubr.f32.gmra.mrb[0].mxu0 %v1000
      %v1513 = vpop.f32.mrb[0].mxu0
      %v1514 = vadd.f32 %v756, %v1513
      %v1515 = vpop.f32.mrb[0].mxu0
      %1516 = vmatprep.mubr.f32.mxu0 0.0
      %1517 = vmatmul.mubr.f32.gmra.mrb[0].mxu0 %v1003
      %v1518 = vpop.f32.mrb[0].mxu0
      %v1519 = vadd.f32 %v756, %v1518
      %v1520 = vpop.f32.mrb[0].mxu0
      %1521 = vmatprep.mubr.f32.mxu0 0.0
      %1522 = vmatmul.mubr.f32.gmra.mrb[0].mxu0 %v1006
      %v1523 = vpop.f32.mrb[0].mxu0
      %v1524 = vadd.f32 %v756, %v1523
      %v1525 = vpop.f32.mrb[0].mxu0
      %1526 = vmatprep.mubr.f32.mxu0 0.0
      %1527 = vmatmul.mubr.f32.gmra.mrb[0].mxu0 %v1009
      %v1528 = vpop.f32.mrb[0].mxu0
      %v1529 = vadd.f32 %v756, %v1528
      %v1530 = vpop.f32.mrb[0].mxu0
      %1531 = vmatprep.mubr.f32.mxu0 0.0
      %1532 = vmatmul.mubr.f32.gmra.mrb[0].mxu0 %v1012
      %v1533 = vpop.f32.mrb[0].mxu0
      %v1534 = vadd.f32 %v756, %v1533
      %v1535 = vpop.f32.mrb[0].mxu0
      %1536 = vmatprep.mubr.f32.mxu0 0.0
      %1537 = vmatmul.mubr.f32.gmra.mrb[0].mxu0 %v1015
      %v1538 = vpop.f32.mrb[0].mxu0
      %v1539 = vadd.f32 %v756, %v1538
      %v1540 = vpop.f32.mrb[0].mxu0
      %1541 = vmatprep.mubr.f32.mxu0 0.0
      %1542 = vmatmul.mubr.f32.gmra.mrb[0].mxu0 %v1018
      %v1543 = vpop.f32.mrb[0].mxu0
      %v1544 = vadd.f32 %v756, %v1543
      %v1545 = vpop.f32.mrb[0].mxu0
      %1546 = vmatprep.mubr.f32.mxu0 0.0
      %1547 = vmatmul.mubr.f32.gmra.mrb[0].mxu0 %v1021
      %v1548 = vpop.f32.mrb[0].mxu0
      %v1549 = vadd.f32 %v756, %v1548
      %v1550 = vpop.f32.mrb[0].mxu0
      %1551 = vmatprep.mubr.f32.mxu0 0.0
      %1552 = vmatmul.mubr.f32.gmra.mrb[0].mxu0 %v1024
      %v1553 = vpop.f32.mrb[0].mxu0
      %v1554 = vadd.f32 %v756, %v1553
      %v1555 = vpop.f32.mrb[0].mxu0
      %1556 = vmatprep.mubr.f32.mxu0 0.0
      %1557 = vmatmul.mubr.f32.gmra.mrb[0].mxu0 %v1027
      %v1558 = vpop.f32.mrb[0].mxu0
      %v1559 = vadd.f32 %v756, %v1558
      %v1560 = vpop.f32.mrb[0].mxu0
      %1561 = vmatprep.mubr.f32.mxu0 0.0
      %1562 = vmatmul.mubr.f32.gmra.mrb[0].mxu0 %v1030
      %v1563 = vpop.f32.mrb[0].mxu0
      %v1564 = vadd.f32 %v756, %v1563
      %v1565 = vpop.f32.mrb[0].mxu0
      %1566 = vmatprep.mubr.f32.mxu0 0.0
      %1567 = vmatmul.mubr.f32.gmra.mrb[0].mxu0 %v1033
      %v1568 = vpop.f32.mrb[0].mxu0
      %v1569 = vadd.f32 %v756, %v1568
      %v1570 = vpop.f32.mrb[0].mxu0
      %1571 = vmatprep.mubr.f32.mxu0 0.0
      %1572 = vmatmul.mubr.f32.gmra.mrb[0].mxu0 %v1036
      %v1573 = vpop.f32.mrb[0].mxu0
      %v1574 = vadd.f32 %v756, %v1573
      %v1575 = vpop.f32.mrb[0].mxu0
      %1576 = vmatprep.mubr.f32.mxu0 0.0
      %1577 = vmatmul.mubr.f32.gmra.mrb[0].mxu0 %v1039
      %v1578 = vpop.f32.mrb[0].mxu0
      %v1579 = vadd.f32 %v756, %v1578
      %v1580 = vpop.f32.mrb[0].mxu0
      %1581 = vmatprep.mubr.f32.mxu0 0.0
      %1582 = vmatmul.mubr.f32.gmra.mrb[0].mxu0 %v1042
      %v1583 = vpop.f32.mrb[0].mxu0
      %v1584 = vadd.f32 %v756, %v1583
      %v1585 = vpop.f32.mrb[0].mxu0
      %1586 = vmatprep.mubr.f32.mxu0 0.0
      %1587 = vmatmul.mubr.f32.gmra.mrb[0].mxu0 %v1045
      %v1588 = vpop.f32.mrb[0].mxu0
      %v1589 = vadd.f32 %v756, %v1588
      %v1590 = vpop.f32.mrb[0].mxu0
      %1591 = vdwg.mxu0
      %v1592 = vmax.f32 %v1114, 0.0
      %v1593 = vmax.f32 %v1119, 0.0
      %v1594 = vmax.f32 %v1124, 0.0
      %v1595 = vmax.f32 %v1129, 0.0
      %v1596 = vmax.f32 %v1134, 0.0
      %v1597 = vmax.f32 %v1139, 0.0
      %v1598 = vmax.f32 %v1144, 0.0
      %v1599 = vmax.f32 %v1149, 0.0
      %v1600 = vmax.f32 %v1154, 0.0
      %v1601 = vmax.f32 %v1159, 0.0
      %v1602 = vmax.f32 %v1164, 0.0
      %v1603 = vmax.f32 %v1169, 0.0
      %v1604 = vmax.f32 %v1174, 0.0
      %v1605 = vmax.f32 %v1179, 0.0
      %v1606 = vmax.f32 %v1184, 0.0
      %v1607 = vmax.f32 %v1189, 0.0
      %v1608 = vmax.f32 %v1194, 0.0
      %v1609 = vmax.f32 %v1199, 0.0
      %v1610 = vmax.f32 %v1204, 0.0
      %v1611 = vmax.f32 %v1209, 0.0
      %v1612 = vmax.f32 %v1214, 0.0
      %v1613 = vmax.f32 %v1219, 0.0
      %v1614 = vmax.f32 %v1224, 0.0
      %v1615 = vmax.f32 %v1229, 0.0
      %v1616 = vmax.f32 %v1234, 0.0
      %v1617 = vmax.f32 %v1239, 0.0
      %v1618 = vmax.f32 %v1244, 0.0
      %v1619 = vmax.f32 %v1249, 0.0
      %v1620 = vmax.f32 %v1254, 0.0
      %v1621 = vmax.f32 %v1259, 0.0
      %v1622 = vmax.f32 %v1264, 0.0
      %v1623 = vmax.f32 %v1269, 0.0
      %v1624 = vmax.f32 %v1274, 0.0
      %v1625 = vmax.f32 %v1279, 0.0
      %v1626 = vmax.f32 %v1284, 0.0
      %v1627 = vmax.f32 %v1289, 0.0
      %v1628 = vmax.f32 %v1294, 0.0
      %v1629 = vmax.f32 %v1299, 0.0
      %v1630 = vmax.f32 %v1304, 0.0
      %v1631 = vmax.f32 %v1309, 0.0
      %v1632 = vmax.f32 %v1314, 0.0
      %v1633 = vmax.f32 %v1319, 0.0
      %v1634 = vmax.f32 %v1324, 0.0
      %v1635 = vmax.f32 %v1329, 0.0
      %v1636 = vmax.f32 %v1334, 0.0
      %v1637 = vmax.f32 %v1339, 0.0
      %v1638 = vmax.f32 %v1344, 0.0
      %v1639 = vmax.f32 %v1349, 0.0
      %v1640 = vmax.f32 %v1354, 0.0
      %v1641 = vmax.f32 %v1359, 0.0
      %v1642 = vmax.f32 %v1364, 0.0
      %v1643 = vmax.f32 %v1369, 0.0
      %v1644 = vmax.f32 %v1374, 0.0
      %v1645 = vmax.f32 %v1379, 0.0
      %v1646 = vmax.f32 %v1384, 0.0
      %v1647 = vmax.f32 %v1389, 0.0
      %v1648 = vmax.f32 %v1394, 0.0
      %v1649 = vmax.f32 %v1399, 0.0
      %v1650 = vmax.f32 %v1404, 0.0
      %v1651 = vmax.f32 %v1409, 0.0
      %v1652 = vmax.f32 %v1414, 0.0
      %v1653 = vmax.f32 %v1419, 0.0
      %v1654 = vmax.f32 %v1424, 0.0
      %v1655 = vmax.f32 %v1429, 0.0
      %v1656 = vmax.f32 %v1434, 0.0
      %v1657 = vmax.f32 %v1439, 0.0
      %v1658 = vmax.f32 %v1444, 0.0
      %v1659 = vmax.f32 %v1449, 0.0
      %v1660 = vmax.f32 %v1454, 0.0
      %v1661 = vmax.f32 %v1459, 0.0
      %v1662 = vmax.f32 %v1464, 0.0
      %v1663 = vmax.f32 %v1469, 0.0
      %v1664 = vmax.f32 %v1474, 0.0
      %v1665 = vmax.f32 %v1479, 0.0
      %v1666 = vmax.f32 %v1484, 0.0
      %v1667 = vmax.f32 %v1489, 0.0
      %v1668 = vmax.f32 %v1494, 0.0
      %v1669 = vmax.f32 %v1499, 0.0
      %v1670 = vmax.f32 %v1504, 0.0
      %v1671 = vmax.f32 %v1509, 0.0
      %v1672 = vmax.f32 %v1514, 0.0
      %v1673 = vmax.f32 %v1519, 0.0
      %v1674 = vmax.f32 %v1524, 0.0
      %v1675 = vmax.f32 %v1529, 0.0
      %v1676 = vmax.f32 %v1534, 0.0
      %v1677 = vmax.f32 %v1539, 0.0
      %v1678 = vmax.f32 %v1544, 0.0
      %v1679 = vmax.f32 %v1549, 0.0
      %v1680 = vmax.f32 %v1554, 0.0
      %v1681 = vmax.f32 %v1559, 0.0
      %v1682 = vmax.f32 %v1564, 0.0
      %v1683 = vmax.f32 %v1569, 0.0
      %v1684 = vmax.f32 %v1574, 0.0
      %v1685 = vmax.f32 %v1579, 0.0
      %v1686 = vmax.f32 %v1584, 0.0
      %v1687 = vmax.f32 %v1589, 0.0
      %v1688 = vld [vmem:[%s5] sm:$0xff]
      %v1689 = vld [vmem:[%s5 + $0x8] sm:$0xf]
      %v1692 = vcombine.high %v1688, %v1688
      %v1694 = vunpack.c.l.s4 1966171168
      %v1695 = vunpack.c.0.s8 %v1694
      %v1696 = vlaneseq
      %v1697 = vshrl.u32 %v1696, 7
      %v1698 = vsub.s32 %v1695, %v1697
      %v1699 = vrot.slane %v1688, %v1698
      %v1701 = vunpack.c.l.s4 1966171168
      %v1702 = vunpack.c.0.s8 %v1701
      %v1703 = vlaneseq
      %v1704 = vshrl.u32 %v1703, 7
      %v1705 = vsub.s32 %v1702, %v1704
      %v1706 = vrot.slane %v1692, %v1705
      %v1707 = vcombine.high %v1699, %v1699
      %v1708 = vcombine.high %v1706, %v1706
      %v1710 = vunpack.c.l.s4 1966171168
      %v1711 = vunpack.c.0.s8 %v1710
      %v1712 = vlaneseq
      %v1713 = vshrl.u32 %v1712, 7
      %v1714 = vsub.s32 %v1711, %v1713
      %v1715 = vrot.slane %v1699, %v1714
      %v1717 = vunpack.c.l.s4 1966171168
      %v1718 = vunpack.c.0.s8 %v1717
      %v1719 = vlaneseq
      %v1720 = vshrl.u32 %v1719, 7
      %v1721 = vsub.s32 %v1718, %v1720
      %v1722 = vrot.slane %v1706, %v1721
      %v1724 = vunpack.c.l.s4 1966171168
      %v1725 = vunpack.c.0.s8 %v1724
      %v1726 = vlaneseq
      %v1727 = vshrl.u32 %v1726, 7
      %v1728 = vsub.s32 %v1725, %v1727
      %v1729 = vrot.slane %v1707, %v1728
      %v1731 = vunpack.c.l.s4 1966171168
      %v1732 = vunpack.c.0.s8 %v1731
      %v1733 = vlaneseq
      %v1734 = vshrl.u32 %v1733, 7
      %v1735 = vsub.s32 %v1732, %v1734
      %v1736 = vrot.slane %v1708, %v1735
      %v1737 = vcombine.high %v1715, %v1715
      %v1738 = vcombine.high %v1722, %v1722
      %v1739 = vcombine.high %v1729, %v1729
      %v1740 = vcombine.high %v1736, %v1736
      %v1742 = vunpack.c.l.s4 1966171168
      %v1743 = vunpack.c.0.s8 %v1742
      %v1744 = vlaneseq
      %v1745 = vshrl.u32 %v1744, 7
      %v1746 = vsub.s32 %v1743, %v1745
      %v1747 = vrot.slane %v1689, %v1746
      %v1748 = vcombine.high %v1747, %v1747
      %v1750 = vunpack.c.l.s4 1966171168
      %v1751 = vunpack.c.0.s8 %v1750
      %v1752 = vlaneseq
      %v1753 = vshrl.u32 %v1752, 7
      %v1754 = vsub.s32 %v1751, %v1753
      %v1755 = vrot.slane %v1747, %v1754
      %v1757 = vunpack.c.l.s4 1966171168
      %v1758 = vunpack.c.0.s8 %v1757
      %v1759 = vlaneseq
      %v1760 = vshrl.u32 %v1759, 7
      %v1761 = vsub.s32 %v1758, %v1760
      %v1762 = vrot.slane %v1748, %v1761
      %v1763 = vcombine.high %v1755, %v1755
      %v1764 = vcombine.high %v1762, %v1762
      %v1765 = vlaneseq
      %v1766 = vshrl.u32 %v1765, 7
      %v1767 = vsub.s32 0, %v1766
      %v1768 = vrot.slane %v1715, %v1767
      %v1769 = vlaneseq
      %v1770 = vshrl.u32 %v1769, 7
      %v1771 = vsub.s32 0, %v1770
      %v1772 = vrot.slane %v1729, %v1771
      %v1773 = vlaneseq
      %v1774 = vshrl.u32 %v1773, 7
      %v1775 = vsub.s32 0, %v1774
      %v1776 = vrot.slane %v1737, %v1775
      %v1777 = vlaneseq
      %v1778 = vshrl.u32 %v1777, 7
      %v1779 = vsub.s32 0, %v1778
      %v1780 = vrot.slane %v1739, %v1779
      %v1781 = vlaneseq
      %v1782 = vshrl.u32 %v1781, 7
      %v1783 = vsub.s32 0, %v1782
      %v1784 = vrot.slane %v1722, %v1783
      %v1785 = vlaneseq
      %v1786 = vshrl.u32 %v1785, 7
      %v1787 = vsub.s32 0, %v1786
      %v1788 = vrot.slane %v1736, %v1787
      %v1789 = vlaneseq
      %v1790 = vshrl.u32 %v1789, 7
      %v1791 = vsub.s32 0, %v1790
      %v1792 = vrot.slane %v1738, %v1791
      %v1793 = vlaneseq
      %v1794 = vshrl.u32 %v1793, 7
      %v1795 = vsub.s32 0, %v1794
      %v1796 = vrot.slane %v1740, %v1795
      %v1797 = vlaneseq
      %v1798 = vshrl.u32 %v1797, 7
      %v1799 = vsub.s32 0, %v1798
      %v1800 = vrot.slane %v1755, %v1799
      %v1801 = vlaneseq
      %v1802 = vshrl.u32 %v1801, 7
      %v1803 = vsub.s32 0, %v1802
      %v1804 = vrot.slane %v1762, %v1803
      %v1805 = vlaneseq
      %v1806 = vshrl.u32 %v1805, 7
      %v1807 = vsub.s32 0, %v1806
      %v1808 = vrot.slane %v1763, %v1807
      %v1809 = vlaneseq
      %v1810 = vshrl.u32 %v1809, 7
      %v1811 = vsub.s32 0, %v1810
      %v1812 = vrot.slane %v1764, %v1811
      %v1825 = vmul.f32 %v1592, %v1768
      %v1826 = vmul.f32 %v1593, %v1768
      %v1827 = vmul.f32 %v1594, %v1768
      %v1828 = vmul.f32 %v1595, %v1768
      %v1829 = vmul.f32 %v1596, %v1768
      %v1830 = vmul.f32 %v1597, %v1768
      %v1831 = vmul.f32 %v1598, %v1768
      %v1832 = vmul.f32 %v1599, %v1768
      %v1833 = vmul.f32 %v1600, %v1772
      %v1834 = vmul.f32 %v1601, %v1772
      %v1835 = vmul.f32 %v1602, %v1772
      %v1836 = vmul.f32 %v1603, %v1772
      %v1837 = vmul.f32 %v1604, %v1772
      %v1838 = vmul.f32 %v1605, %v1772
      %v1839 = vmul.f32 %v1606, %v1772
      %v1840 = vmul.f32 %v1607, %v1772
      %v1841 = vmul.f32 %v1608, %v1776
      %v1842 = vmul.f32 %v1609, %v1776
      %v1843 = vmul.f32 %v1610, %v1776
      %v1844 = vmul.f32 %v1611, %v1776
      %v1845 = vmul.f32 %v1612, %v1776
      %v1846 = vmul.f32 %v1613, %v1776
      %v1847 = vmul.f32 %v1614, %v1776
      %v1848 = vmul.f32 %v1615, %v1776
      %v1849 = vmul.f32 %v1616, %v1780
      %v1850 = vmul.f32 %v1617, %v1780
      %v1851 = vmul.f32 %v1618, %v1780
      %v1852 = vmul.f32 %v1619, %v1780
      %v1853 = vmul.f32 %v1620, %v1780
      %v1854 = vmul.f32 %v1621, %v1780
      %v1855 = vmul.f32 %v1622, %v1780
      %v1856 = vmul.f32 %v1623, %v1780
      %v1857 = vmul.f32 %v1624, %v1784
      %v1858 = vmul.f32 %v1625, %v1784
      %v1859 = vmul.f32 %v1626, %v1784
      %v1860 = vmul.f32 %v1627, %v1784
      %v1861 = vmul.f32 %v1628, %v1784
      %v1862 = vmul.f32 %v1629, %v1784
      %v1863 = vmul.f32 %v1630, %v1784
      %v1864 = vmul.f32 %v1631, %v1784
      %v1865 = vmul.f32 %v1632, %v1788
      %v1866 = vmul.f32 %v1633, %v1788
      %v1867 = vmul.f32 %v1634, %v1788
      %v1868 = vmul.f32 %v1635, %v1788
      %v1869 = vmul.f32 %v1636, %v1788
      %v1870 = vmul.f32 %v1637, %v1788
      %v1871 = vmul.f32 %v1638, %v1788
      %v1872 = vmul.f32 %v1639, %v1788
      %v1873 = vmul.f32 %v1640, %v1792
      %v1874 = vmul.f32 %v1641, %v1792
      %v1875 = vmul.f32 %v1642, %v1792
      %v1876 = vmul.f32 %v1643, %v1792
      %v1877 = vmul.f32 %v1644, %v1792
      %v1878 = vmul.f32 %v1645, %v1792
      %v1879 = vmul.f32 %v1646, %v1792
      %v1880 = vmul.f32 %v1647, %v1792
      %v1881 = vmul.f32 %v1648, %v1796
      %v1882 = vmul.f32 %v1649, %v1796
      %v1883 = vmul.f32 %v1650, %v1796
      %v1884 = vmul.f32 %v1651, %v1796
      %v1885 = vmul.f32 %v1652, %v1796
      %v1886 = vmul.f32 %v1653, %v1796
      %v1887 = vmul.f32 %v1654, %v1796
      %v1888 = vmul.f32 %v1655, %v1796
      %v1889 = vmul.f32 %v1656, %v1800
      %v1890 = vmul.f32 %v1657, %v1800
      %v1891 = vmul.f32 %v1658, %v1800
      %v1892 = vmul.f32 %v1659, %v1800
      %v1893 = vmul.f32 %v1660, %v1800
      %v1894 = vmul.f32 %v1661, %v1800
      %v1895 = vmul.f32 %v1662, %v1800
      %v1896 = vmul.f32 %v1663, %v1800
      %v1897 = vmul.f32 %v1664, %v1804
      %v1898 = vmul.f32 %v1665, %v1804
      %v1899 = vmul.f32 %v1666, %v1804
      %v1900 = vmul.f32 %v1667, %v1804
      %v1901 = vmul.f32 %v1668, %v1804
      %v1902 = vmul.f32 %v1669, %v1804
      %v1903 = vmul.f32 %v1670, %v1804
      %v1904 = vmul.f32 %v1671, %v1804
      %v1905 = vmul.f32 %v1672, %v1808
      %v1906 = vmul.f32 %v1673, %v1808
      %v1907 = vmul.f32 %v1674, %v1808
      %v1908 = vmul.f32 %v1675, %v1808
      %v1909 = vmul.f32 %v1676, %v1808
      %v1910 = vmul.f32 %v1677, %v1808
      %v1911 = vmul.f32 %v1678, %v1808
      %v1912 = vmul.f32 %v1679, %v1808
      %v1913 = vmul.f32 %v1680, %v1812
      %v1914 = vmul.f32 %v1681, %v1812
      %v1915 = vmul.f32 %v1682, %v1812
      %v1916 = vmul.f32 %v1683, %v1812
      %v1917 = vmul.f32 %v1684, %v1812
      %v1918 = vmul.f32 %v1685, %v1812
      %v1919 = vmul.f32 %v1686, %v1812
      %v1920 = vmul.f32 %v1687, %v1812
      %v1921 = vsel %vm758, %v1825, 0.0
      %v1922 = vsel %vm758, %v1833, 0.0
      %v1923 = vadd.f32 %v1921, %v1922
      %v1924 = vsel %vm758, %v1841, 0.0
      %v1925 = vadd.f32 %v1923, %v1924
      %v1926 = vsel %vm758, %v1849, 0.0
      %v1927 = vadd.f32 %v1925, %v1926
      %v1928 = vsel %vm758, %v1857, 0.0
      %v1929 = vadd.f32 %v1927, %v1928
      %v1930 = vsel %vm758, %v1865, 0.0
      %v1931 = vadd.f32 %v1929, %v1930
      %v1932 = vsel %vm758, %v1873, 0.0
      %v1933 = vadd.f32 %v1931, %v1932
      %v1934 = vsel %vm758, %v1881, 0.0
      %v1935 = vadd.f32 %v1933, %v1934
      %v1936 = vsel %vm758, %v1889, 0.0
      %v1937 = vadd.f32 %v1935, %v1936
      %v1938 = vsel %vm758, %v1897, 0.0
      %v1939 = vadd.f32 %v1937, %v1938
      %v1940 = vsel %vm758, %v1905, 0.0
      %v1941 = vadd.f32 %v1939, %v1940
      %v1942 = vsel %vm758, %v1913, 0.0
      %v1943 = vadd.f32 %v1941, %v1942
      %v1944 = vsel %vm758, %v1826, 0.0
      %v1945 = vsel %vm758, %v1834, 0.0
      %v1946 = vadd.f32 %v1944, %v1945
      %v1947 = vsel %vm758, %v1842, 0.0
      %v1948 = vadd.f32 %v1946, %v1947
      %v1949 = vsel %vm758, %v1850, 0.0
      %v1950 = vadd.f32 %v1948, %v1949
      %v1951 = vsel %vm758, %v1858, 0.0
      %v1952 = vadd.f32 %v1950, %v1951
      %v1953 = vsel %vm758, %v1866, 0.0
      %v1954 = vadd.f32 %v1952, %v1953
      %v1955 = vsel %vm758, %v1874, 0.0
      %v1956 = vadd.f32 %v1954, %v1955
      %v1957 = vsel %vm758, %v1882, 0.0
      %v1958 = vadd.f32 %v1956, %v1957
      %v1959 = vsel %vm758, %v1890, 0.0
      %v1960 = vadd.f32 %v1958, %v1959
      %v1961 = vsel %vm758, %v1898, 0.0
      %v1962 = vadd.f32 %v1960, %v1961
      %v1963 = vsel %vm758, %v1906, 0.0
      %v1964 = vadd.f32 %v1962, %v1963
      %v1965 = vsel %vm758, %v1914, 0.0
      %v1966 = vadd.f32 %v1964, %v1965
      %v1967 = vsel %vm758, %v1827, 0.0
      %v1968 = vsel %vm758, %v1835, 0.0
      %v1969 = vadd.f32 %v1967, %v1968
      %v1970 = vsel %vm758, %v1843, 0.0
      %v1971 = vadd.f32 %v1969, %v1970
      %v1972 = vsel %vm758, %v1851, 0.0
      %v1973 = vadd.f32 %v1971, %v1972
      %v1974 = vsel %vm758, %v1859, 0.0
      %v1975 = vadd.f32 %v1973, %v1974
      %v1976 = vsel %vm758, %v1867, 0.0
      %v1977 = vadd.f32 %v1975, %v1976
      %v1978 = vsel %vm758, %v1875, 0.0
      %v1979 = vadd.f32 %v1977, %v1978
      %v1980 = vsel %vm758, %v1883, 0.0
      %v1981 = vadd.f32 %v1979, %v1980
      %v1982 = vsel %vm758, %v1891, 0.0
      %v1983 = vadd.f32 %v1981, %v1982
      %v1984 = vsel %vm758, %v1899, 0.0
      %v1985 = vadd.f32 %v1983, %v1984
      %v1986 = vsel %vm758, %v1907, 0.0
      %v1987 = vadd.f32 %v1985, %v1986
      %v1988 = vsel %vm758, %v1915, 0.0
      %v1989 = vadd.f32 %v1987, %v1988
      %v1990 = vsel %vm758, %v1828, 0.0
      %v1991 = vsel %vm758, %v1836, 0.0
      %v1992 = vadd.f32 %v1990, %v1991
      %v1993 = vsel %vm758, %v1844, 0.0
      %v1994 = vadd.f32 %v1992, %v1993
      %v1995 = vsel %vm758, %v1852, 0.0
      %v1996 = vadd.f32 %v1994, %v1995
      %v1997 = vsel %vm758, %v1860, 0.0
      %v1998 = vadd.f32 %v1996, %v1997
      %v1999 = vsel %vm758, %v1868, 0.0
      %v2000 = vadd.f32 %v1998, %v1999
      %v2001 = vsel %vm758, %v1876, 0.0
      %v2002 = vadd.f32 %v2000, %v2001
      %v2003 = vsel %vm758, %v1884, 0.0
      %v2004 = vadd.f32 %v2002, %v2003
      %v2005 = vsel %vm758, %v1892, 0.0
      %v2006 = vadd.f32 %v2004, %v2005
      %v2007 = vsel %vm758, %v1900, 0.0
      %v2008 = vadd.f32 %v2006, %v2007
      %v2009 = vsel %vm758, %v1908, 0.0
      %v2010 = vadd.f32 %v2008, %v2009
      %v2011 = vsel %vm758, %v1916, 0.0
      %v2012 = vadd.f32 %v2010, %v2011
      %v2013 = vsel %vm758, %v1829, 0.0
      %v2014 = vsel %vm758, %v1837, 0.0
      %v2015 = vadd.f32 %v2013, %v2014
      %v2016 = vsel %vm758, %v1845, 0.0
      %v2017 = vadd.f32 %v2015, %v2016
      %v2018 = vsel %vm758, %v1853, 0.0
      %v2019 = vadd.f32 %v2017, %v2018
      %v2020 = vsel %vm758, %v1861, 0.0
      %v2021 = vadd.f32 %v2019, %v2020
      %v2022 = vsel %vm758, %v1869, 0.0
      %v2023 = vadd.f32 %v2021, %v2022
      %v2024 = vsel %vm758, %v1877, 0.0
      %v2025 = vadd.f32 %v2023, %v2024
      %v2026 = vsel %vm758, %v1885, 0.0
      %v2027 = vadd.f32 %v2025, %v2026
      %v2028 = vsel %vm758, %v1893, 0.0
      %v2029 = vadd.f32 %v2027, %v2028
      %v2030 = vsel %vm758, %v1901, 0.0
      %v2031 = vadd.f32 %v2029, %v2030
      %v2032 = vsel %vm758, %v1909, 0.0
      %v2033 = vadd.f32 %v2031, %v2032
      %v2034 = vsel %vm758, %v1917, 0.0
      %v2035 = vadd.f32 %v2033, %v2034
      %v2036 = vsel %vm758, %v1830, 0.0
      %v2037 = vsel %vm758, %v1838, 0.0
      %v2038 = vadd.f32 %v2036, %v2037
      %v2039 = vsel %vm758, %v1846, 0.0
      %v2040 = vadd.f32 %v2038, %v2039
      %v2041 = vsel %vm758, %v1854, 0.0
      %v2042 = vadd.f32 %v2040, %v2041
      %v2043 = vsel %vm758, %v1862, 0.0
      %v2044 = vadd.f32 %v2042, %v2043
      %v2045 = vsel %vm758, %v1870, 0.0
      %v2046 = vadd.f32 %v2044, %v2045
      %v2047 = vsel %vm758, %v1878, 0.0
      %v2048 = vadd.f32 %v2046, %v2047
      %v2049 = vsel %vm758, %v1886, 0.0
      %v2050 = vadd.f32 %v2048, %v2049
      %v2051 = vsel %vm758, %v1894, 0.0
      %v2052 = vadd.f32 %v2050, %v2051
      %v2053 = vsel %vm758, %v1902, 0.0
      %v2054 = vadd.f32 %v2052, %v2053
      %v2055 = vsel %vm758, %v1910, 0.0
      %v2056 = vadd.f32 %v2054, %v2055
      %v2057 = vsel %vm758, %v1918, 0.0
      %v2058 = vadd.f32 %v2056, %v2057
      %v2059 = vsel %vm758, %v1831, 0.0
      %v2060 = vsel %vm758, %v1839, 0.0
      %v2061 = vadd.f32 %v2059, %v2060
      %v2062 = vsel %vm758, %v1847, 0.0
      %v2063 = vadd.f32 %v2061, %v2062
      %v2064 = vsel %vm758, %v1855, 0.0
      %v2065 = vadd.f32 %v2063, %v2064
      %v2066 = vsel %vm758, %v1863, 0.0
      %v2067 = vadd.f32 %v2065, %v2066
      %v2068 = vsel %vm758, %v1871, 0.0
      %v2069 = vadd.f32 %v2067, %v2068
      %v2070 = vsel %vm758, %v1879, 0.0
      %v2071 = vadd.f32 %v2069, %v2070
      %v2072 = vsel %vm758, %v1887, 0.0
      %v2073 = vadd.f32 %v2071, %v2072
      %v2074 = vsel %vm758, %v1895, 0.0
      %v2075 = vadd.f32 %v2073, %v2074
      %v2076 = vsel %vm758, %v1903, 0.0
      %v2077 = vadd.f32 %v2075, %v2076
      %v2078 = vsel %vm758, %v1911, 0.0
      %v2079 = vadd.f32 %v2077, %v2078
      %v2080 = vsel %vm758, %v1919, 0.0
      %v2081 = vadd.f32 %v2079, %v2080
      %v2082 = vsel %vm758, %v1832, 0.0
      %v2083 = vsel %vm758, %v1840, 0.0
      %v2084 = vadd.f32 %v2082, %v2083
      %v2085 = vsel %vm758, %v1848, 0.0
      %v2086 = vadd.f32 %v2084, %v2085
      %v2087 = vsel %vm758, %v1856, 0.0
      %v2088 = vadd.f32 %v2086, %v2087
      %v2089 = vsel %vm758, %v1864, 0.0
      %v2090 = vadd.f32 %v2088, %v2089
      %v2091 = vsel %vm758, %v1872, 0.0
      %v2092 = vadd.f32 %v2090, %v2091
      %v2093 = vsel %vm758, %v1880, 0.0
      %v2094 = vadd.f32 %v2092, %v2093
      %v2095 = vsel %vm758, %v1888, 0.0
      %v2096 = vadd.f32 %v2094, %v2095
      %v2097 = vsel %vm758, %v1896, 0.0
      %v2098 = vadd.f32 %v2096, %v2097
      %v2099 = vsel %vm758, %v1904, 0.0
      %v2100 = vadd.f32 %v2098, %v2099
      %v2101 = vsel %vm758, %v1912, 0.0
      %v2102 = vadd.f32 %v2100, %v2101
      %v2103 = vsel %vm758, %v1920, 0.0
      %v2104 = vadd.f32 %v2102, %v2103
      %2105 = vset.pattern.permute.xlu0 3
      %2106 = vperm.xlu0 %2105, %v255
      %v2107 = vpop.permute.xlu0 %2106
      %2109 = vset.pattern.permute.xlu0 3
      %2110 = vperm.xlu0 %2109, %v256
      %v2111 = vpop.permute.xlu0 %2110
      %2113 = vset.pattern.permute.xlu0 3
      %2114 = vperm.xlu0 %2113, %v257
      %v2115 = vpop.permute.xlu0 %2114
      %2117 = vset.pattern.permute.xlu0 3
      %2118 = vperm.xlu0 %2117, %v258
      %v2119 = vpop.permute.xlu0 %2118
      %2121 = vset.pattern.permute.xlu0 3
      %2122 = vperm.xlu0 %2121, %v259
      %v2123 = vpop.permute.xlu0 %2122
      %2125 = vset.pattern.permute.xlu0 3
      %2126 = vperm.xlu0 %2125, %v260
      %v2127 = vpop.permute.xlu0 %2126
      %2129 = vset.pattern.permute.xlu0 3
      %2130 = vperm.xlu0 %2129, %v261
      %v2131 = vpop.permute.xlu0 %2130
      %2133 = vset.pattern.permute.xlu0 3
      %2134 = vperm.xlu0 %2133, %v262
      %v2135 = vpop.permute.xlu0 %2134
      %v2137 = vmul.f32 %v1943, %v2107
      %v2138 = vmul.f32 %v1966, %v2111
      %v2139 = vmul.f32 %v1989, %v2115
      %v2140 = vmul.f32 %v2012, %v2119
      %v2141 = vmul.f32 %v2035, %v2123
      %v2142 = vmul.f32 %v2058, %v2127
      %v2143 = vmul.f32 %v2081, %v2131
      %v2144 = vmul.f32 %v2104, %v2135
      %2145 = vst.msk [vmem:[%s253] sm:$0xff] %vm758, %v2137
      %2146 = vst.msk [vmem:[%s253 + $0x8] sm:$0xff] %vm758, %v2138
      %2147 = vst.msk [vmem:[%s253 + $0x10] sm:$0xff] %vm758, %v2139
      %2148 = vst.msk [vmem:[%s253 + $0x18] sm:$0xff] %vm758, %v2140
      %2149 = vst.msk [vmem:[%s253 + $0x20] sm:$0xff] %vm758, %v2141
      %2150 = vst.msk [vmem:[%s253 + $0x28] sm:$0xff] %vm758, %v2142
      %2151 = vst.msk [vmem:[%s253 + $0x30] sm:$0xff] %vm758, %v2143
      %2152 = vst.msk [vmem:[%s253 + $0x38] sm:$0xff] %vm758, %v2144
      %s2153 = smul.u32 8, %s17
      %p2154 = scmp.lt.s32.totalorder %s2153, 15
      %s2155 = scalar_select %p2154, %s2153, 15
      %s2156 = smul.addr %s2155, 8
      %s2157 = scalar_lea.vmem %s6, %s2156
      // Predicated region
      $region45: #{fpac_forward.2} parent=43 // pred_check
        %p2158 = pneg %p166
      $region46: #{fpac_forward.2} parent=43 // pred_check_branch
        %2160 = sbr.rel (%p2158) target = $region48
      $region47: #{fpac_forward.2} parent=43 // pred_region
        %s2161 = smul.u32 8, %s17
      $region48: #{fpac_forward.2} parent=43 // pred_fallthru
        _
    $region44: #{fpac_forward.2} parent=5 // pred_fallthru
      _
    %p2162 = scmp.le.s32.totalorder 2, %s12
    // Predicated region
    $region49: #{fpac_forward.2} parent=5 // pred_check
      %p2163 = pneg %p2162
    $region50: #{fpac_forward.2} parent=5 // pred_check_branch
      %2165 = sbr.rel (%p2163) target = $region52
    $region51: #{fpac_forward.2} parent=5 // pred_region
      %s2166 = ssub.s32 %s12, 2
      // Predicated region
      $region53: #{fpac_forward.2} parent=51 // pred_check
        %p2167 = pneg %p172
      $region54: #{fpac_forward.2} parent=51 // pred_check_branch
        %2169 = sbr.rel (%p2167) target = $region56
      $region55: #{fpac_forward.2} parent=51 // pred_region
        %s2170 = smul.u32 8, %s18
        %p2171 = scmp.lt.s32.totalorder %s2170, 15
        %s2172 = scalar_select %p2171, %s2170, 15
        %s2173 = smul.addr %s2172, 8
        %s2174 = scalar_lea.vmem %s6, %s2173
      $region56: #{fpac_forward.2} parent=51 // pred_fallthru
        _
    $region52: #{fpac_forward.2} parent=5 // pred_fallthru
      _
  $region6: #{fpac_forward.2} parent=0 // loop_footer
    %s16 = sadd.s32 1, %s12
  $region7: #{fpac_forward.2} parent=0 // loop_footer_branch
    %11 = sbr.rel target = $region3
  $region8: #{fpac_forward.2} parent=0 // loop_exit
    _

// kernel: fpac_forward.3
$region0: #{fpac_forward.3}
  #allocation0 [shape = 'u32[]', space=smem, size = 0x4, offset = 0x4, fixed_abs, tag = 'smem constant byte address 0x4 - core index']
  #allocation1 [shape = 'u32[144,128]{1,0:T(1,128)}', space=vmem, size = 0x12000, scoped, tag = 'internal scratch']
  %s0 = inlined_call_operand.vmem [shape: f32[16,8,7], index: 0, kind: input, shape index: {}]
  %s1 = inlined_call_operand.vmem [shape: f32[16,8,16], index: 1, kind: input, shape index: {}]
  %s2 = inlined_call_operand.vmem [shape: f32[7,16,64], index: 2, kind: input, shape index: {}]
  %s3 = inlined_call_operand.vmem [shape: f32[1,64], index: 3, kind: input, shape index: {}]
  %s4 = inlined_call_operand.vmem [shape: f32[64,8], index: 4, kind: input, shape index: {}]
  %s5 = inlined_call_operand.vmem [shape: f32[1,8], index: 5, kind: input, shape index: {}]
  %s6 = inlined_call_operand.vmem [shape: f32[16,8], index: 6, kind: output, shape index: {}]
  %s7 = sld [smem:[#allocation0]]
  $region57: #{fpac_forward.3} parent=0
    _
  %s9 = ssub.s32 1, %s7
  %s10 = scalar_select 0, %s9, %s7
  loop: start=0, step=1, limit=4
  $region2: #{fpac_forward.3} parent=0 // loop_pre_header
    _
  $region3: #{fpac_forward.3} parent=0 // loop_header
    %s12 = sphi 0, %s16
    %p13 = scmp.ge.s32.totalorder %s12, 4
    %s22 = sphi 0, %s24
    %s25 = sphi 0, %s22
    %s26 = sphi 0, %s25
    %s42 = sphi 0, %s26
    %s48 = sphi 0, %s50
    %s51 = sphi 0, %s48
    %s52 = sphi 0, %s51
    %s68 = sphi 0, %s52
    %s72 = sphi 0, %s72
    %s74 = sphi 0, %s72
    %s75 = sphi 0, %s74
    %s89 = sphi 0, %s75
    %s93 = sphi 0, %s93
    %s95 = sphi 0, %s93
    %s96 = sphi 0, %s95
    %s110 = sphi 0, %s96
    %s114 = sphi 0, %s114
    %s116 = sphi 0, %s114
    %s117 = sphi 0, %s116
    %s131 = sphi 0, %s117
    %s135 = sphi 0, %s135
    %s137 = sphi 0, %s135
    %s138 = sphi 0, %s137
    %s152 = sphi 0, %s138
    %s158 = sphi 0, %s160
    %s161 = sphi 0, %s158
    %s162 = sphi 0, %s161
    %s178 = sphi 0, %s162
  $region4: #{fpac_forward.3} parent=0 // loop_header_branch
    %15 = sbr.rel (%p13) target = $region8
  $region5: #{fpac_forward.3} parent=0 // loop_body
    %s17 = ssub.s32 %s12, 1
    %s18 = ssub.s32 %s12, 2
    %s19 = sadd.s32 %s12, 1
    %s20 = ssub.s32 %s12, %s19
    %p21 = scmp.eq.s32.totalorder %s20, 0
    %s23 = sadd.s32 %s22, 1
    %s24 = scalar_select %p21, %s22, %s23
    %p27 = pneg %p21
    %p28 = scmp.eq.s32.totalorder %s12, 1
    %p29 = por %p27, %p28
    %p30 = scmp.ne.s32.totalorder %s22, %s25
    %p31 = scmp.eq.s32.totalorder %s12, 0
    %p32 = por %p30, %p31
    %p33 = scmp.ne.s32.totalorder %s22, %s25
    %p34 = scmp.eq.s32.totalorder %s17, 1
    %p35 = por %p33, %p34
    %p36 = scmp.ne.s32.totalorder %s25, %s26
    %p37 = scmp.eq.s32.totalorder %s17, 0
    %p38 = por %p36, %p37
    %p39 = scmp.ne.s32.totalorder %s25, %s26
    %p40 = scmp.eq.s32.totalorder %s18, 1
    %p41 = por %p39, %p40
    %p43 = scmp.ne.s32.totalorder %s26, %s42
    %p44 = scmp.eq.s32.totalorder %s18, 0
    %p45 = por %p43, %p44
    %s46 = ssub.s32 %s12, %s19
    %p47 = scmp.eq.s32.totalorder %s46, 0
    %s49 = sadd.s32 %s48, 1
    %s50 = scalar_select %p47, %s48, %s49
    %p53 = pneg %p47
    %p54 = scmp.eq.s32.totalorder %s12, 1
    %p55 = por %p53, %p54
    %p56 = scmp.ne.s32.totalorder %s48, %s51
    %p57 = scmp.eq.s32.totalorder %s12, 0
    %p58 = por %p56, %p57
    %p59 = scmp.ne.s32.totalorder %s48, %s51
    %p60 = scmp.eq.s32.totalorder %s17, 1
    %p61 = por %p59, %p60
    %p62 = scmp.ne.s32.totalorder %s51, %s52
    %p63 = scmp.eq.s32.totalorder %s17, 0
    %p64 = por %p62, %p63
    %p65 = scmp.ne.s32.totalorder %s51, %s52
    %p66 = scmp.eq.s32.totalorder %s18, 1
    %p67 = por %p65, %p66
    %p69 = scmp.ne.s32.totalorder %s52, %s68
    %p70 = scmp.eq.s32.totalorder %s18, 0
    %p71 = por %p69, %p70
    %s73 = sadd.s32 %s72, 1
    %p76 = scmp.eq.s32.totalorder %s12, 1
    %p77 = scmp.ne.s32.totalorder %s72, %s74
    %p78 = scmp.eq.s32.totalorder %s12, 0
    %p79 = por %p77, %p78
    %p80 = scmp.ne.s32.totalorder %s72, %s74
    %p81 = scmp.eq.s32.totalorder %s17, 1
    %p82 = por %p80, %p81
    %p83 = scmp.ne.s32.totalorder %s74, %s75
    %p84 = scmp.eq.s32.totalorder %s17, 0
    %p85 = por %p83, %p84
    %p86 = scmp.ne.s32.totalorder %s74, %s75
    %p87 = scmp.eq.s32.totalorder %s18, 1
    %p88 = por %p86, %p87
    %p90 = scmp.ne.s32.totalorder %s75, %s89
    %p91 = scmp.eq.s32.totalorder %s18, 0
    %p92 = por %p90, %p91
    %s94 = sadd.s32 %s93, 1
    %p97 = scmp.eq.s32.totalorder %s12, 1
    %p98 = scmp.ne.s32.totalorder %s93, %s95
    %p99 = scmp.eq.s32.totalorder %s12, 0
    %p100 = por %p98, %p99
    %p101 = scmp.ne.s32.totalorder %s93, %s95
    %p102 = scmp.eq.s32.totalorder %s17, 1
    %p103 = por %p101, %p102
    %p104 = scmp.ne.s32.totalorder %s95, %s96
    %p105 = scmp.eq.s32.totalorder %s17, 0
    %p106 = por %p104, %p105
    %p107 = scmp.ne.s32.totalorder %s95, %s96
    %p108 = scmp.eq.s32.totalorder %s18, 1
    %p109 = por %p107, %p108
    %p111 = scmp.ne.s32.totalorder %s96, %s110
    %p112 = scmp.eq.s32.totalorder %s18, 0
    %p113 = por %p111, %p112
    %s115 = sadd.s32 %s114, 1
    %p118 = scmp.eq.s32.totalorder %s12, 1
    %p119 = scmp.ne.s32.totalorder %s114, %s116
    %p120 = scmp.eq.s32.totalorder %s12, 0
    %p121 = por %p119, %p120
    %p122 = scmp.ne.s32.totalorder %s114, %s116
    %p123 = scmp.eq.s32.totalorder %s17, 1
    %p124 = por %p122, %p123
    %p125 = scmp.ne.s32.totalorder %s116, %s117
    %p126 = scmp.eq.s32.totalorder %s17, 0
    %p127 = por %p125, %p126
    %p128 = scmp.ne.s32.totalorder %s116, %s117
    %p129 = scmp.eq.s32.totalorder %s18, 1
    %p130 = por %p128, %p129
    %p132 = scmp.ne.s32.totalorder %s117, %s131
    %p133 = scmp.eq.s32.totalorder %s18, 0
    %p134 = por %p132, %p133
    %s136 = sadd.s32 %s135, 1
    %p139 = scmp.eq.s32.totalorder %s12, 1
    %p140 = scmp.ne.s32.totalorder %s135, %s137
    %p141 = scmp.eq.s32.totalorder %s12, 0
    %p142 = por %p140, %p141
    %p143 = scmp.ne.s32.totalorder %s135, %s137
    %p144 = scmp.eq.s32.totalorder %s17, 1
    %p145 = por %p143, %p144
    %p146 = scmp.ne.s32.totalorder %s137, %s138
    %p147 = scmp.eq.s32.totalorder %s17, 0
    %p148 = por %p146, %p147
    %p149 = scmp.ne.s32.totalorder %s137, %s138
    %p150 = scmp.eq.s32.totalorder %s18, 1
    %p151 = por %p149, %p150
    %p153 = scmp.ne.s32.totalorder %s138, %s152
    %p154 = scmp.eq.s32.totalorder %s18, 0
    %p155 = por %p153, %p154
    %s156 = ssub.s32 %s12, %s19
    %p157 = scmp.eq.s32.totalorder %s156, 0
    %s159 = sadd.s32 %s158, 1
    %s160 = scalar_select %p157, %s158, %s159
    %p163 = pneg %p157
    %p164 = scmp.eq.s32.totalorder %s12, 1
    %p165 = por %p163, %p164
    %p166 = scmp.ne.s32.totalorder %s158, %s161
    %p167 = scmp.eq.s32.totalorder %s12, 0
    %p168 = por %p166, %p167
    %p169 = scmp.ne.s32.totalorder %s158, %s161
    %p170 = scmp.eq.s32.totalorder %s17, 1
    %p171 = por %p169, %p170
    %p172 = scmp.ne.s32.totalorder %s161, %s162
    %p173 = scmp.eq.s32.totalorder %s17, 0
    %p174 = por %p172, %p173
    %p175 = scmp.ne.s32.totalorder %s161, %s162
    %p176 = scmp.eq.s32.totalorder %s18, 1
    %p177 = por %p175, %p176
    %p179 = scmp.ne.s32.totalorder %s162, %s178
    %p180 = scmp.eq.s32.totalorder %s18, 0
    %p181 = por %p179, %p180
    %p182 = scmp.le.s32.totalorder 1, %s12
    %p183 = scmp.lt.s32.totalorder %s12, 3
    %p184 = pnand %p182, %p183
    %p185 = pneg %p184
    // Predicated region
    $region9: #{fpac_forward.3} parent=5 // pred_check
      _
    $region10: #{fpac_forward.3} parent=5 // pred_check_branch
      %187 = sbr.rel (%p184) target = $region12
    $region11: #{fpac_forward.3} parent=5 // pred_region
      %s188 = ssub.s32 %s12, 1
      // Predicated region
      $region13: #{fpac_forward.3} parent=11 // pred_check
        %p189 = pneg %p85
      $region14: #{fpac_forward.3} parent=11 // pred_check_branch
        %191 = sbr.rel (%p189) target = $region16
      $region15: #{fpac_forward.3} parent=11 // pred_region
        _
      $region16: #{fpac_forward.3} parent=11 // pred_fallthru
        _
      // Predicated region
      $region17: #{fpac_forward.3} parent=11 // pred_check
        %p192 = pneg %p106
      $region18: #{fpac_forward.3} parent=11 // pred_check_branch
        %194 = sbr.rel (%p192) target = $region20
      $region19: #{fpac_forward.3} parent=11 // pred_region
        _
      $region20: #{fpac_forward.3} parent=11 // pred_fallthru
        _
      // Predicated region
      $region21: #{fpac_forward.3} parent=11 // pred_check
        %p195 = pneg %p127
      $region22: #{fpac_forward.3} parent=11 // pred_check_branch
        %197 = sbr.rel (%p195) target = $region24
      $region23: #{fpac_forward.3} parent=11 // pred_region
        _
      $region24: #{fpac_forward.3} parent=11 // pred_fallthru
        _
      // Predicated region
      $region25: #{fpac_forward.3} parent=11 // pred_check
        %p198 = pneg %p148
      $region26: #{fpac_forward.3} parent=11 // pred_check_branch
        %200 = sbr.rel (%p198) target = $region28
      $region27: #{fpac_forward.3} parent=11 // pred_region
        _
      $region28: #{fpac_forward.3} parent=11 // pred_fallthru
        _
    $region12: #{fpac_forward.3} parent=5 // pred_fallthru
      _
    %p201 = scmp.lt.s32.totalorder %s12, 2
    // Predicated region
    $region29: #{fpac_forward.3} parent=5 // pred_check
      %p202 = pneg %p201
    $region30: #{fpac_forward.3} parent=5 // pred_check_branch
      %204 = sbr.rel (%p202) target = $region32
    $region31: #{fpac_forward.3} parent=5 // pred_region
      // Predicated region
      $region33: #{fpac_forward.3} parent=31 // pred_check
        %p205 = pneg %p32
      $region34: #{fpac_forward.3} parent=31 // pred_check_branch
        %207 = sbr.rel (%p205) target = $region36
      $region35: #{fpac_forward.3} parent=31 // pred_region
        %s208 = smul.u32 8, %s12
        %p209 = scmp.lt.s32.totalorder %s208, 15
        %s210 = scalar_select %p209, %s208, 15
        %s211 = smul.addr %s210, 8
        %s212 = scalar_lea.vmem %s0, %s211
        %s213 = smul.u32 8, %s12
      $region36: #{fpac_forward.3} parent=31 // pred_fallthru
        _
      // Predicated region
      $region37: #{fpac_forward.3} parent=31 // pred_check
        %p214 = pneg %p58
      $region38: #{fpac_forward.3} parent=31 // pred_check_branch
        %216 = sbr.rel (%p214) target = $region40
      $region39: #{fpac_forward.3} parent=31 // pred_region
        %s217 = smul.u32 8, %s12
        %p218 = scmp.lt.s32.totalorder %s217, 15
        %s219 = scalar_select %p218, %s217, 15
        %s220 = smul.addr %s219, 8
        %s221 = scalar_lea.vmem %s1, %s220
        %s222 = smul.u32 8, %s12
      $region40: #{fpac_forward.3} parent=31 // pred_fallthru
        _
    $region32: #{fpac_forward.3} parent=5 // pred_fallthru
      _
    %p223 = scmp.le.s32.totalorder 1, %s12
    %p224 = scmp.lt.s32.totalorder %s12, 3
    %p225 = pnand %p223, %p224
    %p226 = pneg %p225
    // Predicated region
    $region41: #{fpac_forward.3} parent=5 // pred_check
      _
    $region42: #{fpac_forward.3} parent=5 // pred_check_branch
      %228 = sbr.rel (%p225) target = $region44
    $region43: #{fpac_forward.3} parent=5 // pred_region
      %s229 = ssub.s32 %s12, 1
      %s230 = smul.u32 8, %s17
      %p231 = scmp.lt.s32.totalorder %s230, 15
      %s232 = scalar_select %p231, %s230, 15
      %s233 = smul.addr %s232, 8
      %s234 = scalar_lea.vmem %s0, %s233
      %p235 = pneg %p38
      %p236 = pneg %p35
      %s237 = smul.u32 8, %s17
      %p238 = scmp.lt.s32.totalorder %s237, 15
      %s239 = scalar_select %p238, %s237, 15
      %s240 = smul.addr %s239, 8
      %s241 = scalar_lea.vmem %s1, %s240
      %p242 = pneg %p64
      %p243 = pneg %p61
      %p244 = pneg %p85
      %p245 = pneg %p82
      %p246 = pneg %p106
      %p247 = pneg %p103
      %p248 = pneg %p127
      %p249 = pneg %p124
      %p250 = pneg %p148
      %p251 = pneg %p145
      %p252 = pneg %p174
      %p253 = pneg %p171
      %p254 = scmp.lt.s32.totalorder %s17, 1
      %s255 = scalar_select %p254, %s17, 1
      %s256 = smul.addr %s255, 8
      %s257 = scalar_lea.vmem %s6, %s256
      %s258 = smul.u32 8, %s17
      %p259 = scmp.lt.s32.totalorder %s258, 15
      %s260 = scalar_select %p259, %s258, 15
      %s261 = smul.addr %s260, 8
      %s262 = scalar_lea.vmem %s0, %s261
      %s263 = smul.u32 8, %s17
      %s264 = smul.u32 8, %s17
      %p265 = scmp.lt.s32.totalorder %s264, 15
      %s266 = scalar_select %p265, %s264, 15
      %s267 = smul.addr %s266, 8
      %s268 = scalar_lea.vmem %s1, %s267
      %s269 = smul.u32 8, %s17
      %p270 = scmp.lt.s32.totalorder %s17, 1
      %s271 = scalar_select %p270, %s17, 1
      %s272 = smul.addr %s271, 8
      %s273 = scalar_lea.vmem %s6, %s272
      %v274 = vld [vmem:[%s262] sm:$0xff]
      %v275 = vld [vmem:[%s262 + $0x8] sm:$0xff]
      %v276 = vld [vmem:[%s262 + $0x10] sm:$0xff]
      %v277 = vld [vmem:[%s262 + $0x18] sm:$0xff]
      %v278 = vld [vmem:[%s262 + $0x20] sm:$0xff]
      %v279 = vld [vmem:[%s262 + $0x28] sm:$0xff]
      %v280 = vld [vmem:[%s262 + $0x30] sm:$0xff]
      %v281 = vld [vmem:[%s262 + $0x38] sm:$0xff]
      %v282 = vld [vmem:[%s268] sm:$0xff]
      %v283 = vld [vmem:[%s268 + $0x8] sm:$0xff]
      %v284 = vld [vmem:[%s268 + $0x10] sm:$0xff]
      %v285 = vld [vmem:[%s268 + $0x18] sm:$0xff]
      %v286 = vld [vmem:[%s268 + $0x20] sm:$0xff]
      %v287 = vld [vmem:[%s268 + $0x28] sm:$0xff]
      %v288 = vld [vmem:[%s268 + $0x30] sm:$0xff]
      %v289 = vld [vmem:[%s268 + $0x38] sm:$0xff]
      %290 = vxpose.xlu0.b32.start [1/16] %v274, 128
      %291 = vxpose.xlu0.b32.cont [2/16] 0.0, 128
      %292 = vxpose.xlu0.b32.cont [3/16] 0.0, 128
      %293 = vxpose.xlu0.b32.cont [4/16] 0.0, 128
      %294 = vxpose.xlu0.b32.cont [5/16] 0.0, 128
      %295 = vxpose.xlu0.b32.cont [6/16] 0.0, 128
      %296 = vxpose.xlu0.b32.cont [7/16] 0.0, 128
      %297 = vxpose.xlu0.b32.cont [8/16] 0.0, 128
      %298 = vxpose.xlu0.b32.cont [9/16] 0.0, 128
      %299 = vxpose.xlu0.b32.cont [10/16] 0.0, 128
      %300 = vxpose.xlu0.b32.cont [11/16] 0.0, 128
      %301 = vxpose.xlu0.b32.cont [12/16] 0.0, 128
      %302 = vxpose.xlu0.b32.cont [13/16] 0.0, 128
      %303 = vxpose.xlu0.b32.cont [14/16] 0.0, 128
      %304 = vxpose.xlu0.b32.cont [15/16] 0.0, 128
      %305 = vxpose.xlu0.b32.end [16/16] 0.0, 128
      %v306 = vpop.trf.xlu0
      %v307 = vpop.trf.xlu0
      %v308 = vpop.trf.xlu0
      %v309 = vpop.trf.xlu0
      %v310 = vpop.trf.xlu0
      %v311 = vpop.trf.xlu0
      %v312 = vpop.trf.xlu0
      %v313 = vpop.trf.xlu0
      %v314 = vpop.trf.xlu0
      %v315 = vpop.trf.xlu0
      %v316 = vpop.trf.xlu0
      %v317 = vpop.trf.xlu0
      %v318 = vpop.trf.xlu0
      %v319 = vpop.trf.xlu0
      %v320 = vpop.trf.xlu0
      %v321 = vpop.trf.xlu0
      %322 = vxpose.xlu0.b32.start [1/16] %v275, 128
      %323 = vxpose.xlu0.b32.cont [2/16] 0.0, 128
      %324 = vxpose.xlu0.b32.cont [3/16] 0.0, 128
      %325 = vxpose.xlu0.b32.cont [4/16] 0.0, 128
      %326 = vxpose.xlu0.b32.cont [5/16] 0.0, 128
      %327 = vxpose.xlu0.b32.cont [6/16] 0.0, 128
      %328 = vxpose.xlu0.b32.cont [7/16] 0.0, 128
      %329 = vxpose.xlu0.b32.cont [8/16] 0.0, 128
      %330 = vxpose.xlu0.b32.cont [9/16] 0.0, 128
      %331 = vxpose.xlu0.b32.cont [10/16] 0.0, 128
      %332 = vxpose.xlu0.b32.cont [11/16] 0.0, 128
      %333 = vxpose.xlu0.b32.cont [12/16] 0.0, 128
      %334 = vxpose.xlu0.b32.cont [13/16] 0.0, 128
      %335 = vxpose.xlu0.b32.cont [14/16] 0.0, 128
      %336 = vxpose.xlu0.b32.cont [15/16] 0.0, 128
      %337 = vxpose.xlu0.b32.end [16/16] 0.0, 128
      %v338 = vpop.trf.xlu0
      %v339 = vpop.trf.xlu0
      %v340 = vpop.trf.xlu0
      %v341 = vpop.trf.xlu0
      %v342 = vpop.trf.xlu0
      %v343 = vpop.trf.xlu0
      %v344 = vpop.trf.xlu0
      %v345 = vpop.trf.xlu0
      %v346 = vpop.trf.xlu0
      %v347 = vpop.trf.xlu0
      %v348 = vpop.trf.xlu0
      %v349 = vpop.trf.xlu0
      %v350 = vpop.trf.xlu0
      %v351 = vpop.trf.xlu0
      %v352 = vpop.trf.xlu0
      %v353 = vpop.trf.xlu0
      %354 = vxpose.xlu0.b32.start [1/16] %v276, 128
      %355 = vxpose.xlu0.b32.cont [2/16] 0.0, 128
      %356 = vxpose.xlu0.b32.cont [3/16] 0.0, 128
      %357 = vxpose.xlu0.b32.cont [4/16] 0.0, 128
      %358 = vxpose.xlu0.b32.cont [5/16] 0.0, 128
      %359 = vxpose.xlu0.b32.cont [6/16] 0.0, 128
      %360 = vxpose.xlu0.b32.cont [7/16] 0.0, 128
      %361 = vxpose.xlu0.b32.cont [8/16] 0.0, 128
      %362 = vxpose.xlu0.b32.cont [9/16] 0.0, 128
      %363 = vxpose.xlu0.b32.cont [10/16] 0.0, 128
      %364 = vxpose.xlu0.b32.cont [11/16] 0.0, 128
      %365 = vxpose.xlu0.b32.cont [12/16] 0.0, 128
      %366 = vxpose.xlu0.b32.cont [13/16] 0.0, 128
      %367 = vxpose.xlu0.b32.cont [14/16] 0.0, 128
      %368 = vxpose.xlu0.b32.cont [15/16] 0.0, 128
      %369 = vxpose.xlu0.b32.end [16/16] 0.0, 128
      %v370 = vpop.trf.xlu0
      %v371 = vpop.trf.xlu0
      %v372 = vpop.trf.xlu0
      %v373 = vpop.trf.xlu0
      %v374 = vpop.trf.xlu0
      %v375 = vpop.trf.xlu0
      %v376 = vpop.trf.xlu0
      %v377 = vpop.trf.xlu0
      %v378 = vpop.trf.xlu0
      %v379 = vpop.trf.xlu0
      %v380 = vpop.trf.xlu0
      %v381 = vpop.trf.xlu0
      %v382 = vpop.trf.xlu0
      %v383 = vpop.trf.xlu0
      %v384 = vpop.trf.xlu0
      %v385 = vpop.trf.xlu0
      %386 = vxpose.xlu0.b32.start [1/16] %v277, 128
      %387 = vxpose.xlu0.b32.cont [2/16] 0.0, 128
      %388 = vxpose.xlu0.b32.cont [3/16] 0.0, 128
      %389 = vxpose.xlu0.b32.cont [4/16] 0.0, 128
      %390 = vxpose.xlu0.b32.cont [5/16] 0.0, 128
      %391 = vxpose.xlu0.b32.cont [6/16] 0.0, 128
      %392 = vxpose.xlu0.b32.cont [7/16] 0.0, 128
      %393 = vxpose.xlu0.b32.cont [8/16] 0.0, 128
      %394 = vxpose.xlu0.b32.cont [9/16] 0.0, 128
      %395 = vxpose.xlu0.b32.cont [10/16] 0.0, 128
      %396 = vxpose.xlu0.b32.cont [11/16] 0.0, 128
      %397 = vxpose.xlu0.b32.cont [12/16] 0.0, 128
      %398 = vxpose.xlu0.b32.cont [13/16] 0.0, 128
      %399 = vxpose.xlu0.b32.cont [14/16] 0.0, 128
      %400 = vxpose.xlu0.b32.cont [15/16] 0.0, 128
      %401 = vxpose.xlu0.b32.end [16/16] 0.0, 128
      %v402 = vpop.trf.xlu0
      %v403 = vpop.trf.xlu0
      %v404 = vpop.trf.xlu0
      %v405 = vpop.trf.xlu0
      %v406 = vpop.trf.xlu0
      %v407 = vpop.trf.xlu0
      %v408 = vpop.trf.xlu0
      %v409 = vpop.trf.xlu0
      %v410 = vpop.trf.xlu0
      %v411 = vpop.trf.xlu0
      %v412 = vpop.trf.xlu0
      %v413 = vpop.trf.xlu0
      %v414 = vpop.trf.xlu0
      %v415 = vpop.trf.xlu0
      %v416 = vpop.trf.xlu0
      %v417 = vpop.trf.xlu0
      %418 = vxpose.xlu0.b32.start [1/16] %v278, 128
      %419 = vxpose.xlu0.b32.cont [2/16] 0.0, 128
      %420 = vxpose.xlu0.b32.cont [3/16] 0.0, 128
      %421 = vxpose.xlu0.b32.cont [4/16] 0.0, 128
      %422 = vxpose.xlu0.b32.cont [5/16] 0.0, 128
      %423 = vxpose.xlu0.b32.cont [6/16] 0.0, 128
      %424 = vxpose.xlu0.b32.cont [7/16] 0.0, 128
      %425 = vxpose.xlu0.b32.cont [8/16] 0.0, 128
      %426 = vxpose.xlu0.b32.cont [9/16] 0.0, 128
      %427 = vxpose.xlu0.b32.cont [10/16] 0.0, 128
      %428 = vxpose.xlu0.b32.cont [11/16] 0.0, 128
      %429 = vxpose.xlu0.b32.cont [12/16] 0.0, 128
      %430 = vxpose.xlu0.b32.cont [13/16] 0.0, 128
      %431 = vxpose.xlu0.b32.cont [14/16] 0.0, 128
      %432 = vxpose.xlu0.b32.cont [15/16] 0.0, 128
      %433 = vxpose.xlu0.b32.end [16/16] 0.0, 128
      %v434 = vpop.trf.xlu0
      %v435 = vpop.trf.xlu0
      %v436 = vpop.trf.xlu0
      %v437 = vpop.trf.xlu0
      %v438 = vpop.trf.xlu0
      %v439 = vpop.trf.xlu0
      %v440 = vpop.trf.xlu0
      %v441 = vpop.trf.xlu0
      %v442 = vpop.trf.xlu0
      %v443 = vpop.trf.xlu0
      %v444 = vpop.trf.xlu0
      %v445 = vpop.trf.xlu0
      %v446 = vpop.trf.xlu0
      %v447 = vpop.trf.xlu0
      %v448 = vpop.trf.xlu0
      %v449 = vpop.trf.xlu0
      %450 = vxpose.xlu0.b32.start [1/16] %v279, 128
      %451 = vxpose.xlu0.b32.cont [2/16] 0.0, 128
      %452 = vxpose.xlu0.b32.cont [3/16] 0.0, 128
      %453 = vxpose.xlu0.b32.cont [4/16] 0.0, 128
      %454 = vxpose.xlu0.b32.cont [5/16] 0.0, 128
      %455 = vxpose.xlu0.b32.cont [6/16] 0.0, 128
      %456 = vxpose.xlu0.b32.cont [7/16] 0.0, 128
      %457 = vxpose.xlu0.b32.cont [8/16] 0.0, 128
      %458 = vxpose.xlu0.b32.cont [9/16] 0.0, 128
      %459 = vxpose.xlu0.b32.cont [10/16] 0.0, 128
      %460 = vxpose.xlu0.b32.cont [11/16] 0.0, 128
      %461 = vxpose.xlu0.b32.cont [12/16] 0.0, 128
      %462 = vxpose.xlu0.b32.cont [13/16] 0.0, 128
      %463 = vxpose.xlu0.b32.cont [14/16] 0.0, 128
      %464 = vxpose.xlu0.b32.cont [15/16] 0.0, 128
      %465 = vxpose.xlu0.b32.end [16/16] 0.0, 128
      %v466 = vpop.trf.xlu0
      %v467 = vpop.trf.xlu0
      %v468 = vpop.trf.xlu0
      %v469 = vpop.trf.xlu0
      %v470 = vpop.trf.xlu0
      %v471 = vpop.trf.xlu0
      %v472 = vpop.trf.xlu0
      %v473 = vpop.trf.xlu0
      %v474 = vpop.trf.xlu0
      %v475 = vpop.trf.xlu0
      %v476 = vpop.trf.xlu0
      %v477 = vpop.trf.xlu0
      %v478 = vpop.trf.xlu0
      %v479 = vpop.trf.xlu0
      %v480 = vpop.trf.xlu0
      %v481 = vpop.trf.xlu0
      %482 = vxpose.xlu0.b32.start [1/16] %v280, 128
      %483 = vxpose.xlu0.b32.cont [2/16] 0.0, 128
      %484 = vxpose.xlu0.b32.cont [3/16] 0.0, 128
      %485 = vxpose.xlu0.b32.cont [4/16] 0.0, 128
      %486 = vxpose.xlu0.b32.cont [5/16] 0.0, 128
      %487 = vxpose.xlu0.b32.cont [6/16] 0.0, 128
      %488 = vxpose.xlu0.b32.cont [7/16] 0.0, 128
      %489 = vxpose.xlu0.b32.cont [8/16] 0.0, 128
      %490 = vxpose.xlu0.b32.cont [9/16] 0.0, 128
      %491 = vxpose.xlu0.b32.cont [10/16] 0.0, 128
      %492 = vxpose.xlu0.b32.cont [11/16] 0.0, 128
      %493 = vxpose.xlu0.b32.cont [12/16] 0.0, 128
      %494 = vxpose.xlu0.b32.cont [13/16] 0.0, 128
      %495 = vxpose.xlu0.b32.cont [14/16] 0.0, 128
      %496 = vxpose.xlu0.b32.cont [15/16] 0.0, 128
      %497 = vxpose.xlu0.b32.end [16/16] 0.0, 128
      %v498 = vpop.trf.xlu0
      %v499 = vpop.trf.xlu0
      %v500 = vpop.trf.xlu0
      %v501 = vpop.trf.xlu0
      %v502 = vpop.trf.xlu0
      %v503 = vpop.trf.xlu0
      %v504 = vpop.trf.xlu0
      %v505 = vpop.trf.xlu0
      %v506 = vpop.trf.xlu0
      %v507 = vpop.trf.xlu0
      %v508 = vpop.trf.xlu0
      %v509 = vpop.trf.xlu0
      %v510 = vpop.trf.xlu0
      %v511 = vpop.trf.xlu0
      %v512 = vpop.trf.xlu0
      %v513 = vpop.trf.xlu0
      %514 = vxpose.xlu0.b32.start [1/16] %v281, 128
      %515 = vxpose.xlu0.b32.cont [2/16] 0.0, 128
      %516 = vxpose.xlu0.b32.cont [3/16] 0.0, 128
      %517 = vxpose.xlu0.b32.cont [4/16] 0.0, 128
      %518 = vxpose.xlu0.b32.cont [5/16] 0.0, 128
      %519 = vxpose.xlu0.b32.cont [6/16] 0.0, 128
      %520 = vxpose.xlu0.b32.cont [7/16] 0.0, 128
      %521 = vxpose.xlu0.b32.cont [8/16] 0.0, 128
      %522 = vxpose.xlu0.b32.cont [9/16] 0.0, 128
      %523 = vxpose.xlu0.b32.cont [10/16] 0.0, 128
      %524 = vxpose.xlu0.b32.cont [11/16] 0.0, 128
      %525 = vxpose.xlu0.b32.cont [12/16] 0.0, 128
      %526 = vxpose.xlu0.b32.cont [13/16] 0.0, 128
      %527 = vxpose.xlu0.b32.cont [14/16] 0.0, 128
      %528 = vxpose.xlu0.b32.cont [15/16] 0.0, 128
      %529 = vxpose.xlu0.b32.end [16/16] 0.0, 128
      %v530 = vpop.trf.xlu0
      %v531 = vpop.trf.xlu0
      %v532 = vpop.trf.xlu0
      %v533 = vpop.trf.xlu0
      %v534 = vpop.trf.xlu0
      %v535 = vpop.trf.xlu0
      %v536 = vpop.trf.xlu0
      %v537 = vpop.trf.xlu0
      %v538 = vpop.trf.xlu0
      %v539 = vpop.trf.xlu0
      %v540 = vpop.trf.xlu0
      %v541 = vpop.trf.xlu0
      %v542 = vpop.trf.xlu0
      %v543 = vpop.trf.xlu0
      %v544 = vpop.trf.xlu0
      %v545 = vpop.trf.xlu0
      %vm546 = vcmask 64512
      %v548 = vsel %vm546, %v306, 0
      %550 = vmatprep.subr.mxu0 0.0
      %551 = vmatpush1.msra.mxu0 %v282
      %552 = vmatprep.subr.mxu0 0.0
      %553 = vmatpush1.msra.mxu0 0.0
      %554 = vmatprep.subr.mxu0 0.0
      %555 = vmatpush1.msra.mxu0 0.0
      %556 = vmatprep.subr.mxu0 0.0
      %557 = vmatpush1.msra.mxu0 0.0
      %558 = vmatprep.subr.mxu0 0.0
      %559 = vmatpush1.msra.mxu0 0.0
      %560 = vmatprep.subr.mxu0 0.0
      %561 = vmatpush1.msra.mxu0 0.0
      %562 = vmatprep.subr.mxu0 0.0
      %563 = vmatpush1.msra.mxu0 0.0
      %564 = vmatprep.subr.mxu0 0.0
      %565 = vmatpush1.msra.mxu0 0.0
      %566 = vmatprep.subr.mxu0 0.0
      %567 = vmatpush1.msra.mxu0 0.0
      %568 = vmatprep.subr.mxu0 0.0
      %569 = vmatpush1.msra.mxu0 0.0
      %570 = vmatprep.subr.mxu0 0.0
      %571 = vmatpush1.msra.mxu0 0.0
      %572 = vmatprep.subr.mxu0 0.0
      %573 = vmatpush1.msra.mxu0 0.0
      %574 = vmatprep.subr.mxu0 0.0
      %575 = vmatpush1.msra.mxu0 0.0
      %576 = vmatprep.subr.mxu0 0.0
      %577 = vmatpush1.msra.mxu0 0.0
      %578 = vmatprep.subr.mxu0 0.0
      %579 = vmatpush1.msra.mxu0 0.0
      %580 = vmatprep.subr.mxu0 0.0
      %581 = vmatpush1.msra.mxu0 0.0
      %582 = vmatprep.subr.mxu0 0.0
      %583 = vmatpush1.msra.mxu0 0.0
      %584 = vmatprep.subr.mxu0 0.0
      %585 = vmatpush1.msra.mxu0 0.0
      %586 = vmatprep.subr.mxu0 0.0
      %587 = vmatpush1.msra.mxu0 0.0
      %588 = vmatprep.subr.mxu0 0.0
      %589 = vmatpush1.msra.mxu0 0.0
      %590 = vmatprep.subr.mxu0 0.0
      %591 = vmatpush1.msra.mxu0 0.0
      %592 = vmatprep.subr.mxu0 0.0
      %593 = vmatpush1.msra.mxu0 0.0
      %594 = vmatprep.subr.mxu0 0.0
      %595 = vmatpush1.msra.mxu0 0.0
      %596 = vmatprep.subr.mxu0 0.0
      %597 = vmatpush1.msra.mxu0 0.0
      %598 = vmatprep.subr.mxu0 0.0
      %599 = vmatpush1.msra.mxu0 0.0
      %600 = vmatprep.subr.mxu0 0.0
      %601 = vmatpush1.msra.mxu0 0.0
      %602 = vmatprep.subr.mxu0 0.0
      %603 = vmatpush1.msra.mxu0 0.0
      %604 = vmatprep.subr.mxu0 0.0
      %605 = vmatpush1.msra.mxu0 0.0
      %606 = vmatprep.subr.mxu0 0.0
      %607 = vmatpush1.msra.mxu0 0.0
      %608 = vmatprep.subr.mxu0 0.0
      %609 = vmatpush1.msra.mxu0 0.0
      %610 = vmatprep.subr.mxu0 0.0
      %611 = vmatpush1.msra.mxu0 0.0
      %612 = vmatprep.subr.mxu0 0.0
      %613 = vmatpush1.msra.mxu0 0.0
      %614 = vmatprep.mubr.f32.mxu0 0.0
      %615 = vmatmul.mubr.f32.gmra.mrb[0].mxu0 %v548
      %v616 = vpop.f32.mrb[0].mxu0
      %v617 = vadd.f32 0.0, %v616
      %v618 = vpop.f32.mrb[0].mxu0
      %619 = vdwg.mxu0
      %v621 = vsel %vm546, %v338, 0
      %623 = vmatprep.subr.mxu0 0.0
      %624 = vmatpush1.msra.mxu0 %v283
      %625 = vmatprep.subr.mxu0 0.0
      %626 = vmatpush1.msra.mxu0 0.0
      %627 = vmatprep.subr.mxu0 0.0
      %628 = vmatpush1.msra.mxu0 0.0
      %629 = vmatprep.subr.mxu0 0.0
      %630 = vmatpush1.msra.mxu0 0.0
      %631 = vmatprep.subr.mxu0 0.0
      %632 = vmatpush1.msra.mxu0 0.0
      %633 = vmatprep.subr.mxu0 0.0
      %634 = vmatpush1.msra.mxu0 0.0
      %635 = vmatprep.subr.mxu0 0.0
      %636 = vmatpush1.msra.mxu0 0.0
      %637 = vmatprep.subr.mxu0 0.0
      %638 = vmatpush1.msra.mxu0 0.0
      %639 = vmatprep.subr.mxu0 0.0
      %640 = vmatpush1.msra.mxu0 0.0
      %641 = vmatprep.subr.mxu0 0.0
      %642 = vmatpush1.msra.mxu0 0.0
      %643 = vmatprep.subr.mxu0 0.0
      %644 = vmatpush1.msra.mxu0 0.0
      %645 = vmatprep.subr.mxu0 0.0
      %646 = vmatpush1.msra.mxu0 0.0
      %647 = vmatprep.subr.mxu0 0.0
      %648 = vmatpush1.msra.mxu0 0.0
      %649 = vmatprep.subr.mxu0 0.0
      %650 = vmatpush1.msra.mxu0 0.0
      %651 = vmatprep.subr.mxu0 0.0
      %652 = vmatpush1.msra.mxu0 0.0
      %653 = vmatprep.subr.mxu0 0.0
      %654 = vmatpush1.msra.mxu0 0.0
      %655 = vmatprep.subr.mxu0 0.0
      %656 = vmatpush1.msra.mxu0 0.0
      %657 = vmatprep.subr.mxu0 0.0
      %658 = vmatpush1.msra.mxu0 0.0
      %659 = vmatprep.subr.mxu0 0.0
      %660 = vmatpush1.msra.mxu0 0.0
      %661 = vmatprep.subr.mxu0 0.0
      %662 = vmatpush1.msra.mxu0 0.0
      %663 = vmatprep.subr.mxu0 0.0
      %664 = vmatpush1.msra.mxu0 0.0
      %665 = vmatprep.subr.mxu0 0.0
      %666 = vmatpush1.msra.mxu0 0.0
      %667 = vmatprep.subr.mxu0 0.0
      %668 = vmatpush1.msra.mxu0 0.0
      %669 = vmatprep.subr.mxu0 0.0
      %670 = vmatpush1.msra.mxu0 0.0
      %671 = vmatprep.subr.mxu0 0.0
      %672 = vmatpush1.msra.mxu0 0.0
      %673 = vmatprep.subr.mxu0 0.0
      %674 = vmatpush1.msra.mxu0 0.0
      %675 = vmatprep.subr.mxu0 0.0
      %676 = vmatpush1.msra.mxu0 0.0
      %677 = vmatprep.subr.mxu0 0.0
      %678 = vmatpush1.msra.mxu0 0.0
      %679 = vmatprep.subr.mxu0 0.0
      %680 = vmatpush1.msra.mxu0 0.0
      %681 = vmatprep.subr.mxu0 0.0
      %682 = vmatpush1.msra.mxu0 0.0
      %683 = vmatprep.subr.mxu0 0.0
      %684 = vmatpush1.msra.mxu0 0.0
      %685 = vmatprep.subr.mxu0 0.0
      %686 = vmatpush1.msra.mxu0 0.0
      %687 = vmatprep.mubr.f32.mxu0 0.0
      %688 = vmatmul.mubr.f32.gmra.mrb[0].mxu0 %v621
      %v689 = vpop.f32.mrb[0].mxu0
      %v690 = vadd.f32 0.0, %v689
      %v691 = vpop.f32.mrb[0].mxu0
      %692 = vdwg.mxu0
      %v694 = vsel %vm546, %v370, 0
      %696 = vmatprep.subr.mxu0 0.0
      %697 = vmatpush1.msra.mxu0 %v284
      %698 = vmatprep.subr.mxu0 0.0
      %699 = vmatpush1.msra.mxu0 0.0
      %700 = vmatprep.subr.mxu0 0.0
      %701 = vmatpush1.msra.mxu0 0.0
      %702 = vmatprep.subr.mxu0 0.0
      %703 = vmatpush1.msra.mxu0 0.0
      %704 = vmatprep.subr.mxu0 0.0
      %705 = vmatpush1.msra.mxu0 0.0
      %706 = vmatprep.subr.mxu0 0.0
      %707 = vmatpush1.msra.mxu0 0.0
      %708 = vmatprep.subr.mxu0 0.0
      %709 = vmatpush1.msra.mxu0 0.0
      %710 = vmatprep.subr.mxu0 0.0
      %711 = vmatpush1.msra.mxu0 0.0
      %712 = vmatprep.subr.mxu0 0.0
      %713 = vmatpush1.msra.mxu0 0.0
      %714 = vmatprep.subr.mxu0 0.0
      %715 = vmatpush1.msra.mxu0 0.0
      %716 = vmatprep.subr.mxu0 0.0
      %717 = vmatpush1.msra.mxu0 0.0
      %718 = vmatprep.subr.mxu0 0.0
      %719 = vmatpush1.msra.mxu0 0.0
      %720 = vmatprep.subr.mxu0 0.0
      %721 = vmatpush1.msra.mxu0 0.0
      %722 = vmatprep.subr.mxu0 0.0
      %723 = vmatpush1.msra.mxu0 0.0
      %724 = vmatprep.subr.mxu0 0.0
      %725 = vmatpush1.msra.mxu0 0.0
      %726 = vmatprep.subr.mxu0 0.0
      %727 = vmatpush1.msra.mxu0 0.0
      %728 = vmatprep.subr.mxu0 0.0
      %729 = vmatpush1.msra.mxu0 0.0
      %730 = vmatprep.subr.mxu0 0.0
      %731 = vmatpush1.msra.mxu0 0.0
      %732 = vmatprep.subr.mxu0 0.0
      %733 = vmatpush1.msra.mxu0 0.0
      %734 = vmatprep.subr.mxu0 0.0
      %735 = vmatpush1.msra.mxu0 0.0
      %736 = vmatprep.subr.mxu0 0.0
      %737 = vmatpush1.msra.mxu0 0.0
      %738 = vmatprep.subr.mxu0 0.0
      %739 = vmatpush1.msra.mxu0 0.0
      %740 = vmatprep.subr.mxu0 0.0
      %741 = vmatpush1.msra.mxu0 0.0
      %742 = vmatprep.subr.mxu0 0.0
      %743 = vmatpush1.msra.mxu0 0.0
      %744 = vmatprep.subr.mxu0 0.0
      %745 = vmatpush1.msra.mxu0 0.0
      %746 = vmatprep.subr.mxu0 0.0
      %747 = vmatpush1.msra.mxu0 0.0
      %748 = vmatprep.subr.mxu0 0.0
      %749 = vmatpush1.msra.mxu0 0.0
      %750 = vmatprep.subr.mxu0 0.0
      %751 = vmatpush1.msra.mxu0 0.0
      %752 = vmatprep.subr.mxu0 0.0
      %753 = vmatpush1.msra.mxu0 0.0
      %754 = vmatprep.subr.mxu0 0.0
      %755 = vmatpush1.msra.mxu0 0.0
      %756 = vmatprep.subr.mxu0 0.0
      %757 = vmatpush1.msra.mxu0 0.0
      %758 = vmatprep.subr.mxu0 0.0
      %759 = vmatpush1.msra.mxu0 0.0
      %760 = vmatprep.mubr.f32.mxu0 0.0
      %761 = vmatmul.mubr.f32.gmra.mrb[0].mxu0 %v694
      %v762 = vpop.f32.mrb[0].mxu0
      %v763 = vadd.f32 0.0, %v762
      %v764 = vpop.f32.mrb[0].mxu0
      %765 = vdwg.mxu0
      %v767 = vsel %vm546, %v402, 0
      %769 = vmatprep.subr.mxu0 0.0
      %770 = vmatpush1.msra.mxu0 %v285
      %771 = vmatprep.subr.mxu0 0.0
      %772 = vmatpush1.msra.mxu0 0.0
      %773 = vmatprep.subr.mxu0 0.0
      %774 = vmatpush1.msra.mxu0 0.0
      %775 = vmatprep.subr.mxu0 0.0
      %776 = vmatpush1.msra.mxu0 0.0
      %777 = vmatprep.subr.mxu0 0.0
      %778 = vmatpush1.msra.mxu0 0.0
      %779 = vmatprep.subr.mxu0 0.0
      %780 = vmatpush1.msra.mxu0 0.0
      %781 = vmatprep.subr.mxu0 0.0
      %782 = vmatpush1.msra.mxu0 0.0
      %783 = vmatprep.subr.mxu0 0.0
      %784 = vmatpush1.msra.mxu0 0.0
      %785 = vmatprep.subr.mxu0 0.0
      %786 = vmatpush1.msra.mxu0 0.0
      %787 = vmatprep.subr.mxu0 0.0
      %788 = vmatpush1.msra.mxu0 0.0
      %789 = vmatprep.subr.mxu0 0.0
      %790 = vmatpush1.msra.mxu0 0.0
      %791 = vmatprep.subr.mxu0 0.0
      %792 = vmatpush1.msra.mxu0 0.0
      %793 = vmatprep.subr.mxu0 0.0
      %794 = vmatpush1.msra.mxu0 0.0
      %795 = vmatprep.subr.mxu0 0.0
      %796 = vmatpush1.msra.mxu0 0.0
      %797 = vmatprep.subr.mxu0 0.0
      %798 = vmatpush1.msra.mxu0 0.0
      %799 = vmatprep.subr.mxu0 0.0
      %800 = vmatpush1.msra.mxu0 0.0
      %801 = vmatprep.subr.mxu0 0.0
      %802 = vmatpush1.msra.mxu0 0.0
      %803 = vmatprep.subr.mxu0 0.0
      %804 = vmatpush1.msra.mxu0 0.0
      %805 = vmatprep.subr.mxu0 0.0
      %806 = vmatpush1.msra.mxu0 0.0
      %807 = vmatprep.subr.mxu0 0.0
      %808 = vmatpush1.msra.mxu0 0.0
      %809 = vmatprep.subr.mxu0 0.0
      %810 = vmatpush1.msra.mxu0 0.0
      %811 = vmatprep.subr.mxu0 0.0
      %812 = vmatpush1.msra.mxu0 0.0
      %813 = vmatprep.subr.mxu0 0.0
      %814 = vmatpush1.msra.mxu0 0.0
      %815 = vmatprep.subr.mxu0 0.0
      %816 = vmatpush1.msra.mxu0 0.0
      %817 = vmatprep.subr.mxu0 0.0
      %818 = vmatpush1.msra.mxu0 0.0
      %819 = vmatprep.subr.mxu0 0.0
      %820 = vmatpush1.msra.mxu0 0.0
      %821 = vmatprep.subr.mxu0 0.0
      %822 = vmatpush1.msra.mxu0 0.0
      %823 = vmatprep.subr.mxu0 0.0
      %824 = vmatpush1.msra.mxu0 0.0
      %825 = vmatprep.subr.mxu0 0.0
      %826 = vmatpush1.msra.mxu0 0.0
      %827 = vmatprep.subr.mxu0 0.0
      %828 = vmatpush1.msra.mxu0 0.0
      %829 = vmatprep.subr.mxu0 0.0
      %830 = vmatpush1.msra.mxu0 0.0
      %831 = vmatprep.subr.mxu0 0.0
      %832 = vmatpush1.msra.mxu0 0.0
      %833 = vmatprep.mubr.f32.mxu0 0.0
      %834 = vmatmul.mubr.f32.gmra.mrb[0].mxu0 %v767
      %v835 = vpop.f32.mrb[0].mxu0
      %v836 = vadd.f32 0.0, %v835
      %v837 = vpop.f32.mrb[0].mxu0
      %838 = vdwg.mxu0
      %v840 = vsel %vm546, %v434, 0
      %842 = vmatprep.subr.mxu0 0.0
      %843 = vmatpush1.msra.mxu0 %v286
      %844 = vmatprep.subr.mxu0 0.0
      %845 = vmatpush1.msra.mxu0 0.0
      %846 = vmatprep.subr.mxu0 0.0
      %847 = vmatpush1.msra.mxu0 0.0
      %848 = vmatprep.subr.mxu0 0.0
      %849 = vmatpush1.msra.mxu0 0.0
      %850 = vmatprep.subr.mxu0 0.0
      %851 = vmatpush1.msra.mxu0 0.0
      %852 = vmatprep.subr.mxu0 0.0
      %853 = vmatpush1.msra.mxu0 0.0
      %854 = vmatprep.subr.mxu0 0.0
      %855 = vmatpush1.msra.mxu0 0.0
      %856 = vmatprep.subr.mxu0 0.0
      %857 = vmatpush1.msra.mxu0 0.0
      %858 = vmatprep.subr.mxu0 0.0
      %859 = vmatpush1.msra.mxu0 0.0
      %860 = vmatprep.subr.mxu0 0.0
      %861 = vmatpush1.msra.mxu0 0.0
      %862 = vmatprep.subr.mxu0 0.0
      %863 = vmatpush1.msra.mxu0 0.0
      %864 = vmatprep.subr.mxu0 0.0
      %865 = vmatpush1.msra.mxu0 0.0
      %866 = vmatprep.subr.mxu0 0.0
      %867 = vmatpush1.msra.mxu0 0.0
      %868 = vmatprep.subr.mxu0 0.0
      %869 = vmatpush1.msra.mxu0 0.0
      %870 = vmatprep.subr.mxu0 0.0
      %871 = vmatpush1.msra.mxu0 0.0
      %872 = vmatprep.subr.mxu0 0.0
      %873 = vmatpush1.msra.mxu0 0.0
      %874 = vmatprep.subr.mxu0 0.0
      %875 = vmatpush1.msra.mxu0 0.0
      %876 = vmatprep.subr.mxu0 0.0
      %877 = vmatpush1.msra.mxu0 0.0
      %878 = vmatprep.subr.mxu0 0.0
      %879 = vmatpush1.msra.mxu0 0.0
      %880 = vmatprep.subr.mxu0 0.0
      %881 = vmatpush1.msra.mxu0 0.0
      %882 = vmatprep.subr.mxu0 0.0
      %883 = vmatpush1.msra.mxu0 0.0
      %884 = vmatprep.subr.mxu0 0.0
      %885 = vmatpush1.msra.mxu0 0.0
      %886 = vmatprep.subr.mxu0 0.0
      %887 = vmatpush1.msra.mxu0 0.0
      %888 = vmatprep.subr.mxu0 0.0
      %889 = vmatpush1.msra.mxu0 0.0
      %890 = vmatprep.subr.mxu0 0.0
      %891 = vmatpush1.msra.mxu0 0.0
      %892 = vmatprep.subr.mxu0 0.0
      %893 = vmatpush1.msra.mxu0 0.0
      %894 = vmatprep.subr.mxu0 0.0
      %895 = vmatpush1.msra.mxu0 0.0
      %896 = vmatprep.subr.mxu0 0.0
      %897 = vmatpush1.msra.mxu0 0.0
      %898 = vmatprep.subr.mxu0 0.0
      %899 = vmatpush1.msra.mxu0 0.0
      %900 = vmatprep.subr.mxu0 0.0
      %901 = vmatpush1.msra.mxu0 0.0
      %902 = vmatprep.subr.mxu0 0.0
      %903 = vmatpush1.msra.mxu0 0.0
      %904 = vmatprep.subr.mxu0 0.0
      %905 = vmatpush1.msra.mxu0 0.0
      %906 = vmatprep.mubr.f32.mxu0 0.0
      %907 = vmatmul.mubr.f32.gmra.mrb[0].mxu0 %v840
      %v908 = vpop.f32.mrb[0].mxu0
      %v909 = vadd.f32 0.0, %v908
      %v910 = vpop.f32.mrb[0].mxu0
      %911 = vdwg.mxu0
      %v913 = vsel %vm546, %v466, 0
      %915 = vmatprep.subr.mxu0 0.0
      %916 = vmatpush1.msra.mxu0 %v287
      %917 = vmatprep.subr.mxu0 0.0
      %918 = vmatpush1.msra.mxu0 0.0
      %919 = vmatprep.subr.mxu0 0.0
      %920 = vmatpush1.msra.mxu0 0.0
      %921 = vmatprep.subr.mxu0 0.0
      %922 = vmatpush1.msra.mxu0 0.0
      %923 = vmatprep.subr.mxu0 0.0
      %924 = vmatpush1.msra.mxu0 0.0
      %925 = vmatprep.subr.mxu0 0.0
      %926 = vmatpush1.msra.mxu0 0.0
      %927 = vmatprep.subr.mxu0 0.0
      %928 = vmatpush1.msra.mxu0 0.0
      %929 = vmatprep.subr.mxu0 0.0
      %930 = vmatpush1.msra.mxu0 0.0
      %931 = vmatprep.subr.mxu0 0.0
      %932 = vmatpush1.msra.mxu0 0.0
      %933 = vmatprep.subr.mxu0 0.0
      %934 = vmatpush1.msra.mxu0 0.0
      %935 = vmatprep.subr.mxu0 0.0
      %936 = vmatpush1.msra.mxu0 0.0
      %937 = vmatprep.subr.mxu0 0.0
      %938 = vmatpush1.msra.mxu0 0.0
      %939 = vmatprep.subr.mxu0 0.0
      %940 = vmatpush1.msra.mxu0 0.0
      %941 = vmatprep.subr.mxu0 0.0
      %942 = vmatpush1.msra.mxu0 0.0
      %943 = vmatprep.subr.mxu0 0.0
      %944 = vmatpush1.msra.mxu0 0.0
      %945 = vmatprep.subr.mxu0 0.0
      %946 = vmatpush1.msra.mxu0 0.0
      %947 = vmatprep.subr.mxu0 0.0
      %948 = vmatpush1.msra.mxu0 0.0
      %949 = vmatprep.subr.mxu0 0.0
      %950 = vmatpush1.msra.mxu0 0.0
      %951 = vmatprep.subr.mxu0 0.0
      %952 = vmatpush1.msra.mxu0 0.0
      %953 = vmatprep.subr.mxu0 0.0
      %954 = vmatpush1.msra.mxu0 0.0
      %955 = vmatprep.subr.mxu0 0.0
      %956 = vmatpush1.msra.mxu0 0.0
      %957 = vmatprep.subr.mxu0 0.0
      %958 = vmatpush1.msra.mxu0 0.0
      %959 = vmatprep.subr.mxu0 0.0
      %960 = vmatpush1.msra.mxu0 0.0
      %961 = vmatprep.subr.mxu0 0.0
      %962 = vmatpush1.msra.mxu0 0.0
      %963 = vmatprep.subr.mxu0 0.0
      %964 = vmatpush1.msra.mxu0 0.0
      %965 = vmatprep.subr.mxu0 0.0
      %966 = vmatpush1.msra.mxu0 0.0
      %967 = vmatprep.subr.mxu0 0.0
      %968 = vmatpush1.msra.mxu0 0.0
      %969 = vmatprep.subr.mxu0 0.0
      %970 = vmatpush1.msra.mxu0 0.0
      %971 = vmatprep.subr.mxu0 0.0
      %972 = vmatpush1.msra.mxu0 0.0
      %973 = vmatprep.subr.mxu0 0.0
      %974 = vmatpush1.msra.mxu0 0.0
      %975 = vmatprep.subr.mxu0 0.0
      %976 = vmatpush1.msra.mxu0 0.0
      %977 = vmatprep.subr.mxu0 0.0
      %978 = vmatpush1.msra.mxu0 0.0
      %979 = vmatprep.mubr.f32.mxu0 0.0
      %980 = vmatmul.mubr.f32.gmra.mrb[0].mxu0 %v913
      %v981 = vpop.f32.mrb[0].mxu0
      %v982 = vadd.f32 0.0, %v981
      %v983 = vpop.f32.mrb[0].mxu0
      %984 = vdwg.mxu0
      %v986 = vsel %vm546, %v498, 0
      %988 = vmatprep.subr.mxu0 0.0
      %989 = vmatpush1.msra.mxu0 %v288
      %990 = vmatprep.subr.mxu0 0.0
      %991 = vmatpush1.msra.mxu0 0.0
      %992 = vmatprep.subr.mxu0 0.0
      %993 = vmatpush1.msra.mxu0 0.0
      %994 = vmatprep.subr.mxu0 0.0
      %995 = vmatpush1.msra.mxu0 0.0
      %996 = vmatprep.subr.mxu0 0.0
      %997 = vmatpush1.msra.mxu0 0.0
      %998 = vmatprep.subr.mxu0 0.0
      %999 = vmatpush1.msra.mxu0 0.0
      %1000 = vmatprep.subr.mxu0 0.0
      %1001 = vmatpush1.msra.mxu0 0.0
      %1002 = vmatprep.subr.mxu0 0.0
      %1003 = vmatpush1.msra.mxu0 0.0
      %1004 = vmatprep.subr.mxu0 0.0
      %1005 = vmatpush1.msra.mxu0 0.0
      %1006 = vmatprep.subr.mxu0 0.0
      %1007 = vmatpush1.msra.mxu0 0.0
      %1008 = vmatprep.subr.mxu0 0.0
      %1009 = vmatpush1.msra.mxu0 0.0
      %1010 = vmatprep.subr.mxu0 0.0
      %1011 = vmatpush1.msra.mxu0 0.0
      %1012 = vmatprep.subr.mxu0 0.0
      %1013 = vmatpush1.msra.mxu0 0.0
      %1014 = vmatprep.subr.mxu0 0.0
      %1015 = vmatpush1.msra.mxu0 0.0
      %1016 = vmatprep.subr.mxu0 0.0
      %1017 = vmatpush1.msra.mxu0 0.0
      %1018 = vmatprep.subr.mxu0 0.0
      %1019 = vmatpush1.msra.mxu0 0.0
      %1020 = vmatprep.subr.mxu0 0.0
      %1021 = vmatpush1.msra.mxu0 0.0
      %1022 = vmatprep.subr.mxu0 0.0
      %1023 = vmatpush1.msra.mxu0 0.0
      %1024 = vmatprep.subr.mxu0 0.0
      %1025 = vmatpush1.msra.mxu0 0.0
      %1026 = vmatprep.subr.mxu0 0.0
      %1027 = vmatpush1.msra.mxu0 0.0
      %1028 = vmatprep.subr.mxu0 0.0
      %1029 = vmatpush1.msra.mxu0 0.0
      %1030 = vmatprep.subr.mxu0 0.0
      %1031 = vmatpush1.msra.mxu0 0.0
      %1032 = vmatprep.subr.mxu0 0.0
      %1033 = vmatpush1.msra.mxu0 0.0
      %1034 = vmatprep.subr.mxu0 0.0
      %1035 = vmatpush1.msra.mxu0 0.0
      %1036 = vmatprep.subr.mxu0 0.0
      %1037 = vmatpush1.msra.mxu0 0.0
      %1038 = vmatprep.subr.mxu0 0.0
      %1039 = vmatpush1.msra.mxu0 0.0
      %1040 = vmatprep.subr.mxu0 0.0
      %1041 = vmatpush1.msra.mxu0 0.0
      %1042 = vmatprep.subr.mxu0 0.0
      %1043 = vmatpush1.msra.mxu0 0.0
      %1044 = vmatprep.subr.mxu0 0.0
      %1045 = vmatpush1.msra.mxu0 0.0
      %1046 = vmatprep.subr.mxu0 0.0
      %1047 = vmatpush1.msra.mxu0 0.0
      %1048 = vmatprep.subr.mxu0 0.0
      %1049 = vmatpush1.msra.mxu0 0.0
      %1050 = vmatprep.subr.mxu0 0.0
      %1051 = vmatpush1.msra.mxu0 0.0
      %1052 = vmatprep.mubr.f32.mxu0 0.0
      %1053 = vmatmul.mubr.f32.gmra.mrb[0].mxu0 %v986
      %v1054 = vpop.f32.mrb[0].mxu0
      %v1055 = vadd.f32 0.0, %v1054
      %v1056 = vpop.f32.mrb[0].mxu0
      %1057 = vdwg.mxu0
      %v1059 = vsel %vm546, %v530, 0
      %1061 = vmatprep.subr.mxu0 0.0
      %1062 = vmatpush1.msra.mxu0 %v289
      %1063 = vmatprep.subr.mxu0 0.0
      %1064 = vmatpush1.msra.mxu0 0.0
      %1065 = vmatprep.subr.mxu0 0.0
      %1066 = vmatpush1.msra.mxu0 0.0
      %1067 = vmatprep.subr.mxu0 0.0
      %1068 = vmatpush1.msra.mxu0 0.0
      %1069 = vmatprep.subr.mxu0 0.0
      %1070 = vmatpush1.msra.mxu0 0.0
      %1071 = vmatprep.subr.mxu0 0.0
      %1072 = vmatpush1.msra.mxu0 0.0
      %1073 = vmatprep.subr.mxu0 0.0
      %1074 = vmatpush1.msra.mxu0 0.0
      %1075 = vmatprep.subr.mxu0 0.0
      %1076 = vmatpush1.msra.mxu0 0.0
      %1077 = vmatprep.subr.mxu0 0.0
      %1078 = vmatpush1.msra.mxu0 0.0
      %1079 = vmatprep.subr.mxu0 0.0
      %1080 = vmatpush1.msra.mxu0 0.0
      %1081 = vmatprep.subr.mxu0 0.0
      %1082 = vmatpush1.msra.mxu0 0.0
      %1083 = vmatprep.subr.mxu0 0.0
      %1084 = vmatpush1.msra.mxu0 0.0
      %1085 = vmatprep.subr.mxu0 0.0
      %1086 = vmatpush1.msra.mxu0 0.0
      %1087 = vmatprep.subr.mxu0 0.0
      %1088 = vmatpush1.msra.mxu0 0.0
      %1089 = vmatprep.subr.mxu0 0.0
      %1090 = vmatpush1.msra.mxu0 0.0
      %1091 = vmatprep.subr.mxu0 0.0
      %1092 = vmatpush1.msra.mxu0 0.0
      %1093 = vmatprep.subr.mxu0 0.0
      %1094 = vmatpush1.msra.mxu0 0.0
      %1095 = vmatprep.subr.mxu0 0.0
      %1096 = vmatpush1.msra.mxu0 0.0
      %1097 = vmatprep.subr.mxu0 0.0
      %1098 = vmatpush1.msra.mxu0 0.0
      %1099 = vmatprep.subr.mxu0 0.0
      %1100 = vmatpush1.msra.mxu0 0.0
      %1101 = vmatprep.subr.mxu0 0.0
      %1102 = vmatpush1.msra.mxu0 0.0
      %1103 = vmatprep.subr.mxu0 0.0
      %1104 = vmatpush1.msra.mxu0 0.0
      %1105 = vmatprep.subr.mxu0 0.0
      %1106 = vmatpush1.msra.mxu0 0.0
      %1107 = vmatprep.subr.mxu0 0.0
      %1108 = vmatpush1.msra.mxu0 0.0
      %1109 = vmatprep.subr.mxu0 0.0
      %1110 = vmatpush1.msra.mxu0 0.0
      %1111 = vmatprep.subr.mxu0 0.0
      %1112 = vmatpush1.msra.mxu0 0.0
      %1113 = vmatprep.subr.mxu0 0.0
      %1114 = vmatpush1.msra.mxu0 0.0
      %1115 = vmatprep.subr.mxu0 0.0
      %1116 = vmatpush1.msra.mxu0 0.0
      %1117 = vmatprep.subr.mxu0 0.0
      %1118 = vmatpush1.msra.mxu0 0.0
      %1119 = vmatprep.subr.mxu0 0.0
      %1120 = vmatpush1.msra.mxu0 0.0
      %1121 = vmatprep.subr.mxu0 0.0
      %1122 = vmatpush1.msra.mxu0 0.0
      %1123 = vmatprep.subr.mxu0 0.0
      %1124 = vmatpush1.msra.mxu0 0.0
      %1125 = vmatprep.mubr.f32.mxu0 0.0
      %1126 = vmatmul.mubr.f32.gmra.mrb[0].mxu0 %v1059
      %v1127 = vpop.f32.mrb[0].mxu0
      %v1128 = vadd.f32 0.0, %v1127
      %v1129 = vpop.f32.mrb[0].mxu0
      %1130 = vdwg.mxu0
      %v1131 = vld [vmem:[%s2] sm:$0xff]
      %v1132 = vld [vmem:[%s2 + $0x8] sm:$0xff]
      %v1133 = vld [vmem:[%s2 + $0x10] sm:$0xff]
      %v1134 = vld [vmem:[%s2 + $0x18] sm:$0xff]
      %v1135 = vld [vmem:[%s2 + $0x20] sm:$0xff]
      %v1136 = vld [vmem:[%s2 + $0x28] sm:$0xff]
      %v1137 = vld [vmem:[%s2 + $0x30] sm:$0xff]
      %v1138 = vld [vmem:[%s2 + $0x38] sm:$0xff]
      %v1139 = vld [vmem:[%s2 + $0x40] sm:$0xff]
      %v1140 = vld [vmem:[%s2 + $0x48] sm:$0xff]
      %v1141 = vld [vmem:[%s2 + $0x50] sm:$0xff]
      %v1142 = vld [vmem:[%s2 + $0x58] sm:$0xff]
      %v1143 = vld [vmem:[%s2 + $0x60] sm:$0xff]
      %v1144 = vld [vmem:[%s2 + $0x68] sm:$0xff]
      %v1145 = vld [vmem:[%s3] sm:$0x1]
      %v1154 = vrot.slane %v617, 1
      %vm1155 = vcmask 1041409
      %v1156 = vsel %vm1155, %v690, %v1154
      %v1157 = vrot.slane %v763, 7
      %vm1158 = vcmask 1042434
      %v1159 = vsel %vm1158, %v1157, %v1156
      %v1160 = vrot.slane %v836, 6
      %vm1161 = vcmask 1043459
      %v1162 = vsel %vm1161, %v1160, %v1159
      %v1163 = vrot.slane %v909, 5
      %vm1164 = vcmask 1044484
      %v1165 = vsel %vm1164, %v1163, %v1162
      %v1166 = vrot.slane %v982, 4
      %vm1167 = vcmask 1045509
      %v1168 = vsel %vm1167, %v1166, %v1165
      %v1169 = vrot.slane %v1055, 3
      %vm1170 = vcmask 1046534
      %v1171 = vsel %vm1170, %v1169, %v1168
      %v1172 = vrot.slane %v1128, 2
      %vm1173 = vcmask 1047559
      %v1174 = vsel %vm1173, %v1172, %v1171
      %vm1175 = vcmask 130048
      %v1176 = vsel %vm1175, %v1174, 0
      %1178 = vmatprep.subr.mxu0 0.0
      %1179 = vmatpush1.msra.mxu0 %v1133
      %1180 = vmatprep.subr.mxu0 0.0
      %1181 = vmatpush1.msra.mxu0 %v1134
      %1182 = vmatprep.subr.mxu0 0.0
      %1183 = vmatpush1.msra.mxu0 0.0
      %1184 = vmatprep.subr.mxu0 0.0
      %1185 = vmatpush1.msra.mxu0 0.0
      %1186 = vmatprep.subr.mxu0 0.0
      %1187 = vmatpush1.msra.mxu0 0.0
      %1188 = vmatprep.subr.mxu0 0.0
      %1189 = vmatpush1.msra.mxu0 0.0
      %1190 = vmatprep.subr.mxu0 0.0
      %1191 = vmatpush1.msra.mxu0 0.0
      %1192 = vmatprep.subr.mxu0 0.0
      %1193 = vmatpush1.msra.mxu0 0.0
      %1194 = vmatprep.subr.mxu0 0.0
      %1195 = vmatpush1.msra.mxu0 0.0
      %1196 = vmatprep.subr.mxu0 0.0
      %1197 = vmatpush1.msra.mxu0 0.0
      %1198 = vmatprep.subr.mxu0 0.0
      %1199 = vmatpush1.msra.mxu0 0.0
      %1200 = vmatprep.subr.mxu0 0.0
      %1201 = vmatpush1.msra.mxu0 0.0
      %1202 = vmatprep.subr.mxu0 0.0
      %1203 = vmatpush1.msra.mxu0 0.0
      %1204 = vmatprep.subr.mxu0 0.0
      %1205 = vmatpush1.msra.mxu0 0.0
      %1206 = vmatprep.subr.mxu0 0.0
      %1207 = vmatpush1.msra.mxu0 0.0
      %1208 = vmatprep.subr.mxu0 0.0
      %1209 = vmatpush1.msra.mxu0 0.0
      %1210 = vmatprep.subr.mxu0 0.0
      %1211 = vmatpush1.msra.mxu0 0.0
      %1212 = vmatprep.subr.mxu0 0.0
      %1213 = vmatpush1.msra.mxu0 0.0
      %1214 = vmatprep.subr.mxu0 0.0
      %1215 = vmatpush1.msra.mxu0 0.0
      %1216 = vmatprep.subr.mxu0 0.0
      %1217 = vmatpush1.msra.mxu0 0.0
      %1218 = vmatprep.subr.mxu0 0.0
      %1219 = vmatpush1.msra.mxu0 0.0
      %1220 = vmatprep.subr.mxu0 0.0
      %1221 = vmatpush1.msra.mxu0 0.0
      %1222 = vmatprep.subr.mxu0 0.0
      %1223 = vmatpush1.msra.mxu0 0.0
      %1224 = vmatprep.subr.mxu0 0.0
      %1225 = vmatpush1.msra.mxu0 0.0
      %1226 = vmatprep.subr.mxu0 0.0
      %1227 = vmatpush1.msra.mxu0 0.0
      %1228 = vmatprep.subr.mxu0 0.0
      %1229 = vmatpush1.msra.mxu0 0.0
      %1230 = vmatprep.subr.mxu0 0.0
      %1231 = vmatpush1.msra.mxu0 0.0
      %1232 = vmatprep.subr.mxu0 0.0
      %1233 = vmatpush1.msra.mxu0 0.0
      %1234 = vmatprep.subr.mxu0 0.0
      %1235 = vmatpush1.msra.mxu0 0.0
      %1236 = vmatprep.subr.mxu0 0.0
      %1237 = vmatpush1.msra.mxu0 0.0
      %1238 = vmatprep.subr.mxu0 0.0
      %1239 = vmatpush1.msra.mxu0 0.0
      %1240 = vmatprep.subr.mxu0 0.0
      %1241 = vmatpush1.msra.mxu0 0.0
      %1242 = vmatprep.mubr.f32.mxu0 0.0
      %1243 = vmatmul.mubr.f32.gmra.mrb[0].mxu0 %v1176
      %v1244 = vpop.f32.mrb[0].mxu0
      %v1245 = vadd.f32 0.0, %v1244
      %v1246 = vpop.f32.mrb[0].mxu0
      %1247 = vdwg.mxu0
      %v1248 = vrot.slane %v690, 7
      %v1249 = vsel %vm1155, %v1248, %v617
      %v1250 = vrot.slane %v763, 6
      %v1251 = vsel %vm1158, %v1250, %v1249
      %v1252 = vrot.slane %v836, 5
      %v1253 = vsel %vm1161, %v1252, %v1251
      %v1254 = vrot.slane %v909, 4
      %v1255 = vsel %vm1164, %v1254, %v1253
      %v1256 = vrot.slane %v982, 3
      %v1257 = vsel %vm1167, %v1256, %v1255
      %v1258 = vrot.slane %v1055, 2
      %v1259 = vsel %vm1170, %v1258, %v1257
      %v1260 = vrot.slane %v1128, 1
      %v1261 = vsel %vm1173, %v1260, %v1259
      %v1262 = vsel %vm1175, %v1261, 0
      %1264 = vmatprep.subr.mxu0 0.0
      %1265 = vmatpush1.msra.mxu0 %v1131
      %1266 = vmatprep.subr.mxu0 0.0
      %1267 = vmatpush1.msra.mxu0 %v1132
      %1268 = vmatprep.subr.mxu0 0.0
      %1269 = vmatpush1.msra.mxu0 0.0
      %1270 = vmatprep.subr.mxu0 0.0
      %1271 = vmatpush1.msra.mxu0 0.0
      %1272 = vmatprep.subr.mxu0 0.0
      %1273 = vmatpush1.msra.mxu0 0.0
      %1274 = vmatprep.subr.mxu0 0.0
      %1275 = vmatpush1.msra.mxu0 0.0
      %1276 = vmatprep.subr.mxu0 0.0
      %1277 = vmatpush1.msra.mxu0 0.0
      %1278 = vmatprep.subr.mxu0 0.0
      %1279 = vmatpush1.msra.mxu0 0.0
      %1280 = vmatprep.subr.mxu0 0.0
      %1281 = vmatpush1.msra.mxu0 0.0
      %1282 = vmatprep.subr.mxu0 0.0
      %1283 = vmatpush1.msra.mxu0 0.0
      %1284 = vmatprep.subr.mxu0 0.0
      %1285 = vmatpush1.msra.mxu0 0.0
      %1286 = vmatprep.subr.mxu0 0.0
      %1287 = vmatpush1.msra.mxu0 0.0
      %1288 = vmatprep.subr.mxu0 0.0
      %1289 = vmatpush1.msra.mxu0 0.0
      %1290 = vmatprep.subr.mxu0 0.0
      %1291 = vmatpush1.msra.mxu0 0.0
      %1292 = vmatprep.subr.mxu0 0.0
      %1293 = vmatpush1.msra.mxu0 0.0
      %1294 = vmatprep.subr.mxu0 0.0
      %1295 = vmatpush1.msra.mxu0 0.0
      %1296 = vmatprep.subr.mxu0 0.0
      %1297 = vmatpush1.msra.mxu0 0.0
      %1298 = vmatprep.subr.mxu0 0.0
      %1299 = vmatpush1.msra.mxu0 0.0
      %1300 = vmatprep.subr.mxu0 0.0
      %1301 = vmatpush1.msra.mxu0 0.0
      %1302 = vmatprep.subr.mxu0 0.0
      %1303 = vmatpush1.msra.mxu0 0.0
      %1304 = vmatprep.subr.mxu0 0.0
      %1305 = vmatpush1.msra.mxu0 0.0
      %1306 = vmatprep.subr.mxu0 0.0
      %1307 = vmatpush1.msra.mxu0 0.0
      %1308 = vmatprep.subr.mxu0 0.0
      %1309 = vmatpush1.msra.mxu0 0.0
      %1310 = vmatprep.subr.mxu0 0.0
      %1311 = vmatpush1.msra.mxu0 0.0
      %1312 = vmatprep.subr.mxu0 0.0
      %1313 = vmatpush1.msra.mxu0 0.0
      %1314 = vmatprep.subr.mxu0 0.0
      %1315 = vmatpush1.msra.mxu0 0.0
      %1316 = vmatprep.subr.mxu0 0.0
      %1317 = vmatpush1.msra.mxu0 0.0
      %1318 = vmatprep.subr.mxu0 0.0
      %1319 = vmatpush1.msra.mxu0 0.0
      %1320 = vmatprep.subr.mxu0 0.0
      %1321 = vmatpush1.msra.mxu0 0.0
      %1322 = vmatprep.subr.mxu0 0.0
      %1323 = vmatpush1.msra.mxu0 0.0
      %1324 = vmatprep.subr.mxu0 0.0
      %1325 = vmatpush1.msra.mxu0 0.0
      %1326 = vmatprep.subr.mxu0 0.0
      %1327 = vmatpush1.msra.mxu0 0.0
      %1328 = vmatprep.mubr.f32.mxu0 0.0
      %1329 = vmatmul.mubr.f32.gmra.mrb[0].mxu0 %v1262
      %v1330 = vpop.f32.mrb[0].mxu0
      %v1331 = vadd.f32 %v1245, %v1330
      %v1332 = vpop.f32.mrb[0].mxu0
      %1333 = vdwg.mxu0
      %v1334 = vrot.slane %v617, 2
      %v1335 = vrot.slane %v690, 1
      %v1336 = vsel %vm1155, %v1335, %v1334
      %v1337 = vsel %vm1158, %v763, %v1336
      %v1338 = vrot.slane %v836, 7
      %v1339 = vsel %vm1161, %v1338, %v1337
      %v1340 = vrot.slane %v909, 6
      %v1341 = vsel %vm1164, %v1340, %v1339
      %v1342 = vrot.slane %v982, 5
      %v1343 = vsel %vm1167, %v1342, %v1341
      %v1344 = vrot.slane %v1055, 4
      %v1345 = vsel %vm1170, %v1344, %v1343
      %v1346 = vrot.slane %v1128, 3
      %v1347 = vsel %vm1173, %v1346, %v1345
      %v1348 = vsel %vm1175, %v1347, 0
      %1350 = vmatprep.subr.mxu0 0.0
      %1351 = vmatpush1.msra.mxu0 %v1135
      %1352 = vmatprep.subr.mxu0 0.0
      %1353 = vmatpush1.msra.mxu0 %v1136
      %1354 = vmatprep.subr.mxu0 0.0
      %1355 = vmatpush1.msra.mxu0 0.0
      %1356 = vmatprep.subr.mxu0 0.0
      %1357 = vmatpush1.msra.mxu0 0.0
      %1358 = vmatprep.subr.mxu0 0.0
      %1359 = vmatpush1.msra.mxu0 0.0
      %1360 = vmatprep.subr.mxu0 0.0
      %1361 = vmatpush1.msra.mxu0 0.0
      %1362 = vmatprep.subr.mxu0 0.0
      %1363 = vmatpush1.msra.mxu0 0.0
      %1364 = vmatprep.subr.mxu0 0.0
      %1365 = vmatpush1.msra.mxu0 0.0
      %1366 = vmatprep.subr.mxu0 0.0
      %1367 = vmatpush1.msra.mxu0 0.0
      %1368 = vmatprep.subr.mxu0 0.0
      %1369 = vmatpush1.msra.mxu0 0.0
      %1370 = vmatprep.subr.mxu0 0.0
      %1371 = vmatpush1.msra.mxu0 0.0
      %1372 = vmatprep.subr.mxu0 0.0
      %1373 = vmatpush1.msra.mxu0 0.0
      %1374 = vmatprep.subr.mxu0 0.0
      %1375 = vmatpush1.msra.mxu0 0.0
      %1376 = vmatprep.subr.mxu0 0.0
      %1377 = vmatpush1.msra.mxu0 0.0
      %1378 = vmatprep.subr.mxu0 0.0
      %1379 = vmatpush1.msra.mxu0 0.0
      %1380 = vmatprep.subr.mxu0 0.0
      %1381 = vmatpush1.msra.mxu0 0.0
      %1382 = vmatprep.subr.mxu0 0.0
      %1383 = vmatpush1.msra.mxu0 0.0
      %1384 = vmatprep.subr.mxu0 0.0
      %1385 = vmatpush1.msra.mxu0 0.0
      %1386 = vmatprep.subr.mxu0 0.0
      %1387 = vmatpush1.msra.mxu0 0.0
      %1388 = vmatprep.subr.mxu0 0.0
      %1389 = vmatpush1.msra.mxu0 0.0
      %1390 = vmatprep.subr.mxu0 0.0
      %1391 = vmatpush1.msra.mxu0 0.0
      %1392 = vmatprep.subr.mxu0 0.0
      %1393 = vmatpush1.msra.mxu0 0.0
      %1394 = vmatprep.subr.mxu0 0.0
      %1395 = vmatpush1.msra.mxu0 0.0
      %1396 = vmatprep.subr.mxu0 0.0
      %1397 = vmatpush1.msra.mxu0 0.0
      %1398 = vmatprep.subr.mxu0 0.0
      %1399 = vmatpush1.msra.mxu0 0.0
      %1400 = vmatprep.subr.mxu0 0.0
      %1401 = vmatpush1.msra.mxu0 0.0
      %1402 = vmatprep.subr.mxu0 0.0
      %1403 = vmatpush1.msra.mxu0 0.0
      %1404 = vmatprep.subr.mxu0 0.0
      %1405 = vmatpush1.msra.mxu0 0.0
      %1406 = vmatprep.subr.mxu0 0.0
      %1407 = vmatpush1.msra.mxu0 0.0
      %1408 = vmatprep.subr.mxu0 0.0
      %1409 = vmatpush1.msra.mxu0 0.0
      %1410 = vmatprep.subr.mxu0 0.0
      %1411 = vmatpush1.msra.mxu0 0.0
      %1412 = vmatprep.subr.mxu0 0.0
      %1413 = vmatpush1.msra.mxu0 0.0
      %1414 = vmatprep.mubr.f32.mxu0 0.0
      %1415 = vmatmul.mubr.f32.gmra.mrb[0].mxu0 %v1348
      %v1416 = vpop.f32.mrb[0].mxu0
      %v1417 = vadd.f32 0.0, %v1416
      %v1418 = vpop.f32.mrb[0].mxu0
      %1419 = vdwg.mxu0
      %v1420 = vadd.f32 %v1331, %v1417
      %v1421 = vrot.slane %v617, 3
      %v1422 = vrot.slane %v690, 2
      %v1423 = vsel %vm1155, %v1422, %v1421
      %v1424 = vrot.slane %v763, 1
      %v1425 = vsel %vm1158, %v1424, %v1423
      %v1426 = vsel %vm1161, %v836, %v1425
      %v1427 = vrot.slane %v909, 7
      %v1428 = vsel %vm1164, %v1427, %v1426
      %v1429 = vrot.slane %v982, 6
      %v1430 = vsel %vm1167, %v1429, %v1428
      %v1431 = vrot.slane %v1055, 5
      %v1432 = vsel %vm1170, %v1431, %v1430
      %v1433 = vrot.slane %v1128, 4
      %v1434 = vsel %vm1173, %v1433, %v1432
      %v1435 = vsel %vm1175, %v1434, 0
      %1437 = vmatprep.subr.mxu0 0.0
      %1438 = vmatpush1.msra.mxu0 %v1137
      %1439 = vmatprep.subr.mxu0 0.0
      %1440 = vmatpush1.msra.mxu0 %v1138
      %1441 = vmatprep.subr.mxu0 0.0
      %1442 = vmatpush1.msra.mxu0 0.0
      %1443 = vmatprep.subr.mxu0 0.0
      %1444 = vmatpush1.msra.mxu0 0.0
      %1445 = vmatprep.subr.mxu0 0.0
      %1446 = vmatpush1.msra.mxu0 0.0
      %1447 = vmatprep.subr.mxu0 0.0
      %1448 = vmatpush1.msra.mxu0 0.0
      %1449 = vmatprep.subr.mxu0 0.0
      %1450 = vmatpush1.msra.mxu0 0.0
      %1451 = vmatprep.subr.mxu0 0.0
      %1452 = vmatpush1.msra.mxu0 0.0
      %1453 = vmatprep.subr.mxu0 0.0
      %1454 = vmatpush1.msra.mxu0 0.0
      %1455 = vmatprep.subr.mxu0 0.0
      %1456 = vmatpush1.msra.mxu0 0.0
      %1457 = vmatprep.subr.mxu0 0.0
      %1458 = vmatpush1.msra.mxu0 0.0
      %1459 = vmatprep.subr.mxu0 0.0
      %1460 = vmatpush1.msra.mxu0 0.0
      %1461 = vmatprep.subr.mxu0 0.0
      %1462 = vmatpush1.msra.mxu0 0.0
      %1463 = vmatprep.subr.mxu0 0.0
      %1464 = vmatpush1.msra.mxu0 0.0
      %1465 = vmatprep.subr.mxu0 0.0
      %1466 = vmatpush1.msra.mxu0 0.0
      %1467 = vmatprep.subr.mxu0 0.0
      %1468 = vmatpush1.msra.mxu0 0.0
      %1469 = vmatprep.subr.mxu0 0.0
      %1470 = vmatpush1.msra.mxu0 0.0
      %1471 = vmatprep.subr.mxu0 0.0
      %1472 = vmatpush1.msra.mxu0 0.0
      %1473 = vmatprep.subr.mxu0 0.0
      %1474 = vmatpush1.msra.mxu0 0.0
      %1475 = vmatprep.subr.mxu0 0.0
      %1476 = vmatpush1.msra.mxu0 0.0
      %1477 = vmatprep.subr.mxu0 0.0
      %1478 = vmatpush1.msra.mxu0 0.0
      %1479 = vmatprep.subr.mxu0 0.0
      %1480 = vmatpush1.msra.mxu0 0.0
      %1481 = vmatprep.subr.mxu0 0.0
      %1482 = vmatpush1.msra.mxu0 0.0
      %1483 = vmatprep.subr.mxu0 0.0
      %1484 = vmatpush1.msra.mxu0 0.0
      %1485 = vmatprep.subr.mxu0 0.0
      %1486 = vmatpush1.msra.mxu0 0.0
      %1487 = vmatprep.subr.mxu0 0.0
      %1488 = vmatpush1.msra.mxu0 0.0
      %1489 = vmatprep.subr.mxu0 0.0
      %1490 = vmatpush1.msra.mxu0 0.0
      %1491 = vmatprep.subr.mxu0 0.0
      %1492 = vmatpush1.msra.mxu0 0.0
      %1493 = vmatprep.subr.mxu0 0.0
      %1494 = vmatpush1.msra.mxu0 0.0
      %1495 = vmatprep.subr.mxu0 0.0
      %1496 = vmatpush1.msra.mxu0 0.0
      %1497 = vmatprep.subr.mxu0 0.0
      %1498 = vmatpush1.msra.mxu0 0.0
      %1499 = vmatprep.subr.mxu0 0.0
      %1500 = vmatpush1.msra.mxu0 0.0
      %1501 = vmatprep.mubr.f32.mxu0 0.0
      %1502 = vmatmul.mubr.f32.gmra.mrb[0].mxu0 %v1435
      %v1503 = vpop.f32.mrb[0].mxu0
      %v1504 = vadd.f32 0.0, %v1503
      %v1505 = vpop.f32.mrb[0].mxu0
      %1506 = vdwg.mxu0
      %v1507 = vadd.f32 %v1420, %v1504
      %v1508 = vrot.slane %v617, 4
      %v1509 = vrot.slane %v690, 3
      %v1510 = vsel %vm1155, %v1509, %v1508
      %v1511 = vrot.slane %v763, 2
      %v1512 = vsel %vm1158, %v1511, %v1510
      %v1513 = vrot.slane %v836, 1
      %v1514 = vsel %vm1161, %v1513, %v1512
      %v1515 = vsel %vm1164, %v909, %v1514
      %v1516 = vrot.slane %v982, 7
      %v1517 = vsel %vm1167, %v1516, %v1515
      %v1518 = vrot.slane %v1055, 6
      %v1519 = vsel %vm1170, %v1518, %v1517
      %v1520 = vrot.slane %v1128, 5
      %v1521 = vsel %vm1173, %v1520, %v1519
      %v1522 = vsel %vm1175, %v1521, 0
      %1524 = vmatprep.subr.mxu0 0.0
      %1525 = vmatpush1.msra.mxu0 %v1139
      %1526 = vmatprep.subr.mxu0 0.0
      %1527 = vmatpush1.msra.mxu0 %v1140
      %1528 = vmatprep.subr.mxu0 0.0
      %1529 = vmatpush1.msra.mxu0 0.0
      %1530 = vmatprep.subr.mxu0 0.0
      %1531 = vmatpush1.msra.mxu0 0.0
      %1532 = vmatprep.subr.mxu0 0.0
      %1533 = vmatpush1.msra.mxu0 0.0
      %1534 = vmatprep.subr.mxu0 0.0
      %1535 = vmatpush1.msra.mxu0 0.0
      %1536 = vmatprep.subr.mxu0 0.0
      %1537 = vmatpush1.msra.mxu0 0.0
      %1538 = vmatprep.subr.mxu0 0.0
      %1539 = vmatpush1.msra.mxu0 0.0
      %1540 = vmatprep.subr.mxu0 0.0
      %1541 = vmatpush1.msra.mxu0 0.0
      %1542 = vmatprep.subr.mxu0 0.0
      %1543 = vmatpush1.msra.mxu0 0.0
      %1544 = vmatprep.subr.mxu0 0.0
      %1545 = vmatpush1.msra.mxu0 0.0
      %1546 = vmatprep.subr.mxu0 0.0
      %1547 = vmatpush1.msra.mxu0 0.0
      %1548 = vmatprep.subr.mxu0 0.0
      %1549 = vmatpush1.msra.mxu0 0.0
      %1550 = vmatprep.subr.mxu0 0.0
      %1551 = vmatpush1.msra.mxu0 0.0
      %1552 = vmatprep.subr.mxu0 0.0
      %1553 = vmatpush1.msra.mxu0 0.0
      %1554 = vmatprep.subr.mxu0 0.0
      %1555 = vmatpush1.msra.mxu0 0.0
      %1556 = vmatprep.subr.mxu0 0.0
      %1557 = vmatpush1.msra.mxu0 0.0
      %1558 = vmatprep.subr.mxu0 0.0
      %1559 = vmatpush1.msra.mxu0 0.0
      %1560 = vmatprep.subr.mxu0 0.0
      %1561 = vmatpush1.msra.mxu0 0.0
      %1562 = vmatprep.subr.mxu0 0.0
      %1563 = vmatpush1.msra.mxu0 0.0
      %1564 = vmatprep.subr.mxu0 0.0
      %1565 = vmatpush1.msra.mxu0 0.0
      %1566 = vmatprep.subr.mxu0 0.0
      %1567 = vmatpush1.msra.mxu0 0.0
      %1568 = vmatprep.subr.mxu0 0.0
      %1569 = vmatpush1.msra.mxu0 0.0
      %1570 = vmatprep.subr.mxu0 0.0
      %1571 = vmatpush1.msra.mxu0 0.0
      %1572 = vmatprep.subr.mxu0 0.0
      %1573 = vmatpush1.msra.mxu0 0.0
      %1574 = vmatprep.subr.mxu0 0.0
      %1575 = vmatpush1.msra.mxu0 0.0
      %1576 = vmatprep.subr.mxu0 0.0
      %1577 = vmatpush1.msra.mxu0 0.0
      %1578 = vmatprep.subr.mxu0 0.0
      %1579 = vmatpush1.msra.mxu0 0.0
      %1580 = vmatprep.subr.mxu0 0.0
      %1581 = vmatpush1.msra.mxu0 0.0
      %1582 = vmatprep.subr.mxu0 0.0
      %1583 = vmatpush1.msra.mxu0 0.0
      %1584 = vmatprep.subr.mxu0 0.0
      %1585 = vmatpush1.msra.mxu0 0.0
      %1586 = vmatprep.subr.mxu0 0.0
      %1587 = vmatpush1.msra.mxu0 0.0
      %1588 = vmatprep.mubr.f32.mxu0 0.0
      %1589 = vmatmul.mubr.f32.gmra.mrb[0].mxu0 %v1522
      %v1590 = vpop.f32.mrb[0].mxu0
      %v1591 = vadd.f32 0.0, %v1590
      %v1592 = vpop.f32.mrb[0].mxu0
      %1593 = vdwg.mxu0
      %v1594 = vadd.f32 %v1507, %v1591
      %v1595 = vrot.slane %v617, 5
      %v1596 = vrot.slane %v690, 4
      %v1597 = vsel %vm1155, %v1596, %v1595
      %v1598 = vrot.slane %v763, 3
      %v1599 = vsel %vm1158, %v1598, %v1597
      %v1600 = vrot.slane %v836, 2
      %v1601 = vsel %vm1161, %v1600, %v1599
      %v1602 = vrot.slane %v909, 1
      %v1603 = vsel %vm1164, %v1602, %v1601
      %v1604 = vsel %vm1167, %v982, %v1603
      %v1605 = vrot.slane %v1055, 7
      %v1606 = vsel %vm1170, %v1605, %v1604
      %v1607 = vrot.slane %v1128, 6
      %v1608 = vsel %vm1173, %v1607, %v1606
      %v1609 = vsel %vm1175, %v1608, 0
      %1611 = vmatprep.subr.mxu0 0.0
      %1612 = vmatpush1.msra.mxu0 %v1141
      %1613 = vmatprep.subr.mxu0 0.0
      %1614 = vmatpush1.msra.mxu0 %v1142
      %1615 = vmatprep.subr.mxu0 0.0
      %1616 = vmatpush1.msra.mxu0 0.0
      %1617 = vmatprep.subr.mxu0 0.0
      %1618 = vmatpush1.msra.mxu0 0.0
      %1619 = vmatprep.subr.mxu0 0.0
      %1620 = vmatpush1.msra.mxu0 0.0
      %1621 = vmatprep.subr.mxu0 0.0
      %1622 = vmatpush1.msra.mxu0 0.0
      %1623 = vmatprep.subr.mxu0 0.0
      %1624 = vmatpush1.msra.mxu0 0.0
      %1625 = vmatprep.subr.mxu0 0.0
      %1626 = vmatpush1.msra.mxu0 0.0
      %1627 = vmatprep.subr.mxu0 0.0
      %1628 = vmatpush1.msra.mxu0 0.0
      %1629 = vmatprep.subr.mxu0 0.0
      %1630 = vmatpush1.msra.mxu0 0.0
      %1631 = vmatprep.subr.mxu0 0.0
      %1632 = vmatpush1.msra.mxu0 0.0
      %1633 = vmatprep.subr.mxu0 0.0
      %1634 = vmatpush1.msra.mxu0 0.0
      %1635 = vmatprep.subr.mxu0 0.0
      %1636 = vmatpush1.msra.mxu0 0.0
      %1637 = vmatprep.subr.mxu0 0.0
      %1638 = vmatpush1.msra.mxu0 0.0
      %1639 = vmatprep.subr.mxu0 0.0
      %1640 = vmatpush1.msra.mxu0 0.0
      %1641 = vmatprep.subr.mxu0 0.0
      %1642 = vmatpush1.msra.mxu0 0.0
      %1643 = vmatprep.subr.mxu0 0.0
      %1644 = vmatpush1.msra.mxu0 0.0
      %1645 = vmatprep.subr.mxu0 0.0
      %1646 = vmatpush1.msra.mxu0 0.0
      %1647 = vmatprep.subr.mxu0 0.0
      %1648 = vmatpush1.msra.mxu0 0.0
      %1649 = vmatprep.subr.mxu0 0.0
      %1650 = vmatpush1.msra.mxu0 0.0
      %1651 = vmatprep.subr.mxu0 0.0
      %1652 = vmatpush1.msra.mxu0 0.0
      %1653 = vmatprep.subr.mxu0 0.0
      %1654 = vmatpush1.msra.mxu0 0.0
      %1655 = vmatprep.subr.mxu0 0.0
      %1656 = vmatpush1.msra.mxu0 0.0
      %1657 = vmatprep.subr.mxu0 0.0
      %1658 = vmatpush1.msra.mxu0 0.0
      %1659 = vmatprep.subr.mxu0 0.0
      %1660 = vmatpush1.msra.mxu0 0.0
      %1661 = vmatprep.subr.mxu0 0.0
      %1662 = vmatpush1.msra.mxu0 0.0
      %1663 = vmatprep.subr.mxu0 0.0
      %1664 = vmatpush1.msra.mxu0 0.0
      %1665 = vmatprep.subr.mxu0 0.0
      %1666 = vmatpush1.msra.mxu0 0.0
      %1667 = vmatprep.subr.mxu0 0.0
      %1668 = vmatpush1.msra.mxu0 0.0
      %1669 = vmatprep.subr.mxu0 0.0
      %1670 = vmatpush1.msra.mxu0 0.0
      %1671 = vmatprep.subr.mxu0 0.0
      %1672 = vmatpush1.msra.mxu0 0.0
      %1673 = vmatprep.subr.mxu0 0.0
      %1674 = vmatpush1.msra.mxu0 0.0
      %1675 = vmatprep.mubr.f32.mxu0 0.0
      %1676 = vmatmul.mubr.f32.gmra.mrb[0].mxu0 %v1609
      %v1677 = vpop.f32.mrb[0].mxu0
      %v1678 = vadd.f32 0.0, %v1677
      %v1679 = vpop.f32.mrb[0].mxu0
      %1680 = vdwg.mxu0
      %v1681 = vadd.f32 %v1594, %v1678
      %v1682 = vrot.slane %v617, 6
      %v1683 = vrot.slane %v690, 5
      %v1684 = vsel %vm1155, %v1683, %v1682
      %v1685 = vrot.slane %v763, 4
      %v1686 = vsel %vm1158, %v1685, %v1684
      %v1687 = vrot.slane %v836, 3
      %v1688 = vsel %vm1161, %v1687, %v1686
      %v1689 = vrot.slane %v909, 2
      %v1690 = vsel %vm1164, %v1689, %v1688
      %v1691 = vrot.slane %v982, 1
      %v1692 = vsel %vm1167, %v1691, %v1690
      %v1693 = vsel %vm1170, %v1055, %v1692
      %v1694 = vrot.slane %v1128, 7
      %v1695 = vsel %vm1173, %v1694, %v1693
      %v1696 = vsel %vm1175, %v1695, 0
      %1698 = vmatprep.subr.mxu0 0.0
      %1699 = vmatpush1.msra.mxu0 %v1143
      %1700 = vmatprep.subr.mxu0 0.0
      %1701 = vmatpush1.msra.mxu0 %v1144
      %1702 = vmatprep.subr.mxu0 0.0
      %1703 = vmatpush1.msra.mxu0 0.0
      %1704 = vmatprep.subr.mxu0 0.0
      %1705 = vmatpush1.msra.mxu0 0.0
      %1706 = vmatprep.subr.mxu0 0.0
      %1707 = vmatpush1.msra.mxu0 0.0
      %1708 = vmatprep.subr.mxu0 0.0
      %1709 = vmatpush1.msra.mxu0 0.0
      %1710 = vmatprep.subr.mxu0 0.0
      %1711 = vmatpush1.msra.mxu0 0.0
      %1712 = vmatprep.subr.mxu0 0.0
      %1713 = vmatpush1.msra.mxu0 0.0
      %1714 = vmatprep.subr.mxu0 0.0
      %1715 = vmatpush1.msra.mxu0 0.0
      %1716 = vmatprep.subr.mxu0 0.0
      %1717 = vmatpush1.msra.mxu0 0.0
      %1718 = vmatprep.subr.mxu0 0.0
      %1719 = vmatpush1.msra.mxu0 0.0
      %1720 = vmatprep.subr.mxu0 0.0
      %1721 = vmatpush1.msra.mxu0 0.0
      %1722 = vmatprep.subr.mxu0 0.0
      %1723 = vmatpush1.msra.mxu0 0.0
      %1724 = vmatprep.subr.mxu0 0.0
      %1725 = vmatpush1.msra.mxu0 0.0
      %1726 = vmatprep.subr.mxu0 0.0
      %1727 = vmatpush1.msra.mxu0 0.0
      %1728 = vmatprep.subr.mxu0 0.0
      %1729 = vmatpush1.msra.mxu0 0.0
      %1730 = vmatprep.subr.mxu0 0.0
      %1731 = vmatpush1.msra.mxu0 0.0
      %1732 = vmatprep.subr.mxu0 0.0
      %1733 = vmatpush1.msra.mxu0 0.0
      %1734 = vmatprep.subr.mxu0 0.0
      %1735 = vmatpush1.msra.mxu0 0.0
      %1736 = vmatprep.subr.mxu0 0.0
      %1737 = vmatpush1.msra.mxu0 0.0
      %1738 = vmatprep.subr.mxu0 0.0
      %1739 = vmatpush1.msra.mxu0 0.0
      %1740 = vmatprep.subr.mxu0 0.0
      %1741 = vmatpush1.msra.mxu0 0.0
      %1742 = vmatprep.subr.mxu0 0.0
      %1743 = vmatpush1.msra.mxu0 0.0
      %1744 = vmatprep.subr.mxu0 0.0
      %1745 = vmatpush1.msra.mxu0 0.0
      %1746 = vmatprep.subr.mxu0 0.0
      %1747 = vmatpush1.msra.mxu0 0.0
      %1748 = vmatprep.subr.mxu0 0.0
      %1749 = vmatpush1.msra.mxu0 0.0
      %1750 = vmatprep.subr.mxu0 0.0
      %1751 = vmatpush1.msra.mxu0 0.0
      %1752 = vmatprep.subr.mxu0 0.0
      %1753 = vmatpush1.msra.mxu0 0.0
      %1754 = vmatprep.subr.mxu0 0.0
      %1755 = vmatpush1.msra.mxu0 0.0
      %1756 = vmatprep.subr.mxu0 0.0
      %1757 = vmatpush1.msra.mxu0 0.0
      %1758 = vmatprep.subr.mxu0 0.0
      %1759 = vmatpush1.msra.mxu0 0.0
      %1760 = vmatprep.subr.mxu0 0.0
      %1761 = vmatpush1.msra.mxu0 0.0
      %1762 = vmatprep.mubr.f32.mxu0 0.0
      %1763 = vmatmul.mubr.f32.gmra.mrb[0].mxu0 %v1696
      %v1764 = vpop.f32.mrb[0].mxu0
      %v1765 = vadd.f32 0.0, %v1764
      %v1766 = vpop.f32.mrb[0].mxu0
      %1767 = vdwg.mxu0
      %v1768 = vadd.f32 %v1681, %v1765
      %v1770 = vlaneseq
      %v1771 = vshrl.u32 %v1770, 7
      %v1772 = vsub.s32 0, %v1771
      %v1773 = vrot.slane %v1145, %v1772
      %v1775 = vadd.f32 %v1768, %v1773
      %v1776 = vmax.f32 %v1775, 0.0
      %v1777 = vld [vmem:[%s4] sm:$0xff]
      %v1778 = vld [vmem:[%s4 + $0x8] sm:$0xff]
      %v1779 = vld [vmem:[%s4 + $0x10] sm:$0xff]
      %v1780 = vld [vmem:[%s4 + $0x18] sm:$0xff]
      %v1781 = vld [vmem:[%s4 + $0x20] sm:$0xff]
      %v1782 = vld [vmem:[%s4 + $0x28] sm:$0xff]
      %v1783 = vld [vmem:[%s4 + $0x30] sm:$0xff]
      %v1784 = vld [vmem:[%s4 + $0x38] sm:$0xff]
      %v1785 = vld [vmem:[%s5] sm:$0x1]
      %v1787 = vlaneseq
      %v1788 = vshrl.u32 %v1787, 7
      %v1789 = vsub.s32 0, %v1788
      %v1790 = vrot.slane %v1785, %v1789
      %vm1792 = vcmask 523264
      %v1794 = vsel %vm1792, %v1776, 0
      %1796 = vmatprep.subr.mxu0 0.0
      %1797 = vmatpush1.msra.mxu0 %v1777
      %1798 = vmatprep.subr.mxu0 0.0
      %1799 = vmatpush1.msra.mxu0 %v1778
      %1800 = vmatprep.subr.mxu0 0.0
      %1801 = vmatpush1.msra.mxu0 %v1779
      %1802 = vmatprep.subr.mxu0 0.0
      %1803 = vmatpush1.msra.mxu0 %v1780
      %1804 = vmatprep.subr.mxu0 0.0
      %1805 = vmatpush1.msra.mxu0 %v1781
      %1806 = vmatprep.subr.mxu0 0.0
      %1807 = vmatpush1.msra.mxu0 %v1782
      %1808 = vmatprep.subr.mxu0 0.0
      %1809 = vmatpush1.msra.mxu0 %v1783
      %1810 = vmatprep.subr.mxu0 0.0
      %1811 = vmatpush1.msra.mxu0 %v1784
      %1812 = vmatprep.subr.mxu0 0.0
      %1813 = vmatpush1.msra.mxu0 0.0
      %1814 = vmatprep.subr.mxu0 0.0
      %1815 = vmatpush1.msra.mxu0 0.0
      %1816 = vmatprep.subr.mxu0 0.0
      %1817 = vmatpush1.msra.mxu0 0.0
      %1818 = vmatprep.subr.mxu0 0.0
      %1819 = vmatpush1.msra.mxu0 0.0
      %1820 = vmatprep.subr.mxu0 0.0
      %1821 = vmatpush1.msra.mxu0 0.0
      %1822 = vmatprep.subr.mxu0 0.0
      %1823 = vmatpush1.msra.mxu0 0.0
      %1824 = vmatprep.subr.mxu0 0.0
      %1825 = vmatpush1.msra.mxu0 0.0
      %1826 = vmatprep.subr.mxu0 0.0
      %1827 = vmatpush1.msra.mxu0 0.0
      %1828 = vmatprep.subr.mxu0 0.0
      %1829 = vmatpush1.msra.mxu0 0.0
      %1830 = vmatprep.subr.mxu0 0.0
      %1831 = vmatpush1.msra.mxu0 0.0
      %1832 = vmatprep.subr.mxu0 0.0
      %1833 = vmatpush1.msra.mxu0 0.0
      %1834 = vmatprep.subr.mxu0 0.0
      %1835 = vmatpush1.msra.mxu0 0.0
      %1836 = vmatprep.subr.mxu0 0.0
      %1837 = vmatpush1.msra.mxu0 0.0
      %1838 = vmatprep.subr.mxu0 0.0
      %1839 = vmatpush1.msra.mxu0 0.0
      %1840 = vmatprep.subr.mxu0 0.0
      %1841 = vmatpush1.msra.mxu0 0.0
      %1842 = vmatprep.subr.mxu0 0.0
      %1843 = vmatpush1.msra.mxu0 0.0
      %1844 = vmatprep.subr.mxu0 0.0
      %1845 = vmatpush1.msra.mxu0 0.0
      %1846 = vmatprep.subr.mxu0 0.0
      %1847 = vmatpush1.msra.mxu0 0.0
      %1848 = vmatprep.subr.mxu0 0.0
      %1849 = vmatpush1.msra.mxu0 0.0
      %1850 = vmatprep.subr.mxu0 0.0
      %1851 = vmatpush1.msra.mxu0 0.0
      %1852 = vmatprep.subr.mxu0 0.0
      %1853 = vmatpush1.msra.mxu0 0.0
      %1854 = vmatprep.subr.mxu0 0.0
      %1855 = vmatpush1.msra.mxu0 0.0
      %1856 = vmatprep.subr.mxu0 0.0
      %1857 = vmatpush1.msra.mxu0 0.0
      %1858 = vmatprep.subr.mxu0 0.0
      %1859 = vmatpush1.msra.mxu0 0.0
      %1860 = vmatprep.mubr.f32.mxu0 0.0
      %1861 = vmatmul.mubr.f32.gmra.mrb[0].mxu0 %v1794
      %v1862 = vpop.f32.mrb[0].mxu0
      %v1863 = vadd.f32 %v1790, %v1862
      %v1864 = vpop.f32.mrb[0].mxu0
      %1865 = vdwg.mxu0
      %v1866 = vmax.f32 %v1863, 0.0
      %1867 = vst.msk [vmem:[%s273] sm:$0xff] %vm546, %v1866
      %p1868 = scmp.lt.s32.totalorder %s17, 1
      %s1869 = scalar_select %p1868, %s17, 1
      %s1870 = smul.addr %s1869, 8
      %s1871 = scalar_lea.vmem %s6, %s1870
      // Predicated region
      $region45: #{fpac_forward.3} parent=43 // pred_check
        %p1872 = pneg %p171
      $region46: #{fpac_forward.3} parent=43 // pred_check_branch
        %1874 = sbr.rel (%p1872) target = $region48
      $region47: #{fpac_forward.3} parent=43 // pred_region
        _
      $region48: #{fpac_forward.3} parent=43 // pred_fallthru
        _
    $region44: #{fpac_forward.3} parent=5 // pred_fallthru
      _
    %p1875 = scmp.le.s32.totalorder 2, %s12
    // Predicated region
    $region49: #{fpac_forward.3} parent=5 // pred_check
      %p1876 = pneg %p1875
    $region50: #{fpac_forward.3} parent=5 // pred_check_branch
      %1878 = sbr.rel (%p1876) target = $region52
    $region51: #{fpac_forward.3} parent=5 // pred_region
      %s1879 = ssub.s32 %s12, 2
      // Predicated region
      $region53: #{fpac_forward.3} parent=51 // pred_check
        %p1880 = pneg %p177
      $region54: #{fpac_forward.3} parent=51 // pred_check_branch
        %1882 = sbr.rel (%p1880) target = $region56
      $region55: #{fpac_forward.3} parent=51 // pred_region
        %p1883 = scmp.lt.s32.totalorder %s18, 1
        %s1884 = scalar_select %p1883, %s18, 1
        %s1885 = smul.addr %s1884, 8
        %s1886 = scalar_lea.vmem %s6, %s1885
      $region56: #{fpac_forward.3} parent=51 // pred_fallthru
        _
    $region52: #{fpac_forward.3} parent=5 // pred_fallthru
      _
  $region6: #{fpac_forward.3} parent=0 // loop_footer
    %s16 = sadd.s32 1, %s12
  $region7: #{fpac_forward.3} parent=0 // loop_footer_branch
    %11 = sbr.rel target = $region3
  $region8: #{fpac_forward.3} parent=0 // loop_exit
    _

</llo_original>
